<compile_context>
chip_gen: v5e
topology: v5e:2x2
jax: 0.10.0
libtpu: 0.0.40
codegen_flags: <defaults>
</compile_context>

<pallas_src>
import jax
import jax.numpy as jnp
from jax.experimental import pallas as pl
from jax.experimental.pallas import tpu as pltpu


# ---------------------------------------------------------------------------
# Fused LeNet-5 kernel (one grid step == one image)
# ---------------------------------------------------------------------------
def _lenet5_kernel(patches_ref,            # (1, 16, 7, 175) bf16  conv1 im2col, per mod-4 phase
                   w1bd_ref, b1t_ref,      # (175, 42) bf16 , (1, 42) f32
                   w2bd_ref, b2t_ref,      # (5, 5, 30, 80) bf16 , (1, 80) f32
                   w3r_ref, b3_ref,        # (5, 80, 120) bf16 , (1, 120) f32
                   wfc1_ref, bfc1_ref,     # (120, 84) bf16 , (1, 84) f32
                   wfc2_ref, bfc2_ref,     # (84, 10) bf16 , (1, 10) f32
                   out_ref):               # (1, 1, 10) f32
    f32 = jnp.float32
    bf16 = jnp.bfloat16

    # ---- conv1: 16 spatial phases of the 28x28 output (hc = 4i+P, wc = 4j+Q).
    # Each phase: (7, 175) patches @ (175, 42) block-diag weights -> (7, 42)
    # laid out as [i, j*6 + co]  (channels-last, packed on lanes).
    w1bd = w1bd_ref[...]
    z = [[None] * 4 for _ in range(4)]
    for P in range(4):
        for Q in range(4):
            z[P][Q] = jnp.dot(patches_ref[0, P * 4 + Q], w1bd,
                              preferred_element_type=f32)

    # ---- maxpool(2,2) + relu of conv1, produced directly in the 4 mod-2
    # phase planes that conv2 consumes: x2[a][b][i, j*6+co] = X2[2i+a, 2j+b, co]
    b1t = b1t_ref[...]
    x2 = [[None, None], [None, None]]
    for a in range(2):
        for b in range(2):
            m = jnp.maximum(jnp.maximum(z[2 * a][2 * b], z[2 * a][2 * b + 1]),
                            jnp.maximum(z[2 * a + 1][2 * b], z[2 * a + 1][2 * b + 1]))
            x2[a][b] = jnp.maximum(m + b1t, 0.0)          # (7, 42) f32

    # ---- conv2 as its 4 output quadrants, then maxpool(2,2) + relu -> x3.
    # Quadrant (p, q): sum over the 25 taps of a (5, 30) slice of the right
    # phase plane @ (30, 80) block-diag weights, accumulated in f32.
    b2t = b2t_ref[...]
    x3 = None
    for p in range(2):
        for q in range(2):
            acc = jnp.zeros((5, 80), f32)
            for di in range(5):
                for dj in range(5):
                    plane = x2[(p + di) % 2][(q + dj) % 2]
                    rs = (p + di) // 2
                    cs = ((q + dj) // 2) * 6
                    blk = plane[rs:rs + 5, cs:cs + 30]     # (5, 30)
                    acc = acc + jnp.dot(blk.astype(bf16), w2bd_ref[di, dj],
                                        preferred_element_type=f32)
            x3 = acc if x3 is None else jnp.maximum(x3, acc)
    x3 = jnp.maximum(x3 + b2t, 0.0)                        # (5, 80) == 5x5x16

    # ---- conv3 (5x5, 16 -> 120, output 1x1) + relu: 5 row matmuls.
    y = b3_ref[...]                                        # (1, 120)
    for di in range(5):
        y = y + jnp.dot(x3[di:di + 1, :].astype(bf16), w3r_ref[di],
                        preferred_element_type=f32)
    y = jnp.maximum(y, 0.0)

    # ---- fc1 + relu, fc2 ----
    h = jnp.maximum(jnp.dot(y.astype(bf16), wfc1_ref[...],
                            preferred_element_type=f32) + bfc1_ref[...], 0.0)
    logits = jnp.dot(h.astype(bf16), wfc2_ref[...],
                     preferred_element_type=f32) + bfc2_ref[...]
    out_ref[0] = logits                                    # (1, 10)


# ---------------------------------------------------------------------------
# Wrapper: host-side layout/weight prep (tiny, one XLA fusion) + pallas_call
# ---------------------------------------------------------------------------
def _const_spec(arr):
    n = arr.ndim
    return pl.BlockSpec(arr.shape, lambda b, n=n: (0,) * n)


def lenet5_forward(x, p):
    """x: (B, 1, 28, 28) float32 NCHW; p: torch-layout parameters."""
    B = x.shape[0]
    bf16 = jnp.bfloat16

    # conv1 im2col, organised by the 16 mod-4 phases of the 28x28 conv output:
    # patches[b, P*4+Q, i, j*25 + (di*5+dj)] = xpad[b, 4i+P+di, 4j+Q+dj]
    xp = jnp.pad(x[:, 0], ((0, 0), (2, 2), (2, 2)))                    # (B,32,32)
    taps = jnp.stack([xp[:, di:di + 28, dj:dj + 28]
                      for di in range(5) for dj in range(5)], axis=-1)  # (B,28,28,25)
    patches = taps.reshape(B, 7, 4, 7, 4, 25).transpose(0, 2, 4, 1, 3, 5)
    patches = patches.reshape(B, 16, 7, 7 * 25).astype(bf16)

    # conv1 weights as a block-diagonal (175, 42) matrix (j-block diagonal).
    w1col = p["w1"].reshape(6, 25).T                                    # (25, 6) [tap, co]
    w1bd = jnp.kron(jnp.eye(7, dtype=w1col.dtype), w1col).astype(bf16)  # (175, 42)
    b1t = jnp.tile(p["b1"], 7).reshape(1, 42)

    # conv2 weights: per-tap block-diagonal (30, 80) matrices.
    w2m = p["w2"].transpose(2, 3, 1, 0)                                 # (5,5,6,16) [di,dj,ci,co]
    w2bd = jnp.einsum("jk,abcd->abjckd", jnp.eye(5, dtype=w2m.dtype), w2m)
    w2bd = w2bd.reshape(5, 5, 30, 80).astype(bf16)
    b2t = jnp.tile(p["b2"], 5).reshape(1, 80)

    # conv3 weights: per-row (80, 120) matrices; fc weights transposed.
    w3r = p["w3"].transpose(2, 3, 1, 0).reshape(5, 80, 120).astype(bf16)
    b3 = p["b3"].reshape(1, 120)
    wfc1 = p["wfc1"].T.astype(bf16)                                     # (120, 84)
    bfc1 = p["bfc1"].reshape(1, 84)
    wfc2 = p["wfc2"].T.astype(bf16)                                     # (84, 10)
    bfc2 = p["bfc2"].reshape(1, 10)

    weights = (w1bd, b1t, w2bd, b2t, w3r, b3, wfc1, bfc1, wfc2, bfc2)

    flops = B * 2 * (25 * 784 * 6 + 150 * 100 * 16 + 400 * 120 + 120 * 84 + 84 * 10)
    bytes_accessed = (patches.size * 2
                      + sum(w.size * 2 for w in (w1bd, w2bd, w3r, wfc1, wfc2))
                      + sum(v.size * 4 for v in (b1t, b2t, b3, bfc1, bfc2))
                      + B * 10 * 4)

    out = pl.pallas_call(
        _lenet5_kernel,
        out_shape=jax.ShapeDtypeStruct((B, 1, 10), jnp.float32),
        grid=(B,),
        in_specs=[pl.BlockSpec((1, 16, 7, 175), lambda b: (b, 0, 0, 0))]
                 + [_const_spec(w) for w in weights],
        out_specs=pl.BlockSpec((1, 1, 10), lambda b: (b, 0, 0)),
        compiler_params=pltpu.CompilerParams(dimension_semantics=("parallel",)),
        cost_estimate=pl.CostEstimate(flops=flops, transcendentals=0,
                                      bytes_accessed=bytes_accessed),
    )(patches, *weights)
    return out.reshape(B, 10)


# ---------------------------------------------------------------------------
# Pure-JAX reference (f32, HIGHEST precision) and parameter init
# ---------------------------------------------------------------------------
def lenet5_reference(x, p):
    def conv(x, w, b, pad):
        y = jax.lax.conv_general_dilated(
            x, w, (1, 1), [(pad, pad), (pad, pad)],
            dimension_numbers=("NCHW", "OIHW", "NCHW"),
            precision=jax.lax.Precision.HIGHEST,
        )
        return y + b.reshape(1, -1, 1, 1)

    def pool(x):
        return jax.lax.reduce_window(
            x, -jnp.inf, jax.lax.max, (1, 1, 2, 2), (1, 1, 2, 2), "VALID"
        )

    y = jnp.maximum(pool(conv(x, p["w1"], p["b1"], 2)), 0.0)
    y = jnp.maximum(pool(conv(y, p["w2"], p["b2"], 0)), 0.0)
    y = jnp.maximum(conv(y, p["w3"], p["b3"], 0), 0.0)
    y = y.reshape(-1, 120)
    y = jnp.maximum(y @ p["wfc1"].T + p["bfc1"], 0.0)
    y = y @ p["wfc2"].T + p["bfc2"]
    return y


def init_params(key):
    ks = jax.random.split(key, 10)
    s = 0.1
    return {
        "w1": s * jax.random.normal(ks[0], (6, 1, 5, 5), jnp.float32),
        "b1": s * jax.random.normal(ks[1], (6,), jnp.float32),
        "w2": s * jax.random.normal(ks[2], (16, 6, 5, 5), jnp.float32),
        "b2": s * jax.random.normal(ks[3], (16,), jnp.float32),
        "w3": s * jax.random.normal(ks[4], (120, 16, 5, 5), jnp.float32),
        "b3": s * jax.random.normal(ks[5], (120,), jnp.float32),
        "wfc1": s * jax.random.normal(ks[6], (84, 120), jnp.float32),  # torch Linear (out, in)
        "bfc1": s * jax.random.normal(ks[7], (84,), jnp.float32),
        "wfc2": s * jax.random.normal(ks[8], (10, 84), jnp.float32),
        "bfc2": s * jax.random.normal(ks[9], (10,), jnp.float32),
    }


if __name__ == "__main__":
    key = jax.random.PRNGKey(0)
    k_x, k_p = jax.random.split(key)
    # LeNet-5 requires 28x28 single-channel input (view(-1, 120) implies it).
    x = jax.random.normal(k_x, (2, 1, 28, 28), jnp.float32)
    params = init_params(k_p)

    out = jax.block_until_ready(jax.jit(lenet5_forward)(x, params))
    assert out.shape == (2, 10) and out.dtype == jnp.float32

    ref = jax.block_until_ready(jax.jit(lenet5_reference)(x, params))
    # Kernel matmuls use bf16 operands (f32 accumulation), so compare with a
    # bf16-appropriate tolerance against the full-f32 reference.
    assert jnp.allclose(out, ref, atol=5e-2, rtol=5e-2), (
        f"max abs err {jnp.max(jnp.abs(out - ref))}"
    )
    print("KERNEL_OK")
</pallas_src>

<mosaic_0001>
module attributes {stable_mosaic.version = 11 : i64} {
  func.func @_lenet5_kernel(%arg0: i32, %arg1: memref<1x16x7x175xbf16, #tpu.memory_space<vmem>>, %arg2: memref<175x42xbf16, #tpu.memory_space<vmem>>, %arg3: memref<1x42xf32, #tpu.memory_space<vmem>>, %arg4: memref<5x5x30x80xbf16, #tpu.memory_space<vmem>>, %arg5: memref<1x80xf32, #tpu.memory_space<vmem>>, %arg6: memref<5x80x120xbf16, #tpu.memory_space<vmem>>, %arg7: memref<1x120xf32, #tpu.memory_space<vmem>>, %arg8: memref<120x84xbf16, #tpu.memory_space<vmem>>, %arg9: memref<1x84xf32, #tpu.memory_space<vmem>>, %arg10: memref<84x10xbf16, #tpu.memory_space<vmem>>, %arg11: memref<1x10xf32, #tpu.memory_space<vmem>>, %arg12: memref<1x1x10xf32, #tpu.memory_space<vmem>>) attributes {dimension_semantics = [#tpu.dimension_semantics<parallel>], iteration_bounds = array<i64: 2>, scalar_prefetch = 0 : i64, scratch_operands = 0 : i64, tpu.core_type = #tpu.core_type<tc>, window_params = [{transform_indices = @transform_0, window_bounds = array<i64: 1, 16, 7, 175>}, {pipeline_mode = #tpu.pipeline_mode<synchronous>, transform_indices = @transform_1, window_bounds = array<i64: 175, 42>}, {pipeline_mode = #tpu.pipeline_mode<synchronous>, transform_indices = @transform_2, window_bounds = array<i64: 1, 42>}, {pipeline_mode = #tpu.pipeline_mode<synchronous>, transform_indices = @transform_3, window_bounds = array<i64: 5, 5, 30, 80>}, {pipeline_mode = #tpu.pipeline_mode<synchronous>, transform_indices = @transform_4, window_bounds = array<i64: 1, 80>}, {pipeline_mode = #tpu.pipeline_mode<synchronous>, transform_indices = @transform_5, window_bounds = array<i64: 5, 80, 120>}, {pipeline_mode = #tpu.pipeline_mode<synchronous>, transform_indices = @transform_6, window_bounds = array<i64: 1, 120>}, {pipeline_mode = #tpu.pipeline_mode<synchronous>, transform_indices = @transform_7, window_bounds = array<i64: 120, 84>}, {pipeline_mode = #tpu.pipeline_mode<synchronous>, transform_indices = @transform_8, window_bounds = array<i64: 1, 84>}, {pipeline_mode = #tpu.pipeline_mode<synchronous>, transform_indices = @transform_9, window_bounds = array<i64: 84, 10>}, {pipeline_mode = #tpu.pipeline_mode<synchronous>, transform_indices = @transform_10, window_bounds = array<i64: 1, 10>}, {transform_indices = @transform_11, window_bounds = array<i64: 1, 1, 10>}]} {
    %c0 = arith.constant 0 : index
    %c0_0 = arith.constant 0 : index
    %0 = vector.load %arg2[%c0, %c0_0] : memref<175x42xbf16, #tpu.memory_space<vmem>>, vector<175x42xbf16>
    %c0_1 = arith.constant 0 : index
    %c0_2 = arith.constant 0 : index
    %c0_3 = arith.constant 0 : index
    %c0_4 = arith.constant 0 : index
    %1 = vector.load %arg1[%c0_1, %c0_2, %c0_3, %c0_4] : memref<1x16x7x175xbf16, #tpu.memory_space<vmem>>, vector<1x1x7x175xbf16>
    %2 = vector.shape_cast %1 : vector<1x1x7x175xbf16> to vector<7x175xbf16>
    %cst = arith.constant dense<0.000000e+00> : vector<7x42xf32>
    %3 = tpu.matmul %2, %0, %cst {dimension_numbers = #tpu.dot_dimension_numbers<[1], [0], [0], [1], [0, 0, 1, 1], [], []>} : vector<7x175xbf16>, vector<175x42xbf16>, vector<7x42xf32> -> vector<7x42xf32>
    %c0_5 = arith.constant 0 : index
    %c1 = arith.constant 1 : index
    %c0_6 = arith.constant 0 : index
    %c0_7 = arith.constant 0 : index
    %4 = vector.load %arg1[%c0_5, %c1, %c0_6, %c0_7] : memref<1x16x7x175xbf16, #tpu.memory_space<vmem>>, vector<1x1x7x175xbf16>
    %5 = vector.shape_cast %4 : vector<1x1x7x175xbf16> to vector<7x175xbf16>
    %cst_8 = arith.constant dense<0.000000e+00> : vector<7x42xf32>
    %6 = tpu.matmul %5, %0, %cst_8 {dimension_numbers = #tpu.dot_dimension_numbers<[1], [0], [0], [1], [0, 0, 1, 1], [], []>} : vector<7x175xbf16>, vector<175x42xbf16>, vector<7x42xf32> -> vector<7x42xf32>
    %c0_9 = arith.constant 0 : index
    %c2 = arith.constant 2 : index
    %c0_10 = arith.constant 0 : index
    %c0_11 = arith.constant 0 : index
    %7 = vector.load %arg1[%c0_9, %c2, %c0_10, %c0_11] : memref<1x16x7x175xbf16, #tpu.memory_space<vmem>>, vector<1x1x7x175xbf16>
    %8 = vector.shape_cast %7 : vector<1x1x7x175xbf16> to vector<7x175xbf16>
    %cst_12 = arith.constant dense<0.000000e+00> : vector<7x42xf32>
    %9 = tpu.matmul %8, %0, %cst_12 {dimension_numbers = #tpu.dot_dimension_numbers<[1], [0], [0], [1], [0, 0, 1, 1], [], []>} : vector<7x175xbf16>, vector<175x42xbf16>, vector<7x42xf32> -> vector<7x42xf32>
    %c0_13 = arith.constant 0 : index
    %c3 = arith.constant 3 : index
    %c0_14 = arith.constant 0 : index
    %c0_15 = arith.constant 0 : index
    %10 = vector.load %arg1[%c0_13, %c3, %c0_14, %c0_15] : memref<1x16x7x175xbf16, #tpu.memory_space<vmem>>, vector<1x1x7x175xbf16>
    %11 = vector.shape_cast %10 : vector<1x1x7x175xbf16> to vector<7x175xbf16>
    %cst_16 = arith.constant dense<0.000000e+00> : vector<7x42xf32>
    %12 = tpu.matmul %11, %0, %cst_16 {dimension_numbers = #tpu.dot_dimension_numbers<[1], [0], [0], [1], [0, 0, 1, 1], [], []>} : vector<7x175xbf16>, vector<175x42xbf16>, vector<7x42xf32> -> vector<7x42xf32>
    %c0_17 = arith.constant 0 : index
    %c4 = arith.constant 4 : index
    %c0_18 = arith.constant 0 : index
    %c0_19 = arith.constant 0 : index
    %13 = vector.load %arg1[%c0_17, %c4, %c0_18, %c0_19] : memref<1x16x7x175xbf16, #tpu.memory_space<vmem>>, vector<1x1x7x175xbf16>
    %14 = vector.shape_cast %13 : vector<1x1x7x175xbf16> to vector<7x175xbf16>
    %cst_20 = arith.constant dense<0.000000e+00> : vector<7x42xf32>
    %15 = tpu.matmul %14, %0, %cst_20 {dimension_numbers = #tpu.dot_dimension_numbers<[1], [0], [0], [1], [0, 0, 1, 1], [], []>} : vector<7x175xbf16>, vector<175x42xbf16>, vector<7x42xf32> -> vector<7x42xf32>
    %c0_21 = arith.constant 0 : index
    %c5 = arith.constant 5 : index
    %c0_22 = arith.constant 0 : index
    %c0_23 = arith.constant 0 : index
    %16 = vector.load %arg1[%c0_21, %c5, %c0_22, %c0_23] : memref<1x16x7x175xbf16, #tpu.memory_space<vmem>>, vector<1x1x7x175xbf16>
    %17 = vector.shape_cast %16 : vector<1x1x7x175xbf16> to vector<7x175xbf16>
    %cst_24 = arith.constant dense<0.000000e+00> : vector<7x42xf32>
    %18 = tpu.matmul %17, %0, %cst_24 {dimension_numbers = #tpu.dot_dimension_numbers<[1], [0], [0], [1], [0, 0, 1, 1], [], []>} : vector<7x175xbf16>, vector<175x42xbf16>, vector<7x42xf32> -> vector<7x42xf32>
    %c0_25 = arith.constant 0 : index
    %c6 = arith.constant 6 : index
    %c0_26 = arith.constant 0 : index
    %c0_27 = arith.constant 0 : index
    %19 = vector.load %arg1[%c0_25, %c6, %c0_26, %c0_27] : memref<1x16x7x175xbf16, #tpu.memory_space<vmem>>, vector<1x1x7x175xbf16>
    %20 = vector.shape_cast %19 : vector<1x1x7x175xbf16> to vector<7x175xbf16>
    %cst_28 = arith.constant dense<0.000000e+00> : vector<7x42xf32>
    %21 = tpu.matmul %20, %0, %cst_28 {dimension_numbers = #tpu.dot_dimension_numbers<[1], [0], [0], [1], [0, 0, 1, 1], [], []>} : vector<7x175xbf16>, vector<175x42xbf16>, vector<7x42xf32> -> vector<7x42xf32>
    %c0_29 = arith.constant 0 : index
    %c7 = arith.constant 7 : index
    %c0_30 = arith.constant 0 : index
    %c0_31 = arith.constant 0 : index
    %22 = vector.load %arg1[%c0_29, %c7, %c0_30, %c0_31] : memref<1x16x7x175xbf16, #tpu.memory_space<vmem>>, vector<1x1x7x175xbf16>
    %23 = vector.shape_cast %22 : vector<1x1x7x175xbf16> to vector<7x175xbf16>
    %cst_32 = arith.constant dense<0.000000e+00> : vector<7x42xf32>
    %24 = tpu.matmul %23, %0, %cst_32 {dimension_numbers = #tpu.dot_dimension_numbers<[1], [0], [0], [1], [0, 0, 1, 1], [], []>} : vector<7x175xbf16>, vector<175x42xbf16>, vector<7x42xf32> -> vector<7x42xf32>
    %c0_33 = arith.constant 0 : index
    %c8 = arith.constant 8 : index
    %c0_34 = arith.constant 0 : index
    %c0_35 = arith.constant 0 : index
    %25 = vector.load %arg1[%c0_33, %c8, %c0_34, %c0_35] : memref<1x16x7x175xbf16, #tpu.memory_space<vmem>>, vector<1x1x7x175xbf16>
    %26 = vector.shape_cast %25 : vector<1x1x7x175xbf16> to vector<7x175xbf16>
    %cst_36 = arith.constant dense<0.000000e+00> : vector<7x42xf32>
    %27 = tpu.matmul %26, %0, %cst_36 {dimension_numbers = #tpu.dot_dimension_numbers<[1], [0], [0], [1], [0, 0, 1, 1], [], []>} : vector<7x175xbf16>, vector<175x42xbf16>, vector<7x42xf32> -> vector<7x42xf32>
    %c0_37 = arith.constant 0 : index
    %c9 = arith.constant 9 : index
    %c0_38 = arith.constant 0 : index
    %c0_39 = arith.constant 0 : index
    %28 = vector.load %arg1[%c0_37, %c9, %c0_38, %c0_39] : memref<1x16x7x175xbf16, #tpu.memory_space<vmem>>, vector<1x1x7x175xbf16>
    %29 = vector.shape_cast %28 : vector<1x1x7x175xbf16> to vector<7x175xbf16>
    %cst_40 = arith.constant dense<0.000000e+00> : vector<7x42xf32>
    %30 = tpu.matmul %29, %0, %cst_40 {dimension_numbers = #tpu.dot_dimension_numbers<[1], [0], [0], [1], [0, 0, 1, 1], [], []>} : vector<7x175xbf16>, vector<175x42xbf16>, vector<7x42xf32> -> vector<7x42xf32>
    %c0_41 = arith.constant 0 : index
    %c10 = arith.constant 10 : index
    %c0_42 = arith.constant 0 : index
    %c0_43 = arith.constant 0 : index
    %31 = vector.load %arg1[%c0_41, %c10, %c0_42, %c0_43] : memref<1x16x7x175xbf16, #tpu.memory_space<vmem>>, vector<1x1x7x175xbf16>
    %32 = vector.shape_cast %31 : vector<1x1x7x175xbf16> to vector<7x175xbf16>
    %cst_44 = arith.constant dense<0.000000e+00> : vector<7x42xf32>
    %33 = tpu.matmul %32, %0, %cst_44 {dimension_numbers = #tpu.dot_dimension_numbers<[1], [0], [0], [1], [0, 0, 1, 1], [], []>} : vector<7x175xbf16>, vector<175x42xbf16>, vector<7x42xf32> -> vector<7x42xf32>
    %c0_45 = arith.constant 0 : index
    %c11 = arith.constant 11 : index
    %c0_46 = arith.constant 0 : index
    %c0_47 = arith.constant 0 : index
    %34 = vector.load %arg1[%c0_45, %c11, %c0_46, %c0_47] : memref<1x16x7x175xbf16, #tpu.memory_space<vmem>>, vector<1x1x7x175xbf16>
    %35 = vector.shape_cast %34 : vector<1x1x7x175xbf16> to vector<7x175xbf16>
    %cst_48 = arith.constant dense<0.000000e+00> : vector<7x42xf32>
    %36 = tpu.matmul %35, %0, %cst_48 {dimension_numbers = #tpu.dot_dimension_numbers<[1], [0], [0], [1], [0, 0, 1, 1], [], []>} : vector<7x175xbf16>, vector<175x42xbf16>, vector<7x42xf32> -> vector<7x42xf32>
    %c0_49 = arith.constant 0 : index
    %c12 = arith.constant 12 : index
    %c0_50 = arith.constant 0 : index
    %c0_51 = arith.constant 0 : index
    %37 = vector.load %arg1[%c0_49, %c12, %c0_50, %c0_51] : memref<1x16x7x175xbf16, #tpu.memory_space<vmem>>, vector<1x1x7x175xbf16>
    %38 = vector.shape_cast %37 : vector<1x1x7x175xbf16> to vector<7x175xbf16>
    %cst_52 = arith.constant dense<0.000000e+00> : vector<7x42xf32>
    %39 = tpu.matmul %38, %0, %cst_52 {dimension_numbers = #tpu.dot_dimension_numbers<[1], [0], [0], [1], [0, 0, 1, 1], [], []>} : vector<7x175xbf16>, vector<175x42xbf16>, vector<7x42xf32> -> vector<7x42xf32>
    %c0_53 = arith.constant 0 : index
    %c13 = arith.constant 13 : index
    %c0_54 = arith.constant 0 : index
    %c0_55 = arith.constant 0 : index
    %40 = vector.load %arg1[%c0_53, %c13, %c0_54, %c0_55] : memref<1x16x7x175xbf16, #tpu.memory_space<vmem>>, vector<1x1x7x175xbf16>
    %41 = vector.shape_cast %40 : vector<1x1x7x175xbf16> to vector<7x175xbf16>
    %cst_56 = arith.constant dense<0.000000e+00> : vector<7x42xf32>
    %42 = tpu.matmul %41, %0, %cst_56 {dimension_numbers = #tpu.dot_dimension_numbers<[1], [0], [0], [1], [0, 0, 1, 1], [], []>} : vector<7x175xbf16>, vector<175x42xbf16>, vector<7x42xf32> -> vector<7x42xf32>
    %c0_57 = arith.constant 0 : index
    %c14 = arith.constant 14 : index
    %c0_58 = arith.constant 0 : index
    %c0_59 = arith.constant 0 : index
    %43 = vector.load %arg1[%c0_57, %c14, %c0_58, %c0_59] : memref<1x16x7x175xbf16, #tpu.memory_space<vmem>>, vector<1x1x7x175xbf16>
    %44 = vector.shape_cast %43 : vector<1x1x7x175xbf16> to vector<7x175xbf16>
    %cst_60 = arith.constant dense<0.000000e+00> : vector<7x42xf32>
    %45 = tpu.matmul %44, %0, %cst_60 {dimension_numbers = #tpu.dot_dimension_numbers<[1], [0], [0], [1], [0, 0, 1, 1], [], []>} : vector<7x175xbf16>, vector<175x42xbf16>, vector<7x42xf32> -> vector<7x42xf32>
    %c0_61 = arith.constant 0 : index
    %c15 = arith.constant 15 : index
    %c0_62 = arith.constant 0 : index
    %c0_63 = arith.constant 0 : index
    %46 = vector.load %arg1[%c0_61, %c15, %c0_62, %c0_63] : memref<1x16x7x175xbf16, #tpu.memory_space<vmem>>, vector<1x1x7x175xbf16>
    %47 = vector.shape_cast %46 : vector<1x1x7x175xbf16> to vector<7x175xbf16>
    %cst_64 = arith.constant dense<0.000000e+00> : vector<7x42xf32>
    %48 = tpu.matmul %47, %0, %cst_64 {dimension_numbers = #tpu.dot_dimension_numbers<[1], [0], [0], [1], [0, 0, 1, 1], [], []>} : vector<7x175xbf16>, vector<175x42xbf16>, vector<7x42xf32> -> vector<7x42xf32>
    %c0_65 = arith.constant 0 : index
    %c0_66 = arith.constant 0 : index
    %49 = vector.load %arg3[%c0_65, %c0_66] : memref<1x42xf32, #tpu.memory_space<vmem>>, vector<1x42xf32>
    %50 = arith.maximumf %3, %6 : vector<7x42xf32>
    %51 = arith.maximumf %15, %18 : vector<7x42xf32>
    %52 = arith.maximumf %50, %51 : vector<7x42xf32>
    %53 = vector.broadcast %49 : vector<1x42xf32> to vector<7x42xf32>
    %54 = arith.addf %52, %53 : vector<7x42xf32>
    %cst_67 = arith.constant 0.000000e+00 : f32
    %55 = vector.broadcast %cst_67 : f32 to vector<7x42xf32>
    %56 = arith.maximumf %54, %55 : vector<7x42xf32>
    %57 = arith.maximumf %9, %12 : vector<7x42xf32>
    %58 = arith.maximumf %21, %24 : vector<7x42xf32>
    %59 = arith.maximumf %57, %58 : vector<7x42xf32>
    %60 = vector.broadcast %49 : vector<1x42xf32> to vector<7x42xf32>
    %61 = arith.addf %59, %60 : vector<7x42xf32>
    %cst_68 = arith.constant 0.000000e+00 : f32
    %62 = vector.broadcast %cst_68 : f32 to vector<7x42xf32>
    %63 = arith.maximumf %61, %62 : vector<7x42xf32>
    %64 = arith.maximumf %27, %30 : vector<7x42xf32>
    %65 = arith.maximumf %39, %42 : vector<7x42xf32>
    %66 = arith.maximumf %64, %65 : vector<7x42xf32>
    %67 = vector.broadcast %49 : vector<1x42xf32> to vector<7x42xf32>
    %68 = arith.addf %66, %67 : vector<7x42xf32>
    %cst_69 = arith.constant 0.000000e+00 : f32
    %69 = vector.broadcast %cst_69 : f32 to vector<7x42xf32>
    %70 = arith.maximumf %68, %69 : vector<7x42xf32>
    %71 = arith.maximumf %33, %36 : vector<7x42xf32>
    %72 = arith.maximumf %45, %48 : vector<7x42xf32>
    %73 = arith.maximumf %71, %72 : vector<7x42xf32>
    %74 = vector.broadcast %49 : vector<1x42xf32> to vector<7x42xf32>
    %75 = arith.addf %73, %74 : vector<7x42xf32>
    %cst_70 = arith.constant 0.000000e+00 : f32
    %76 = vector.broadcast %cst_70 : f32 to vector<7x42xf32>
    %77 = arith.maximumf %75, %76 : vector<7x42xf32>
    %c0_71 = arith.constant 0 : index
    %c0_72 = arith.constant 0 : index
    %78 = vector.load %arg5[%c0_71, %c0_72] : memref<1x80xf32, #tpu.memory_space<vmem>>, vector<1x80xf32>
    %cst_73 = arith.constant 0.000000e+00 : f32
    %79 = vector.broadcast %cst_73 : f32 to vector<5x80xf32>
    %80 = vector.extract_strided_slice %56 {offsets = [0, 0], sizes = [5, 30], strides = [1, 1]} : vector<7x42xf32> to vector<5x30xf32>
    %81 = arith.truncf %80 : vector<5x30xf32> to vector<5x30xbf16>
    %c0_74 = arith.constant 0 : index
    %c0_75 = arith.constant 0 : index
    %c0_76 = arith.constant 0 : index
    %c0_77 = arith.constant 0 : index
    %82 = vector.load %arg4[%c0_74, %c0_75, %c0_76, %c0_77] : memref<5x5x30x80xbf16, #tpu.memory_space<vmem>>, vector<1x1x30x80xbf16>
    %83 = vector.shape_cast %82 : vector<1x1x30x80xbf16> to vector<30x80xbf16>
    %cst_78 = arith.constant dense<0.000000e+00> : vector<5x80xf32>
    %84 = tpu.matmul %81, %83, %cst_78 {dimension_numbers = #tpu.dot_dimension_numbers<[1], [0], [0], [1], [0, 0, 1, 1], [], []>} : vector<5x30xbf16>, vector<30x80xbf16>, vector<5x80xf32> -> vector<5x80xf32>
    %85 = arith.addf %79, %84 : vector<5x80xf32>
    %86 = vector.extract_strided_slice %63 {offsets = [0, 0], sizes = [5, 30], strides = [1, 1]} : vector<7x42xf32> to vector<5x30xf32>
    %87 = arith.truncf %86 : vector<5x30xf32> to vector<5x30xbf16>
    %c0_79 = arith.constant 0 : index
    %c1_80 = arith.constant 1 : index
    %c0_81 = arith.constant 0 : index
    %c0_82 = arith.constant 0 : index
    %88 = vector.load %arg4[%c0_79, %c1_80, %c0_81, %c0_82] : memref<5x5x30x80xbf16, #tpu.memory_space<vmem>>, vector<1x1x30x80xbf16>
    %89 = vector.shape_cast %88 : vector<1x1x30x80xbf16> to vector<30x80xbf16>
    %cst_83 = arith.constant dense<0.000000e+00> : vector<5x80xf32>
    %90 = tpu.matmul %87, %89, %cst_83 {dimension_numbers = #tpu.dot_dimension_numbers<[1], [0], [0], [1], [0, 0, 1, 1], [], []>} : vector<5x30xbf16>, vector<30x80xbf16>, vector<5x80xf32> -> vector<5x80xf32>
    %91 = arith.addf %85, %90 : vector<5x80xf32>
    %92 = vector.extract_strided_slice %56 {offsets = [0, 6], sizes = [5, 30], strides = [1, 1]} : vector<7x42xf32> to vector<5x30xf32>
    %93 = arith.truncf %92 : vector<5x30xf32> to vector<5x30xbf16>
    %c0_84 = arith.constant 0 : index
    %c2_85 = arith.constant 2 : index
    %c0_86 = arith.constant 0 : index
    %c0_87 = arith.constant 0 : index
    %94 = vector.load %arg4[%c0_84, %c2_85, %c0_86, %c0_87] : memref<5x5x30x80xbf16, #tpu.memory_space<vmem>>, vector<1x1x30x80xbf16>
    %95 = vector.shape_cast %94 : vector<1x1x30x80xbf16> to vector<30x80xbf16>
    %cst_88 = arith.constant dense<0.000000e+00> : vector<5x80xf32>
    %96 = tpu.matmul %93, %95, %cst_88 {dimension_numbers = #tpu.dot_dimension_numbers<[1], [0], [0], [1], [0, 0, 1, 1], [], []>} : vector<5x30xbf16>, vector<30x80xbf16>, vector<5x80xf32> -> vector<5x80xf32>
    %97 = arith.addf %91, %96 : vector<5x80xf32>
    %98 = vector.extract_strided_slice %63 {offsets = [0, 6], sizes = [5, 30], strides = [1, 1]} : vector<7x42xf32> to vector<5x30xf32>
    %99 = arith.truncf %98 : vector<5x30xf32> to vector<5x30xbf16>
    %c0_89 = arith.constant 0 : index
    %c3_90 = arith.constant 3 : index
    %c0_91 = arith.constant 0 : index
    %c0_92 = arith.constant 0 : index
    %100 = vector.load %arg4[%c0_89, %c3_90, %c0_91, %c0_92] : memref<5x5x30x80xbf16, #tpu.memory_space<vmem>>, vector<1x1x30x80xbf16>
    %101 = vector.shape_cast %100 : vector<1x1x30x80xbf16> to vector<30x80xbf16>
    %cst_93 = arith.constant dense<0.000000e+00> : vector<5x80xf32>
    %102 = tpu.matmul %99, %101, %cst_93 {dimension_numbers = #tpu.dot_dimension_numbers<[1], [0], [0], [1], [0, 0, 1, 1], [], []>} : vector<5x30xbf16>, vector<30x80xbf16>, vector<5x80xf32> -> vector<5x80xf32>
    %103 = arith.addf %97, %102 : vector<5x80xf32>
    %104 = vector.extract_strided_slice %56 {offsets = [0, 12], sizes = [5, 30], strides = [1, 1]} : vector<7x42xf32> to vector<5x30xf32>
    %105 = arith.truncf %104 : vector<5x30xf32> to vector<5x30xbf16>
    %c0_94 = arith.constant 0 : index
    %c4_95 = arith.constant 4 : index
    %c0_96 = arith.constant 0 : index
    %c0_97 = arith.constant 0 : index
    %106 = vector.load %arg4[%c0_94, %c4_95, %c0_96, %c0_97] : memref<5x5x30x80xbf16, #tpu.memory_space<vmem>>, vector<1x1x30x80xbf16>
    %107 = vector.shape_cast %106 : vector<1x1x30x80xbf16> to vector<30x80xbf16>
    %cst_98 = arith.constant dense<0.000000e+00> : vector<5x80xf32>
    %108 = tpu.matmul %105, %107, %cst_98 {dimension_numbers = #tpu.dot_dimension_numbers<[1], [0], [0], [1], [0, 0, 1, 1], [], []>} : vector<5x30xbf16>, vector<30x80xbf16>, vector<5x80xf32> -> vector<5x80xf32>
    %109 = arith.addf %103, %108 : vector<5x80xf32>
    %110 = vector.extract_strided_slice %70 {offsets = [0, 0], sizes = [5, 30], strides = [1, 1]} : vector<7x42xf32> to vector<5x30xf32>
    %111 = arith.truncf %110 : vector<5x30xf32> to vector<5x30xbf16>
    %c1_99 = arith.constant 1 : index
    %c0_100 = arith.constant 0 : index
    %c0_101 = arith.constant 0 : index
    %c0_102 = arith.constant 0 : index
    %112 = vector.load %arg4[%c1_99, %c0_100, %c0_101, %c0_102] : memref<5x5x30x80xbf16, #tpu.memory_space<vmem>>, vector<1x1x30x80xbf16>
    %113 = vector.shape_cast %112 : vector<1x1x30x80xbf16> to vector<30x80xbf16>
    %cst_103 = arith.constant dense<0.000000e+00> : vector<5x80xf32>
    %114 = tpu.matmul %111, %113, %cst_103 {dimension_numbers = #tpu.dot_dimension_numbers<[1], [0], [0], [1], [0, 0, 1, 1], [], []>} : vector<5x30xbf16>, vector<30x80xbf16>, vector<5x80xf32> -> vector<5x80xf32>
    %115 = arith.addf %109, %114 : vector<5x80xf32>
    %116 = vector.extract_strided_slice %77 {offsets = [0, 0], sizes = [5, 30], strides = [1, 1]} : vector<7x42xf32> to vector<5x30xf32>
    %117 = arith.truncf %116 : vector<5x30xf32> to vector<5x30xbf16>
    %c1_104 = arith.constant 1 : index
    %c1_105 = arith.constant 1 : index
    %c0_106 = arith.constant 0 : index
    %c0_107 = arith.constant 0 : index
    %118 = vector.load %arg4[%c1_104, %c1_105, %c0_106, %c0_107] : memref<5x5x30x80xbf16, #tpu.memory_space<vmem>>, vector<1x1x30x80xbf16>
    %119 = vector.shape_cast %118 : vector<1x1x30x80xbf16> to vector<30x80xbf16>
    %cst_108 = arith.constant dense<0.000000e+00> : vector<5x80xf32>
    %120 = tpu.matmul %117, %119, %cst_108 {dimension_numbers = #tpu.dot_dimension_numbers<[1], [0], [0], [1], [0, 0, 1, 1], [], []>} : vector<5x30xbf16>, vector<30x80xbf16>, vector<5x80xf32> -> vector<5x80xf32>
    %121 = arith.addf %115, %120 : vector<5x80xf32>
    %122 = vector.extract_strided_slice %70 {offsets = [0, 6], sizes = [5, 30], strides = [1, 1]} : vector<7x42xf32> to vector<5x30xf32>
    %123 = arith.truncf %122 : vector<5x30xf32> to vector<5x30xbf16>
    %c1_109 = arith.constant 1 : index
    %c2_110 = arith.constant 2 : index
    %c0_111 = arith.constant 0 : index
    %c0_112 = arith.constant 0 : index
    %124 = vector.load %arg4[%c1_109, %c2_110, %c0_111, %c0_112] : memref<5x5x30x80xbf16, #tpu.memory_space<vmem>>, vector<1x1x30x80xbf16>
    %125 = vector.shape_cast %124 : vector<1x1x30x80xbf16> to vector<30x80xbf16>
    %cst_113 = arith.constant dense<0.000000e+00> : vector<5x80xf32>
    %126 = tpu.matmul %123, %125, %cst_113 {dimension_numbers = #tpu.dot_dimension_numbers<[1], [0], [0], [1], [0, 0, 1, 1], [], []>} : vector<5x30xbf16>, vector<30x80xbf16>, vector<5x80xf32> -> vector<5x80xf32>
    %127 = arith.addf %121, %126 : vector<5x80xf32>
    %128 = vector.extract_strided_slice %77 {offsets = [0, 6], sizes = [5, 30], strides = [1, 1]} : vector<7x42xf32> to vector<5x30xf32>
    %129 = arith.truncf %128 : vector<5x30xf32> to vector<5x30xbf16>
    %c1_114 = arith.constant 1 : index
    %c3_115 = arith.constant 3 : index
    %c0_116 = arith.constant 0 : index
    %c0_117 = arith.constant 0 : index
    %130 = vector.load %arg4[%c1_114, %c3_115, %c0_116, %c0_117] : memref<5x5x30x80xbf16, #tpu.memory_space<vmem>>, vector<1x1x30x80xbf16>
    %131 = vector.shape_cast %130 : vector<1x1x30x80xbf16> to vector<30x80xbf16>
    %cst_118 = arith.constant dense<0.000000e+00> : vector<5x80xf32>
    %132 = tpu.matmul %129, %131, %cst_118 {dimension_numbers = #tpu.dot_dimension_numbers<[1], [0], [0], [1], [0, 0, 1, 1], [], []>} : vector<5x30xbf16>, vector<30x80xbf16>, vector<5x80xf32> -> vector<5x80xf32>
    %133 = arith.addf %127, %132 : vector<5x80xf32>
    %134 = vector.extract_strided_slice %70 {offsets = [0, 12], sizes = [5, 30], strides = [1, 1]} : vector<7x42xf32> to vector<5x30xf32>
    %135 = arith.truncf %134 : vector<5x30xf32> to vector<5x30xbf16>
    %c1_119 = arith.constant 1 : index
    %c4_120 = arith.constant 4 : index
    %c0_121 = arith.constant 0 : index
    %c0_122 = arith.constant 0 : index
    %136 = vector.load %arg4[%c1_119, %c4_120, %c0_121, %c0_122] : memref<5x5x30x80xbf16, #tpu.memory_space<vmem>>, vector<1x1x30x80xbf16>
    %137 = vector.shape_cast %136 : vector<1x1x30x80xbf16> to vector<30x80xbf16>
    %cst_123 = arith.constant dense<0.000000e+00> : vector<5x80xf32>
    %138 = tpu.matmul %135, %137, %cst_123 {dimension_numbers = #tpu.dot_dimension_numbers<[1], [0], [0], [1], [0, 0, 1, 1], [], []>} : vector<5x30xbf16>, vector<30x80xbf16>, vector<5x80xf32> -> vector<5x80xf32>
    %139 = arith.addf %133, %138 : vector<5x80xf32>
    %140 = vector.extract_strided_slice %56 {offsets = [1, 0], sizes = [5, 30], strides = [1, 1]} : vector<7x42xf32> to vector<5x30xf32>
    %141 = arith.truncf %140 : vector<5x30xf32> to vector<5x30xbf16>
    %c2_124 = arith.constant 2 : index
    %c0_125 = arith.constant 0 : index
    %c0_126 = arith.constant 0 : index
    %c0_127 = arith.constant 0 : index
    %142 = vector.load %arg4[%c2_124, %c0_125, %c0_126, %c0_127] : memref<5x5x30x80xbf16, #tpu.memory_space<vmem>>, vector<1x1x30x80xbf16>
    %143 = vector.shape_cast %142 : vector<1x1x30x80xbf16> to vector<30x80xbf16>
    %cst_128 = arith.constant dense<0.000000e+00> : vector<5x80xf32>
    %144 = tpu.matmul %141, %143, %cst_128 {dimension_numbers = #tpu.dot_dimension_numbers<[1], [0], [0], [1], [0, 0, 1, 1], [], []>} : vector<5x30xbf16>, vector<30x80xbf16>, vector<5x80xf32> -> vector<5x80xf32>
    %145 = arith.addf %139, %144 : vector<5x80xf32>
    %146 = vector.extract_strided_slice %63 {offsets = [1, 0], sizes = [5, 30], strides = [1, 1]} : vector<7x42xf32> to vector<5x30xf32>
    %147 = arith.truncf %146 : vector<5x30xf32> to vector<5x30xbf16>
    %c2_129 = arith.constant 2 : index
    %c1_130 = arith.constant 1 : index
    %c0_131 = arith.constant 0 : index
    %c0_132 = arith.constant 0 : index
    %148 = vector.load %arg4[%c2_129, %c1_130, %c0_131, %c0_132] : memref<5x5x30x80xbf16, #tpu.memory_space<vmem>>, vector<1x1x30x80xbf16>
    %149 = vector.shape_cast %148 : vector<1x1x30x80xbf16> to vector<30x80xbf16>
    %cst_133 = arith.constant dense<0.000000e+00> : vector<5x80xf32>
    %150 = tpu.matmul %147, %149, %cst_133 {dimension_numbers = #tpu.dot_dimension_numbers<[1], [0], [0], [1], [0, 0, 1, 1], [], []>} : vector<5x30xbf16>, vector<30x80xbf16>, vector<5x80xf32> -> vector<5x80xf32>
    %151 = arith.addf %145, %150 : vector<5x80xf32>
    %152 = vector.extract_strided_slice %56 {offsets = [1, 6], sizes = [5, 30], strides = [1, 1]} : vector<7x42xf32> to vector<5x30xf32>
    %153 = arith.truncf %152 : vector<5x30xf32> to vector<5x30xbf16>
    %c2_134 = arith.constant 2 : index
    %c2_135 = arith.constant 2 : index
    %c0_136 = arith.constant 0 : index
    %c0_137 = arith.constant 0 : index
    %154 = vector.load %arg4[%c2_134, %c2_135, %c0_136, %c0_137] : memref<5x5x30x80xbf16, #tpu.memory_space<vmem>>, vector<1x1x30x80xbf16>
    %155 = vector.shape_cast %154 : vector<1x1x30x80xbf16> to vector<30x80xbf16>
    %cst_138 = arith.constant dense<0.000000e+00> : vector<5x80xf32>
    %156 = tpu.matmul %153, %155, %cst_138 {dimension_numbers = #tpu.dot_dimension_numbers<[1], [0], [0], [1], [0, 0, 1, 1], [], []>} : vector<5x30xbf16>, vector<30x80xbf16>, vector<5x80xf32> -> vector<5x80xf32>
    %157 = arith.addf %151, %156 : vector<5x80xf32>
    %158 = vector.extract_strided_slice %63 {offsets = [1, 6], sizes = [5, 30], strides = [1, 1]} : vector<7x42xf32> to vector<5x30xf32>
    %159 = arith.truncf %158 : vector<5x30xf32> to vector<5x30xbf16>
    %c2_139 = arith.constant 2 : index
    %c3_140 = arith.constant 3 : index
    %c0_141 = arith.constant 0 : index
    %c0_142 = arith.constant 0 : index
    %160 = vector.load %arg4[%c2_139, %c3_140, %c0_141, %c0_142] : memref<5x5x30x80xbf16, #tpu.memory_space<vmem>>, vector<1x1x30x80xbf16>
    %161 = vector.shape_cast %160 : vector<1x1x30x80xbf16> to vector<30x80xbf16>
    %cst_143 = arith.constant dense<0.000000e+00> : vector<5x80xf32>
    %162 = tpu.matmul %159, %161, %cst_143 {dimension_numbers = #tpu.dot_dimension_numbers<[1], [0], [0], [1], [0, 0, 1, 1], [], []>} : vector<5x30xbf16>, vector<30x80xbf16>, vector<5x80xf32> -> vector<5x80xf32>
    %163 = arith.addf %157, %162 : vector<5x80xf32>
    %164 = vector.extract_strided_slice %56 {offsets = [1, 12], sizes = [5, 30], strides = [1, 1]} : vector<7x42xf32> to vector<5x30xf32>
    %165 = arith.truncf %164 : vector<5x30xf32> to vector<5x30xbf16>
    %c2_144 = arith.constant 2 : index
    %c4_145 = arith.constant 4 : index
    %c0_146 = arith.constant 0 : index
    %c0_147 = arith.constant 0 : index
    %166 = vector.load %arg4[%c2_144, %c4_145, %c0_146, %c0_147] : memref<5x5x30x80xbf16, #tpu.memory_space<vmem>>, vector<1x1x30x80xbf16>
    %167 = vector.shape_cast %166 : vector<1x1x30x80xbf16> to vector<30x80xbf16>
    %cst_148 = arith.constant dense<0.000000e+00> : vector<5x80xf32>
    %168 = tpu.matmul %165, %167, %cst_148 {dimension_numbers = #tpu.dot_dimension_numbers<[1], [0], [0], [1], [0, 0, 1, 1], [], []>} : vector<5x30xbf16>, vector<30x80xbf16>, vector<5x80xf32> -> vector<5x80xf32>
    %169 = arith.addf %163, %168 : vector<5x80xf32>
    %170 = vector.extract_strided_slice %70 {offsets = [1, 0], sizes = [5, 30], strides = [1, 1]} : vector<7x42xf32> to vector<5x30xf32>
    %171 = arith.truncf %170 : vector<5x30xf32> to vector<5x30xbf16>
    %c3_149 = arith.constant 3 : index
    %c0_150 = arith.constant 0 : index
    %c0_151 = arith.constant 0 : index
    %c0_152 = arith.constant 0 : index
    %172 = vector.load %arg4[%c3_149, %c0_150, %c0_151, %c0_152] : memref<5x5x30x80xbf16, #tpu.memory_space<vmem>>, vector<1x1x30x80xbf16>
    %173 = vector.shape_cast %172 : vector<1x1x30x80xbf16> to vector<30x80xbf16>
    %cst_153 = arith.constant dense<0.000000e+00> : vector<5x80xf32>
    %174 = tpu.matmul %171, %173, %cst_153 {dimension_numbers = #tpu.dot_dimension_numbers<[1], [0], [0], [1], [0, 0, 1, 1], [], []>} : vector<5x30xbf16>, vector<30x80xbf16>, vector<5x80xf32> -> vector<5x80xf32>
    %175 = arith.addf %169, %174 : vector<5x80xf32>
    %176 = vector.extract_strided_slice %77 {offsets = [1, 0], sizes = [5, 30], strides = [1, 1]} : vector<7x42xf32> to vector<5x30xf32>
    %177 = arith.truncf %176 : vector<5x30xf32> to vector<5x30xbf16>
    %c3_154 = arith.constant 3 : index
    %c1_155 = arith.constant 1 : index
    %c0_156 = arith.constant 0 : index
    %c0_157 = arith.constant 0 : index
    %178 = vector.load %arg4[%c3_154, %c1_155, %c0_156, %c0_157] : memref<5x5x30x80xbf16, #tpu.memory_space<vmem>>, vector<1x1x30x80xbf16>
    %179 = vector.shape_cast %178 : vector<1x1x30x80xbf16> to vector<30x80xbf16>
    %cst_158 = arith.constant dense<0.000000e+00> : vector<5x80xf32>
    %180 = tpu.matmul %177, %179, %cst_158 {dimension_numbers = #tpu.dot_dimension_numbers<[1], [0], [0], [1], [0, 0, 1, 1], [], []>} : vector<5x30xbf16>, vector<30x80xbf16>, vector<5x80xf32> -> vector<5x80xf32>
    %181 = arith.addf %175, %180 : vector<5x80xf32>
    %182 = vector.extract_strided_slice %70 {offsets = [1, 6], sizes = [5, 30], strides = [1, 1]} : vector<7x42xf32> to vector<5x30xf32>
    %183 = arith.truncf %182 : vector<5x30xf32> to vector<5x30xbf16>
    %c3_159 = arith.constant 3 : index
    %c2_160 = arith.constant 2 : index
    %c0_161 = arith.constant 0 : index
    %c0_162 = arith.constant 0 : index
    %184 = vector.load %arg4[%c3_159, %c2_160, %c0_161, %c0_162] : memref<5x5x30x80xbf16, #tpu.memory_space<vmem>>, vector<1x1x30x80xbf16>
    %185 = vector.shape_cast %184 : vector<1x1x30x80xbf16> to vector<30x80xbf16>
    %cst_163 = arith.constant dense<0.000000e+00> : vector<5x80xf32>
    %186 = tpu.matmul %183, %185, %cst_163 {dimension_numbers = #tpu.dot_dimension_numbers<[1], [0], [0], [1], [0, 0, 1, 1], [], []>} : vector<5x30xbf16>, vector<30x80xbf16>, vector<5x80xf32> -> vector<5x80xf32>
    %187 = arith.addf %181, %186 : vector<5x80xf32>
    %188 = vector.extract_strided_slice %77 {offsets = [1, 6], sizes = [5, 30], strides = [1, 1]} : vector<7x42xf32> to vector<5x30xf32>
    %189 = arith.truncf %188 : vector<5x30xf32> to vector<5x30xbf16>
    %c3_164 = arith.constant 3 : index
    %c3_165 = arith.constant 3 : index
    %c0_166 = arith.constant 0 : index
    %c0_167 = arith.constant 0 : index
    %190 = vector.load %arg4[%c3_164, %c3_165, %c0_166, %c0_167] : memref<5x5x30x80xbf16, #tpu.memory_space<vmem>>, vector<1x1x30x80xbf16>
    %191 = vector.shape_cast %190 : vector<1x1x30x80xbf16> to vector<30x80xbf16>
    %cst_168 = arith.constant dense<0.000000e+00> : vector<5x80xf32>
    %192 = tpu.matmul %189, %191, %cst_168 {dimension_numbers = #tpu.dot_dimension_numbers<[1], [0], [0], [1], [0, 0, 1, 1], [], []>} : vector<5x30xbf16>, vector<30x80xbf16>, vector<5x80xf32> -> vector<5x80xf32>
    %193 = arith.addf %187, %192 : vector<5x80xf32>
    %194 = vector.extract_strided_slice %70 {offsets = [1, 12], sizes = [5, 30], strides = [1, 1]} : vector<7x42xf32> to vector<5x30xf32>
    %195 = arith.truncf %194 : vector<5x30xf32> to vector<5x30xbf16>
    %c3_169 = arith.constant 3 : index
    %c4_170 = arith.constant 4 : index
    %c0_171 = arith.constant 0 : index
    %c0_172 = arith.constant 0 : index
    %196 = vector.load %arg4[%c3_169, %c4_170, %c0_171, %c0_172] : memref<5x5x30x80xbf16, #tpu.memory_space<vmem>>, vector<1x1x30x80xbf16>
    %197 = vector.shape_cast %196 : vector<1x1x30x80xbf16> to vector<30x80xbf16>
    %cst_173 = arith.constant dense<0.000000e+00> : vector<5x80xf32>
    %198 = tpu.matmul %195, %197, %cst_173 {dimension_numbers = #tpu.dot_dimension_numbers<[1], [0], [0], [1], [0, 0, 1, 1], [], []>} : vector<5x30xbf16>, vector<30x80xbf16>, vector<5x80xf32> -> vector<5x80xf32>
    %199 = arith.addf %193, %198 : vector<5x80xf32>
    %200 = vector.extract_strided_slice %56 {offsets = [2, 0], sizes = [5, 30], strides = [1, 1]} : vector<7x42xf32> to vector<5x30xf32>
    %201 = arith.truncf %200 : vector<5x30xf32> to vector<5x30xbf16>
    %c4_174 = arith.constant 4 : index
    %c0_175 = arith.constant 0 : index
    %c0_176 = arith.constant 0 : index
    %c0_177 = arith.constant 0 : index
    %202 = vector.load %arg4[%c4_174, %c0_175, %c0_176, %c0_177] : memref<5x5x30x80xbf16, #tpu.memory_space<vmem>>, vector<1x1x30x80xbf16>
    %203 = vector.shape_cast %202 : vector<1x1x30x80xbf16> to vector<30x80xbf16>
    %cst_178 = arith.constant dense<0.000000e+00> : vector<5x80xf32>
    %204 = tpu.matmul %201, %203, %cst_178 {dimension_numbers = #tpu.dot_dimension_numbers<[1], [0], [0], [1], [0, 0, 1, 1], [], []>} : vector<5x30xbf16>, vector<30x80xbf16>, vector<5x80xf32> -> vector<5x80xf32>
    %205 = arith.addf %199, %204 : vector<5x80xf32>
    %206 = vector.extract_strided_slice %63 {offsets = [2, 0], sizes = [5, 30], strides = [1, 1]} : vector<7x42xf32> to vector<5x30xf32>
    %207 = arith.truncf %206 : vector<5x30xf32> to vector<5x30xbf16>
    %c4_179 = arith.constant 4 : index
    %c1_180 = arith.constant 1 : index
    %c0_181 = arith.constant 0 : index
    %c0_182 = arith.constant 0 : index
    %208 = vector.load %arg4[%c4_179, %c1_180, %c0_181, %c0_182] : memref<5x5x30x80xbf16, #tpu.memory_space<vmem>>, vector<1x1x30x80xbf16>
    %209 = vector.shape_cast %208 : vector<1x1x30x80xbf16> to vector<30x80xbf16>
    %cst_183 = arith.constant dense<0.000000e+00> : vector<5x80xf32>
    %210 = tpu.matmul %207, %209, %cst_183 {dimension_numbers = #tpu.dot_dimension_numbers<[1], [0], [0], [1], [0, 0, 1, 1], [], []>} : vector<5x30xbf16>, vector<30x80xbf16>, vector<5x80xf32> -> vector<5x80xf32>
    %211 = arith.addf %205, %210 : vector<5x80xf32>
    %212 = vector.extract_strided_slice %56 {offsets = [2, 6], sizes = [5, 30], strides = [1, 1]} : vector<7x42xf32> to vector<5x30xf32>
    %213 = arith.truncf %212 : vector<5x30xf32> to vector<5x30xbf16>
    %c4_184 = arith.constant 4 : index
    %c2_185 = arith.constant 2 : index
    %c0_186 = arith.constant 0 : index
    %c0_187 = arith.constant 0 : index
    %214 = vector.load %arg4[%c4_184, %c2_185, %c0_186, %c0_187] : memref<5x5x30x80xbf16, #tpu.memory_space<vmem>>, vector<1x1x30x80xbf16>
    %215 = vector.shape_cast %214 : vector<1x1x30x80xbf16> to vector<30x80xbf16>
    %cst_188 = arith.constant dense<0.000000e+00> : vector<5x80xf32>
    %216 = tpu.matmul %213, %215, %cst_188 {dimension_numbers = #tpu.dot_dimension_numbers<[1], [0], [0], [1], [0, 0, 1, 1], [], []>} : vector<5x30xbf16>, vector<30x80xbf16>, vector<5x80xf32> -> vector<5x80xf32>
    %217 = arith.addf %211, %216 : vector<5x80xf32>
    %218 = vector.extract_strided_slice %63 {offsets = [2, 6], sizes = [5, 30], strides = [1, 1]} : vector<7x42xf32> to vector<5x30xf32>
    %219 = arith.truncf %218 : vector<5x30xf32> to vector<5x30xbf16>
    %c4_189 = arith.constant 4 : index
    %c3_190 = arith.constant 3 : index
    %c0_191 = arith.constant 0 : index
    %c0_192 = arith.constant 0 : index
    %220 = vector.load %arg4[%c4_189, %c3_190, %c0_191, %c0_192] : memref<5x5x30x80xbf16, #tpu.memory_space<vmem>>, vector<1x1x30x80xbf16>
    %221 = vector.shape_cast %220 : vector<1x1x30x80xbf16> to vector<30x80xbf16>
    %cst_193 = arith.constant dense<0.000000e+00> : vector<5x80xf32>
    %222 = tpu.matmul %219, %221, %cst_193 {dimension_numbers = #tpu.dot_dimension_numbers<[1], [0], [0], [1], [0, 0, 1, 1], [], []>} : vector<5x30xbf16>, vector<30x80xbf16>, vector<5x80xf32> -> vector<5x80xf32>
    %223 = arith.addf %217, %222 : vector<5x80xf32>
    %224 = vector.extract_strided_slice %56 {offsets = [2, 12], sizes = [5, 30], strides = [1, 1]} : vector<7x42xf32> to vector<5x30xf32>
    %225 = arith.truncf %224 : vector<5x30xf32> to vector<5x30xbf16>
    %c4_194 = arith.constant 4 : index
    %c4_195 = arith.constant 4 : index
    %c0_196 = arith.constant 0 : index
    %c0_197 = arith.constant 0 : index
    %226 = vector.load %arg4[%c4_194, %c4_195, %c0_196, %c0_197] : memref<5x5x30x80xbf16, #tpu.memory_space<vmem>>, vector<1x1x30x80xbf16>
    %227 = vector.shape_cast %226 : vector<1x1x30x80xbf16> to vector<30x80xbf16>
    %cst_198 = arith.constant dense<0.000000e+00> : vector<5x80xf32>
    %228 = tpu.matmul %225, %227, %cst_198 {dimension_numbers = #tpu.dot_dimension_numbers<[1], [0], [0], [1], [0, 0, 1, 1], [], []>} : vector<5x30xbf16>, vector<30x80xbf16>, vector<5x80xf32> -> vector<5x80xf32>
    %229 = arith.addf %223, %228 : vector<5x80xf32>
    %cst_199 = arith.constant 0.000000e+00 : f32
    %230 = vector.broadcast %cst_199 : f32 to vector<5x80xf32>
    %231 = vector.extract_strided_slice %63 {offsets = [0, 0], sizes = [5, 30], strides = [1, 1]} : vector<7x42xf32> to vector<5x30xf32>
    %232 = arith.truncf %231 : vector<5x30xf32> to vector<5x30xbf16>
    %c0_200 = arith.constant 0 : index
    %c0_201 = arith.constant 0 : index
    %c0_202 = arith.constant 0 : index
    %c0_203 = arith.constant 0 : index
    %233 = vector.load %arg4[%c0_200, %c0_201, %c0_202, %c0_203] : memref<5x5x30x80xbf16, #tpu.memory_space<vmem>>, vector<1x1x30x80xbf16>
    %234 = vector.shape_cast %233 : vector<1x1x30x80xbf16> to vector<30x80xbf16>
    %cst_204 = arith.constant dense<0.000000e+00> : vector<5x80xf32>
    %235 = tpu.matmul %232, %234, %cst_204 {dimension_numbers = #tpu.dot_dimension_numbers<[1], [0], [0], [1], [0, 0, 1, 1], [], []>} : vector<5x30xbf16>, vector<30x80xbf16>, vector<5x80xf32> -> vector<5x80xf32>
    %236 = arith.addf %230, %235 : vector<5x80xf32>
    %237 = vector.extract_strided_slice %56 {offsets = [0, 6], sizes = [5, 30], strides = [1, 1]} : vector<7x42xf32> to vector<5x30xf32>
    %238 = arith.truncf %237 : vector<5x30xf32> to vector<5x30xbf16>
    %c0_205 = arith.constant 0 : index
    %c1_206 = arith.constant 1 : index
    %c0_207 = arith.constant 0 : index
    %c0_208 = arith.constant 0 : index
    %239 = vector.load %arg4[%c0_205, %c1_206, %c0_207, %c0_208] : memref<5x5x30x80xbf16, #tpu.memory_space<vmem>>, vector<1x1x30x80xbf16>
    %240 = vector.shape_cast %239 : vector<1x1x30x80xbf16> to vector<30x80xbf16>
    %cst_209 = arith.constant dense<0.000000e+00> : vector<5x80xf32>
    %241 = tpu.matmul %238, %240, %cst_209 {dimension_numbers = #tpu.dot_dimension_numbers<[1], [0], [0], [1], [0, 0, 1, 1], [], []>} : vector<5x30xbf16>, vector<30x80xbf16>, vector<5x80xf32> -> vector<5x80xf32>
    %242 = arith.addf %236, %241 : vector<5x80xf32>
    %243 = vector.extract_strided_slice %63 {offsets = [0, 6], sizes = [5, 30], strides = [1, 1]} : vector<7x42xf32> to vector<5x30xf32>
    %244 = arith.truncf %243 : vector<5x30xf32> to vector<5x30xbf16>
    %c0_210 = arith.constant 0 : index
    %c2_211 = arith.constant 2 : index
    %c0_212 = arith.constant 0 : index
    %c0_213 = arith.constant 0 : index
    %245 = vector.load %arg4[%c0_210, %c2_211, %c0_212, %c0_213] : memref<5x5x30x80xbf16, #tpu.memory_space<vmem>>, vector<1x1x30x80xbf16>
    %246 = vector.shape_cast %245 : vector<1x1x30x80xbf16> to vector<30x80xbf16>
    %cst_214 = arith.constant dense<0.000000e+00> : vector<5x80xf32>
    %247 = tpu.matmul %244, %246, %cst_214 {dimension_numbers = #tpu.dot_dimension_numbers<[1], [0], [0], [1], [0, 0, 1, 1], [], []>} : vector<5x30xbf16>, vector<30x80xbf16>, vector<5x80xf32> -> vector<5x80xf32>
    %248 = arith.addf %242, %247 : vector<5x80xf32>
    %249 = vector.extract_strided_slice %56 {offsets = [0, 12], sizes = [5, 30], strides = [1, 1]} : vector<7x42xf32> to vector<5x30xf32>
    %250 = arith.truncf %249 : vector<5x30xf32> to vector<5x30xbf16>
    %c0_215 = arith.constant 0 : index
    %c3_216 = arith.constant 3 : index
    %c0_217 = arith.constant 0 : index
    %c0_218 = arith.constant 0 : index
    %251 = vector.load %arg4[%c0_215, %c3_216, %c0_217, %c0_218] : memref<5x5x30x80xbf16, #tpu.memory_space<vmem>>, vector<1x1x30x80xbf16>
    %252 = vector.shape_cast %251 : vector<1x1x30x80xbf16> to vector<30x80xbf16>
    %cst_219 = arith.constant dense<0.000000e+00> : vector<5x80xf32>
    %253 = tpu.matmul %250, %252, %cst_219 {dimension_numbers = #tpu.dot_dimension_numbers<[1], [0], [0], [1], [0, 0, 1, 1], [], []>} : vector<5x30xbf16>, vector<30x80xbf16>, vector<5x80xf32> -> vector<5x80xf32>
    %254 = arith.addf %248, %253 : vector<5x80xf32>
    %255 = vector.extract_strided_slice %63 {offsets = [0, 12], sizes = [5, 30], strides = [1, 1]} : vector<7x42xf32> to vector<5x30xf32>
    %256 = arith.truncf %255 : vector<5x30xf32> to vector<5x30xbf16>
    %c0_220 = arith.constant 0 : index
    %c4_221 = arith.constant 4 : index
    %c0_222 = arith.constant 0 : index
    %c0_223 = arith.constant 0 : index
    %257 = vector.load %arg4[%c0_220, %c4_221, %c0_222, %c0_223] : memref<5x5x30x80xbf16, #tpu.memory_space<vmem>>, vector<1x1x30x80xbf16>
    %258 = vector.shape_cast %257 : vector<1x1x30x80xbf16> to vector<30x80xbf16>
    %cst_224 = arith.constant dense<0.000000e+00> : vector<5x80xf32>
    %259 = tpu.matmul %256, %258, %cst_224 {dimension_numbers = #tpu.dot_dimension_numbers<[1], [0], [0], [1], [0, 0, 1, 1], [], []>} : vector<5x30xbf16>, vector<30x80xbf16>, vector<5x80xf32> -> vector<5x80xf32>
    %260 = arith.addf %254, %259 : vector<5x80xf32>
    %261 = vector.extract_strided_slice %77 {offsets = [0, 0], sizes = [5, 30], strides = [1, 1]} : vector<7x42xf32> to vector<5x30xf32>
    %262 = arith.truncf %261 : vector<5x30xf32> to vector<5x30xbf16>
    %c1_225 = arith.constant 1 : index
    %c0_226 = arith.constant 0 : index
    %c0_227 = arith.constant 0 : index
    %c0_228 = arith.constant 0 : index
    %263 = vector.load %arg4[%c1_225, %c0_226, %c0_227, %c0_228] : memref<5x5x30x80xbf16, #tpu.memory_space<vmem>>, vector<1x1x30x80xbf16>
    %264 = vector.shape_cast %263 : vector<1x1x30x80xbf16> to vector<30x80xbf16>
    %cst_229 = arith.constant dense<0.000000e+00> : vector<5x80xf32>
    %265 = tpu.matmul %262, %264, %cst_229 {dimension_numbers = #tpu.dot_dimension_numbers<[1], [0], [0], [1], [0, 0, 1, 1], [], []>} : vector<5x30xbf16>, vector<30x80xbf16>, vector<5x80xf32> -> vector<5x80xf32>
    %266 = arith.addf %260, %265 : vector<5x80xf32>
    %267 = vector.extract_strided_slice %70 {offsets = [0, 6], sizes = [5, 30], strides = [1, 1]} : vector<7x42xf32> to vector<5x30xf32>
    %268 = arith.truncf %267 : vector<5x30xf32> to vector<5x30xbf16>
    %c1_230 = arith.constant 1 : index
    %c1_231 = arith.constant 1 : index
    %c0_232 = arith.constant 0 : index
    %c0_233 = arith.constant 0 : index
    %269 = vector.load %arg4[%c1_230, %c1_231, %c0_232, %c0_233] : memref<5x5x30x80xbf16, #tpu.memory_space<vmem>>, vector<1x1x30x80xbf16>
    %270 = vector.shape_cast %269 : vector<1x1x30x80xbf16> to vector<30x80xbf16>
    %cst_234 = arith.constant dense<0.000000e+00> : vector<5x80xf32>
    %271 = tpu.matmul %268, %270, %cst_234 {dimension_numbers = #tpu.dot_dimension_numbers<[1], [0], [0], [1], [0, 0, 1, 1], [], []>} : vector<5x30xbf16>, vector<30x80xbf16>, vector<5x80xf32> -> vector<5x80xf32>
    %272 = arith.addf %266, %271 : vector<5x80xf32>
    %273 = vector.extract_strided_slice %77 {offsets = [0, 6], sizes = [5, 30], strides = [1, 1]} : vector<7x42xf32> to vector<5x30xf32>
    %274 = arith.truncf %273 : vector<5x30xf32> to vector<5x30xbf16>
    %c1_235 = arith.constant 1 : index
    %c2_236 = arith.constant 2 : index
    %c0_237 = arith.constant 0 : index
    %c0_238 = arith.constant 0 : index
    %275 = vector.load %arg4[%c1_235, %c2_236, %c0_237, %c0_238] : memref<5x5x30x80xbf16, #tpu.memory_space<vmem>>, vector<1x1x30x80xbf16>
    %276 = vector.shape_cast %275 : vector<1x1x30x80xbf16> to vector<30x80xbf16>
    %cst_239 = arith.constant dense<0.000000e+00> : vector<5x80xf32>
    %277 = tpu.matmul %274, %276, %cst_239 {dimension_numbers = #tpu.dot_dimension_numbers<[1], [0], [0], [1], [0, 0, 1, 1], [], []>} : vector<5x30xbf16>, vector<30x80xbf16>, vector<5x80xf32> -> vector<5x80xf32>
    %278 = arith.addf %272, %277 : vector<5x80xf32>
    %279 = vector.extract_strided_slice %70 {offsets = [0, 12], sizes = [5, 30], strides = [1, 1]} : vector<7x42xf32> to vector<5x30xf32>
    %280 = arith.truncf %279 : vector<5x30xf32> to vector<5x30xbf16>
    %c1_240 = arith.constant 1 : index
    %c3_241 = arith.constant 3 : index
    %c0_242 = arith.constant 0 : index
    %c0_243 = arith.constant 0 : index
    %281 = vector.load %arg4[%c1_240, %c3_241, %c0_242, %c0_243] : memref<5x5x30x80xbf16, #tpu.memory_space<vmem>>, vector<1x1x30x80xbf16>
    %282 = vector.shape_cast %281 : vector<1x1x30x80xbf16> to vector<30x80xbf16>
    %cst_244 = arith.constant dense<0.000000e+00> : vector<5x80xf32>
    %283 = tpu.matmul %280, %282, %cst_244 {dimension_numbers = #tpu.dot_dimension_numbers<[1], [0], [0], [1], [0, 0, 1, 1], [], []>} : vector<5x30xbf16>, vector<30x80xbf16>, vector<5x80xf32> -> vector<5x80xf32>
    %284 = arith.addf %278, %283 : vector<5x80xf32>
    %285 = vector.extract_strided_slice %77 {offsets = [0, 12], sizes = [5, 30], strides = [1, 1]} : vector<7x42xf32> to vector<5x30xf32>
    %286 = arith.truncf %285 : vector<5x30xf32> to vector<5x30xbf16>
    %c1_245 = arith.constant 1 : index
    %c4_246 = arith.constant 4 : index
    %c0_247 = arith.constant 0 : index
    %c0_248 = arith.constant 0 : index
    %287 = vector.load %arg4[%c1_245, %c4_246, %c0_247, %c0_248] : memref<5x5x30x80xbf16, #tpu.memory_space<vmem>>, vector<1x1x30x80xbf16>
    %288 = vector.shape_cast %287 : vector<1x1x30x80xbf16> to vector<30x80xbf16>
    %cst_249 = arith.constant dense<0.000000e+00> : vector<5x80xf32>
    %289 = tpu.matmul %286, %288, %cst_249 {dimension_numbers = #tpu.dot_dimension_numbers<[1], [0], [0], [1], [0, 0, 1, 1], [], []>} : vector<5x30xbf16>, vector<30x80xbf16>, vector<5x80xf32> -> vector<5x80xf32>
    %290 = arith.addf %284, %289 : vector<5x80xf32>
    %291 = vector.extract_strided_slice %63 {offsets = [1, 0], sizes = [5, 30], strides = [1, 1]} : vector<7x42xf32> to vector<5x30xf32>
    %292 = arith.truncf %291 : vector<5x30xf32> to vector<5x30xbf16>
    %c2_250 = arith.constant 2 : index
    %c0_251 = arith.constant 0 : index
    %c0_252 = arith.constant 0 : index
    %c0_253 = arith.constant 0 : index
    %293 = vector.load %arg4[%c2_250, %c0_251, %c0_252, %c0_253] : memref<5x5x30x80xbf16, #tpu.memory_space<vmem>>, vector<1x1x30x80xbf16>
    %294 = vector.shape_cast %293 : vector<1x1x30x80xbf16> to vector<30x80xbf16>
    %cst_254 = arith.constant dense<0.000000e+00> : vector<5x80xf32>
    %295 = tpu.matmul %292, %294, %cst_254 {dimension_numbers = #tpu.dot_dimension_numbers<[1], [0], [0], [1], [0, 0, 1, 1], [], []>} : vector<5x30xbf16>, vector<30x80xbf16>, vector<5x80xf32> -> vector<5x80xf32>
    %296 = arith.addf %290, %295 : vector<5x80xf32>
    %297 = vector.extract_strided_slice %56 {offsets = [1, 6], sizes = [5, 30], strides = [1, 1]} : vector<7x42xf32> to vector<5x30xf32>
    %298 = arith.truncf %297 : vector<5x30xf32> to vector<5x30xbf16>
    %c2_255 = arith.constant 2 : index
    %c1_256 = arith.constant 1 : index
    %c0_257 = arith.constant 0 : index
    %c0_258 = arith.constant 0 : index
    %299 = vector.load %arg4[%c2_255, %c1_256, %c0_257, %c0_258] : memref<5x5x30x80xbf16, #tpu.memory_space<vmem>>, vector<1x1x30x80xbf16>
    %300 = vector.shape_cast %299 : vector<1x1x30x80xbf16> to vector<30x80xbf16>
    %cst_259 = arith.constant dense<0.000000e+00> : vector<5x80xf32>
    %301 = tpu.matmul %298, %300, %cst_259 {dimension_numbers = #tpu.dot_dimension_numbers<[1], [0], [0], [1], [0, 0, 1, 1], [], []>} : vector<5x30xbf16>, vector<30x80xbf16>, vector<5x80xf32> -> vector<5x80xf32>
    %302 = arith.addf %296, %301 : vector<5x80xf32>
    %303 = vector.extract_strided_slice %63 {offsets = [1, 6], sizes = [5, 30], strides = [1, 1]} : vector<7x42xf32> to vector<5x30xf32>
    %304 = arith.truncf %303 : vector<5x30xf32> to vector<5x30xbf16>
    %c2_260 = arith.constant 2 : index
    %c2_261 = arith.constant 2 : index
    %c0_262 = arith.constant 0 : index
    %c0_263 = arith.constant 0 : index
    %305 = vector.load %arg4[%c2_260, %c2_261, %c0_262, %c0_263] : memref<5x5x30x80xbf16, #tpu.memory_space<vmem>>, vector<1x1x30x80xbf16>
    %306 = vector.shape_cast %305 : vector<1x1x30x80xbf16> to vector<30x80xbf16>
    %cst_264 = arith.constant dense<0.000000e+00> : vector<5x80xf32>
    %307 = tpu.matmul %304, %306, %cst_264 {dimension_numbers = #tpu.dot_dimension_numbers<[1], [0], [0], [1], [0, 0, 1, 1], [], []>} : vector<5x30xbf16>, vector<30x80xbf16>, vector<5x80xf32> -> vector<5x80xf32>
    %308 = arith.addf %302, %307 : vector<5x80xf32>
    %309 = vector.extract_strided_slice %56 {offsets = [1, 12], sizes = [5, 30], strides = [1, 1]} : vector<7x42xf32> to vector<5x30xf32>
    %310 = arith.truncf %309 : vector<5x30xf32> to vector<5x30xbf16>
    %c2_265 = arith.constant 2 : index
    %c3_266 = arith.constant 3 : index
    %c0_267 = arith.constant 0 : index
    %c0_268 = arith.constant 0 : index
    %311 = vector.load %arg4[%c2_265, %c3_266, %c0_267, %c0_268] : memref<5x5x30x80xbf16, #tpu.memory_space<vmem>>, vector<1x1x30x80xbf16>
    %312 = vector.shape_cast %311 : vector<1x1x30x80xbf16> to vector<30x80xbf16>
    %cst_269 = arith.constant dense<0.000000e+00> : vector<5x80xf32>
    %313 = tpu.matmul %310, %312, %cst_269 {dimension_numbers = #tpu.dot_dimension_numbers<[1], [0], [0], [1], [0, 0, 1, 1], [], []>} : vector<5x30xbf16>, vector<30x80xbf16>, vector<5x80xf32> -> vector<5x80xf32>
    %314 = arith.addf %308, %313 : vector<5x80xf32>
    %315 = vector.extract_strided_slice %63 {offsets = [1, 12], sizes = [5, 30], strides = [1, 1]} : vector<7x42xf32> to vector<5x30xf32>
    %316 = arith.truncf %315 : vector<5x30xf32> to vector<5x30xbf16>
    %c2_270 = arith.constant 2 : index
    %c4_271 = arith.constant 4 : index
    %c0_272 = arith.constant 0 : index
    %c0_273 = arith.constant 0 : index
    %317 = vector.load %arg4[%c2_270, %c4_271, %c0_272, %c0_273] : memref<5x5x30x80xbf16, #tpu.memory_space<vmem>>, vector<1x1x30x80xbf16>
    %318 = vector.shape_cast %317 : vector<1x1x30x80xbf16> to vector<30x80xbf16>
    %cst_274 = arith.constant dense<0.000000e+00> : vector<5x80xf32>
    %319 = tpu.matmul %316, %318, %cst_274 {dimension_numbers = #tpu.dot_dimension_numbers<[1], [0], [0], [1], [0, 0, 1, 1], [], []>} : vector<5x30xbf16>, vector<30x80xbf16>, vector<5x80xf32> -> vector<5x80xf32>
    %320 = arith.addf %314, %319 : vector<5x80xf32>
    %321 = vector.extract_strided_slice %77 {offsets = [1, 0], sizes = [5, 30], strides = [1, 1]} : vector<7x42xf32> to vector<5x30xf32>
    %322 = arith.truncf %321 : vector<5x30xf32> to vector<5x30xbf16>
    %c3_275 = arith.constant 3 : index
    %c0_276 = arith.constant 0 : index
    %c0_277 = arith.constant 0 : index
    %c0_278 = arith.constant 0 : index
    %323 = vector.load %arg4[%c3_275, %c0_276, %c0_277, %c0_278] : memref<5x5x30x80xbf16, #tpu.memory_space<vmem>>, vector<1x1x30x80xbf16>
    %324 = vector.shape_cast %323 : vector<1x1x30x80xbf16> to vector<30x80xbf16>
    %cst_279 = arith.constant dense<0.000000e+00> : vector<5x80xf32>
    %325 = tpu.matmul %322, %324, %cst_279 {dimension_numbers = #tpu.dot_dimension_numbers<[1], [0], [0], [1], [0, 0, 1, 1], [], []>} : vector<5x30xbf16>, vector<30x80xbf16>, vector<5x80xf32> -> vector<5x80xf32>
    %326 = arith.addf %320, %325 : vector<5x80xf32>
    %327 = vector.extract_strided_slice %70 {offsets = [1, 6], sizes = [5, 30], strides = [1, 1]} : vector<7x42xf32> to vector<5x30xf32>
    %328 = arith.truncf %327 : vector<5x30xf32> to vector<5x30xbf16>
    %c3_280 = arith.constant 3 : index
    %c1_281 = arith.constant 1 : index
    %c0_282 = arith.constant 0 : index
    %c0_283 = arith.constant 0 : index
    %329 = vector.load %arg4[%c3_280, %c1_281, %c0_282, %c0_283] : memref<5x5x30x80xbf16, #tpu.memory_space<vmem>>, vector<1x1x30x80xbf16>
    %330 = vector.shape_cast %329 : vector<1x1x30x80xbf16> to vector<30x80xbf16>
    %cst_284 = arith.constant dense<0.000000e+00> : vector<5x80xf32>
    %331 = tpu.matmul %328, %330, %cst_284 {dimension_numbers = #tpu.dot_dimension_numbers<[1], [0], [0], [1], [0, 0, 1, 1], [], []>} : vector<5x30xbf16>, vector<30x80xbf16>, vector<5x80xf32> -> vector<5x80xf32>
    %332 = arith.addf %326, %331 : vector<5x80xf32>
    %333 = vector.extract_strided_slice %77 {offsets = [1, 6], sizes = [5, 30], strides = [1, 1]} : vector<7x42xf32> to vector<5x30xf32>
    %334 = arith.truncf %333 : vector<5x30xf32> to vector<5x30xbf16>
    %c3_285 = arith.constant 3 : index
    %c2_286 = arith.constant 2 : index
    %c0_287 = arith.constant 0 : index
    %c0_288 = arith.constant 0 : index
    %335 = vector.load %arg4[%c3_285, %c2_286, %c0_287, %c0_288] : memref<5x5x30x80xbf16, #tpu.memory_space<vmem>>, vector<1x1x30x80xbf16>
    %336 = vector.shape_cast %335 : vector<1x1x30x80xbf16> to vector<30x80xbf16>
    %cst_289 = arith.constant dense<0.000000e+00> : vector<5x80xf32>
    %337 = tpu.matmul %334, %336, %cst_289 {dimension_numbers = #tpu.dot_dimension_numbers<[1], [0], [0], [1], [0, 0, 1, 1], [], []>} : vector<5x30xbf16>, vector<30x80xbf16>, vector<5x80xf32> -> vector<5x80xf32>
    %338 = arith.addf %332, %337 : vector<5x80xf32>
    %339 = vector.extract_strided_slice %70 {offsets = [1, 12], sizes = [5, 30], strides = [1, 1]} : vector<7x42xf32> to vector<5x30xf32>
    %340 = arith.truncf %339 : vector<5x30xf32> to vector<5x30xbf16>
    %c3_290 = arith.constant 3 : index
    %c3_291 = arith.constant 3 : index
    %c0_292 = arith.constant 0 : index
    %c0_293 = arith.constant 0 : index
    %341 = vector.load %arg4[%c3_290, %c3_291, %c0_292, %c0_293] : memref<5x5x30x80xbf16, #tpu.memory_space<vmem>>, vector<1x1x30x80xbf16>
    %342 = vector.shape_cast %341 : vector<1x1x30x80xbf16> to vector<30x80xbf16>
    %cst_294 = arith.constant dense<0.000000e+00> : vector<5x80xf32>
    %343 = tpu.matmul %340, %342, %cst_294 {dimension_numbers = #tpu.dot_dimension_numbers<[1], [0], [0], [1], [0, 0, 1, 1], [], []>} : vector<5x30xbf16>, vector<30x80xbf16>, vector<5x80xf32> -> vector<5x80xf32>
    %344 = arith.addf %338, %343 : vector<5x80xf32>
    %345 = vector.extract_strided_slice %77 {offsets = [1, 12], sizes = [5, 30], strides = [1, 1]} : vector<7x42xf32> to vector<5x30xf32>
    %346 = arith.truncf %345 : vector<5x30xf32> to vector<5x30xbf16>
    %c3_295 = arith.constant 3 : index
    %c4_296 = arith.constant 4 : index
    %c0_297 = arith.constant 0 : index
    %c0_298 = arith.constant 0 : index
    %347 = vector.load %arg4[%c3_295, %c4_296, %c0_297, %c0_298] : memref<5x5x30x80xbf16, #tpu.memory_space<vmem>>, vector<1x1x30x80xbf16>
    %348 = vector.shape_cast %347 : vector<1x1x30x80xbf16> to vector<30x80xbf16>
    %cst_299 = arith.constant dense<0.000000e+00> : vector<5x80xf32>
    %349 = tpu.matmul %346, %348, %cst_299 {dimension_numbers = #tpu.dot_dimension_numbers<[1], [0], [0], [1], [0, 0, 1, 1], [], []>} : vector<5x30xbf16>, vector<30x80xbf16>, vector<5x80xf32> -> vector<5x80xf32>
    %350 = arith.addf %344, %349 : vector<5x80xf32>
    %351 = vector.extract_strided_slice %63 {offsets = [2, 0], sizes = [5, 30], strides = [1, 1]} : vector<7x42xf32> to vector<5x30xf32>
    %352 = arith.truncf %351 : vector<5x30xf32> to vector<5x30xbf16>
    %c4_300 = arith.constant 4 : index
    %c0_301 = arith.constant 0 : index
    %c0_302 = arith.constant 0 : index
    %c0_303 = arith.constant 0 : index
    %353 = vector.load %arg4[%c4_300, %c0_301, %c0_302, %c0_303] : memref<5x5x30x80xbf16, #tpu.memory_space<vmem>>, vector<1x1x30x80xbf16>
    %354 = vector.shape_cast %353 : vector<1x1x30x80xbf16> to vector<30x80xbf16>
    %cst_304 = arith.constant dense<0.000000e+00> : vector<5x80xf32>
    %355 = tpu.matmul %352, %354, %cst_304 {dimension_numbers = #tpu.dot_dimension_numbers<[1], [0], [0], [1], [0, 0, 1, 1], [], []>} : vector<5x30xbf16>, vector<30x80xbf16>, vector<5x80xf32> -> vector<5x80xf32>
    %356 = arith.addf %350, %355 : vector<5x80xf32>
    %357 = vector.extract_strided_slice %56 {offsets = [2, 6], sizes = [5, 30], strides = [1, 1]} : vector<7x42xf32> to vector<5x30xf32>
    %358 = arith.truncf %357 : vector<5x30xf32> to vector<5x30xbf16>
    %c4_305 = arith.constant 4 : index
    %c1_306 = arith.constant 1 : index
    %c0_307 = arith.constant 0 : index
    %c0_308 = arith.constant 0 : index
    %359 = vector.load %arg4[%c4_305, %c1_306, %c0_307, %c0_308] : memref<5x5x30x80xbf16, #tpu.memory_space<vmem>>, vector<1x1x30x80xbf16>
    %360 = vector.shape_cast %359 : vector<1x1x30x80xbf16> to vector<30x80xbf16>
    %cst_309 = arith.constant dense<0.000000e+00> : vector<5x80xf32>
    %361 = tpu.matmul %358, %360, %cst_309 {dimension_numbers = #tpu.dot_dimension_numbers<[1], [0], [0], [1], [0, 0, 1, 1], [], []>} : vector<5x30xbf16>, vector<30x80xbf16>, vector<5x80xf32> -> vector<5x80xf32>
    %362 = arith.addf %356, %361 : vector<5x80xf32>
    %363 = vector.extract_strided_slice %63 {offsets = [2, 6], sizes = [5, 30], strides = [1, 1]} : vector<7x42xf32> to vector<5x30xf32>
    %364 = arith.truncf %363 : vector<5x30xf32> to vector<5x30xbf16>
    %c4_310 = arith.constant 4 : index
    %c2_311 = arith.constant 2 : index
    %c0_312 = arith.constant 0 : index
    %c0_313 = arith.constant 0 : index
    %365 = vector.load %arg4[%c4_310, %c2_311, %c0_312, %c0_313] : memref<5x5x30x80xbf16, #tpu.memory_space<vmem>>, vector<1x1x30x80xbf16>
    %366 = vector.shape_cast %365 : vector<1x1x30x80xbf16> to vector<30x80xbf16>
    %cst_314 = arith.constant dense<0.000000e+00> : vector<5x80xf32>
    %367 = tpu.matmul %364, %366, %cst_314 {dimension_numbers = #tpu.dot_dimension_numbers<[1], [0], [0], [1], [0, 0, 1, 1], [], []>} : vector<5x30xbf16>, vector<30x80xbf16>, vector<5x80xf32> -> vector<5x80xf32>
    %368 = arith.addf %362, %367 : vector<5x80xf32>
    %369 = vector.extract_strided_slice %56 {offsets = [2, 12], sizes = [5, 30], strides = [1, 1]} : vector<7x42xf32> to vector<5x30xf32>
    %370 = arith.truncf %369 : vector<5x30xf32> to vector<5x30xbf16>
    %c4_315 = arith.constant 4 : index
    %c3_316 = arith.constant 3 : index
    %c0_317 = arith.constant 0 : index
    %c0_318 = arith.constant 0 : index
    %371 = vector.load %arg4[%c4_315, %c3_316, %c0_317, %c0_318] : memref<5x5x30x80xbf16, #tpu.memory_space<vmem>>, vector<1x1x30x80xbf16>
    %372 = vector.shape_cast %371 : vector<1x1x30x80xbf16> to vector<30x80xbf16>
    %cst_319 = arith.constant dense<0.000000e+00> : vector<5x80xf32>
    %373 = tpu.matmul %370, %372, %cst_319 {dimension_numbers = #tpu.dot_dimension_numbers<[1], [0], [0], [1], [0, 0, 1, 1], [], []>} : vector<5x30xbf16>, vector<30x80xbf16>, vector<5x80xf32> -> vector<5x80xf32>
    %374 = arith.addf %368, %373 : vector<5x80xf32>
    %375 = vector.extract_strided_slice %63 {offsets = [2, 12], sizes = [5, 30], strides = [1, 1]} : vector<7x42xf32> to vector<5x30xf32>
    %376 = arith.truncf %375 : vector<5x30xf32> to vector<5x30xbf16>
    %c4_320 = arith.constant 4 : index
    %c4_321 = arith.constant 4 : index
    %c0_322 = arith.constant 0 : index
    %c0_323 = arith.constant 0 : index
    %377 = vector.load %arg4[%c4_320, %c4_321, %c0_322, %c0_323] : memref<5x5x30x80xbf16, #tpu.memory_space<vmem>>, vector<1x1x30x80xbf16>
    %378 = vector.shape_cast %377 : vector<1x1x30x80xbf16> to vector<30x80xbf16>
    %cst_324 = arith.constant dense<0.000000e+00> : vector<5x80xf32>
    %379 = tpu.matmul %376, %378, %cst_324 {dimension_numbers = #tpu.dot_dimension_numbers<[1], [0], [0], [1], [0, 0, 1, 1], [], []>} : vector<5x30xbf16>, vector<30x80xbf16>, vector<5x80xf32> -> vector<5x80xf32>
    %380 = arith.addf %374, %379 : vector<5x80xf32>
    %381 = arith.maximumf %229, %380 : vector<5x80xf32>
    %cst_325 = arith.constant 0.000000e+00 : f32
    %382 = vector.broadcast %cst_325 : f32 to vector<5x80xf32>
    %383 = vector.extract_strided_slice %70 {offsets = [0, 0], sizes = [5, 30], strides = [1, 1]} : vector<7x42xf32> to vector<5x30xf32>
    %384 = arith.truncf %383 : vector<5x30xf32> to vector<5x30xbf16>
    %c0_326 = arith.constant 0 : index
    %c0_327 = arith.constant 0 : index
    %c0_328 = arith.constant 0 : index
    %c0_329 = arith.constant 0 : index
    %385 = vector.load %arg4[%c0_326, %c0_327, %c0_328, %c0_329] : memref<5x5x30x80xbf16, #tpu.memory_space<vmem>>, vector<1x1x30x80xbf16>
    %386 = vector.shape_cast %385 : vector<1x1x30x80xbf16> to vector<30x80xbf16>
    %cst_330 = arith.constant dense<0.000000e+00> : vector<5x80xf32>
    %387 = tpu.matmul %384, %386, %cst_330 {dimension_numbers = #tpu.dot_dimension_numbers<[1], [0], [0], [1], [0, 0, 1, 1], [], []>} : vector<5x30xbf16>, vector<30x80xbf16>, vector<5x80xf32> -> vector<5x80xf32>
    %388 = arith.addf %382, %387 : vector<5x80xf32>
    %389 = vector.extract_strided_slice %77 {offsets = [0, 0], sizes = [5, 30], strides = [1, 1]} : vector<7x42xf32> to vector<5x30xf32>
    %390 = arith.truncf %389 : vector<5x30xf32> to vector<5x30xbf16>
    %c0_331 = arith.constant 0 : index
    %c1_332 = arith.constant 1 : index
    %c0_333 = arith.constant 0 : index
    %c0_334 = arith.constant 0 : index
    %391 = vector.load %arg4[%c0_331, %c1_332, %c0_333, %c0_334] : memref<5x5x30x80xbf16, #tpu.memory_space<vmem>>, vector<1x1x30x80xbf16>
    %392 = vector.shape_cast %391 : vector<1x1x30x80xbf16> to vector<30x80xbf16>
    %cst_335 = arith.constant dense<0.000000e+00> : vector<5x80xf32>
    %393 = tpu.matmul %390, %392, %cst_335 {dimension_numbers = #tpu.dot_dimension_numbers<[1], [0], [0], [1], [0, 0, 1, 1], [], []>} : vector<5x30xbf16>, vector<30x80xbf16>, vector<5x80xf32> -> vector<5x80xf32>
    %394 = arith.addf %388, %393 : vector<5x80xf32>
    %395 = vector.extract_strided_slice %70 {offsets = [0, 6], sizes = [5, 30], strides = [1, 1]} : vector<7x42xf32> to vector<5x30xf32>
    %396 = arith.truncf %395 : vector<5x30xf32> to vector<5x30xbf16>
    %c0_336 = arith.constant 0 : index
    %c2_337 = arith.constant 2 : index
    %c0_338 = arith.constant 0 : index
    %c0_339 = arith.constant 0 : index
    %397 = vector.load %arg4[%c0_336, %c2_337, %c0_338, %c0_339] : memref<5x5x30x80xbf16, #tpu.memory_space<vmem>>, vector<1x1x30x80xbf16>
    %398 = vector.shape_cast %397 : vector<1x1x30x80xbf16> to vector<30x80xbf16>
    %cst_340 = arith.constant dense<0.000000e+00> : vector<5x80xf32>
    %399 = tpu.matmul %396, %398, %cst_340 {dimension_numbers = #tpu.dot_dimension_numbers<[1], [0], [0], [1], [0, 0, 1, 1], [], []>} : vector<5x30xbf16>, vector<30x80xbf16>, vector<5x80xf32> -> vector<5x80xf32>
    %400 = arith.addf %394, %399 : vector<5x80xf32>
    %401 = vector.extract_strided_slice %77 {offsets = [0, 6], sizes = [5, 30], strides = [1, 1]} : vector<7x42xf32> to vector<5x30xf32>
    %402 = arith.truncf %401 : vector<5x30xf32> to vector<5x30xbf16>
    %c0_341 = arith.constant 0 : index
    %c3_342 = arith.constant 3 : index
    %c0_343 = arith.constant 0 : index
    %c0_344 = arith.constant 0 : index
    %403 = vector.load %arg4[%c0_341, %c3_342, %c0_343, %c0_344] : memref<5x5x30x80xbf16, #tpu.memory_space<vmem>>, vector<1x1x30x80xbf16>
    %404 = vector.shape_cast %403 : vector<1x1x30x80xbf16> to vector<30x80xbf16>
    %cst_345 = arith.constant dense<0.000000e+00> : vector<5x80xf32>
    %405 = tpu.matmul %402, %404, %cst_345 {dimension_numbers = #tpu.dot_dimension_numbers<[1], [0], [0], [1], [0, 0, 1, 1], [], []>} : vector<5x30xbf16>, vector<30x80xbf16>, vector<5x80xf32> -> vector<5x80xf32>
    %406 = arith.addf %400, %405 : vector<5x80xf32>
    %407 = vector.extract_strided_slice %70 {offsets = [0, 12], sizes = [5, 30], strides = [1, 1]} : vector<7x42xf32> to vector<5x30xf32>
    %408 = arith.truncf %407 : vector<5x30xf32> to vector<5x30xbf16>
    %c0_346 = arith.constant 0 : index
    %c4_347 = arith.constant 4 : index
    %c0_348 = arith.constant 0 : index
    %c0_349 = arith.constant 0 : index
    %409 = vector.load %arg4[%c0_346, %c4_347, %c0_348, %c0_349] : memref<5x5x30x80xbf16, #tpu.memory_space<vmem>>, vector<1x1x30x80xbf16>
    %410 = vector.shape_cast %409 : vector<1x1x30x80xbf16> to vector<30x80xbf16>
    %cst_350 = arith.constant dense<0.000000e+00> : vector<5x80xf32>
    %411 = tpu.matmul %408, %410, %cst_350 {dimension_numbers = #tpu.dot_dimension_numbers<[1], [0], [0], [1], [0, 0, 1, 1], [], []>} : vector<5x30xbf16>, vector<30x80xbf16>, vector<5x80xf32> -> vector<5x80xf32>
    %412 = arith.addf %406, %411 : vector<5x80xf32>
    %413 = vector.extract_strided_slice %56 {offsets = [1, 0], sizes = [5, 30], strides = [1, 1]} : vector<7x42xf32> to vector<5x30xf32>
    %414 = arith.truncf %413 : vector<5x30xf32> to vector<5x30xbf16>
    %c1_351 = arith.constant 1 : index
    %c0_352 = arith.constant 0 : index
    %c0_353 = arith.constant 0 : index
    %c0_354 = arith.constant 0 : index
    %415 = vector.load %arg4[%c1_351, %c0_352, %c0_353, %c0_354] : memref<5x5x30x80xbf16, #tpu.memory_space<vmem>>, vector<1x1x30x80xbf16>
    %416 = vector.shape_cast %415 : vector<1x1x30x80xbf16> to vector<30x80xbf16>
    %cst_355 = arith.constant dense<0.000000e+00> : vector<5x80xf32>
    %417 = tpu.matmul %414, %416, %cst_355 {dimension_numbers = #tpu.dot_dimension_numbers<[1], [0], [0], [1], [0, 0, 1, 1], [], []>} : vector<5x30xbf16>, vector<30x80xbf16>, vector<5x80xf32> -> vector<5x80xf32>
    %418 = arith.addf %412, %417 : vector<5x80xf32>
    %419 = vector.extract_strided_slice %63 {offsets = [1, 0], sizes = [5, 30], strides = [1, 1]} : vector<7x42xf32> to vector<5x30xf32>
    %420 = arith.truncf %419 : vector<5x30xf32> to vector<5x30xbf16>
    %c1_356 = arith.constant 1 : index
    %c1_357 = arith.constant 1 : index
    %c0_358 = arith.constant 0 : index
    %c0_359 = arith.constant 0 : index
    %421 = vector.load %arg4[%c1_356, %c1_357, %c0_358, %c0_359] : memref<5x5x30x80xbf16, #tpu.memory_space<vmem>>, vector<1x1x30x80xbf16>
    %422 = vector.shape_cast %421 : vector<1x1x30x80xbf16> to vector<30x80xbf16>
    %cst_360 = arith.constant dense<0.000000e+00> : vector<5x80xf32>
    %423 = tpu.matmul %420, %422, %cst_360 {dimension_numbers = #tpu.dot_dimension_numbers<[1], [0], [0], [1], [0, 0, 1, 1], [], []>} : vector<5x30xbf16>, vector<30x80xbf16>, vector<5x80xf32> -> vector<5x80xf32>
    %424 = arith.addf %418, %423 : vector<5x80xf32>
    %425 = vector.extract_strided_slice %56 {offsets = [1, 6], sizes = [5, 30], strides = [1, 1]} : vector<7x42xf32> to vector<5x30xf32>
    %426 = arith.truncf %425 : vector<5x30xf32> to vector<5x30xbf16>
    %c1_361 = arith.constant 1 : index
    %c2_362 = arith.constant 2 : index
    %c0_363 = arith.constant 0 : index
    %c0_364 = arith.constant 0 : index
    %427 = vector.load %arg4[%c1_361, %c2_362, %c0_363, %c0_364] : memref<5x5x30x80xbf16, #tpu.memory_space<vmem>>, vector<1x1x30x80xbf16>
    %428 = vector.shape_cast %427 : vector<1x1x30x80xbf16> to vector<30x80xbf16>
    %cst_365 = arith.constant dense<0.000000e+00> : vector<5x80xf32>
    %429 = tpu.matmul %426, %428, %cst_365 {dimension_numbers = #tpu.dot_dimension_numbers<[1], [0], [0], [1], [0, 0, 1, 1], [], []>} : vector<5x30xbf16>, vector<30x80xbf16>, vector<5x80xf32> -> vector<5x80xf32>
    %430 = arith.addf %424, %429 : vector<5x80xf32>
    %431 = vector.extract_strided_slice %63 {offsets = [1, 6], sizes = [5, 30], strides = [1, 1]} : vector<7x42xf32> to vector<5x30xf32>
    %432 = arith.truncf %431 : vector<5x30xf32> to vector<5x30xbf16>
    %c1_366 = arith.constant 1 : index
    %c3_367 = arith.constant 3 : index
    %c0_368 = arith.constant 0 : index
    %c0_369 = arith.constant 0 : index
    %433 = vector.load %arg4[%c1_366, %c3_367, %c0_368, %c0_369] : memref<5x5x30x80xbf16, #tpu.memory_space<vmem>>, vector<1x1x30x80xbf16>
    %434 = vector.shape_cast %433 : vector<1x1x30x80xbf16> to vector<30x80xbf16>
    %cst_370 = arith.constant dense<0.000000e+00> : vector<5x80xf32>
    %435 = tpu.matmul %432, %434, %cst_370 {dimension_numbers = #tpu.dot_dimension_numbers<[1], [0], [0], [1], [0, 0, 1, 1], [], []>} : vector<5x30xbf16>, vector<30x80xbf16>, vector<5x80xf32> -> vector<5x80xf32>
    %436 = arith.addf %430, %435 : vector<5x80xf32>
    %437 = vector.extract_strided_slice %56 {offsets = [1, 12], sizes = [5, 30], strides = [1, 1]} : vector<7x42xf32> to vector<5x30xf32>
    %438 = arith.truncf %437 : vector<5x30xf32> to vector<5x30xbf16>
    %c1_371 = arith.constant 1 : index
    %c4_372 = arith.constant 4 : index
    %c0_373 = arith.constant 0 : index
    %c0_374 = arith.constant 0 : index
    %439 = vector.load %arg4[%c1_371, %c4_372, %c0_373, %c0_374] : memref<5x5x30x80xbf16, #tpu.memory_space<vmem>>, vector<1x1x30x80xbf16>
    %440 = vector.shape_cast %439 : vector<1x1x30x80xbf16> to vector<30x80xbf16>
    %cst_375 = arith.constant dense<0.000000e+00> : vector<5x80xf32>
    %441 = tpu.matmul %438, %440, %cst_375 {dimension_numbers = #tpu.dot_dimension_numbers<[1], [0], [0], [1], [0, 0, 1, 1], [], []>} : vector<5x30xbf16>, vector<30x80xbf16>, vector<5x80xf32> -> vector<5x80xf32>
    %442 = arith.addf %436, %441 : vector<5x80xf32>
    %443 = vector.extract_strided_slice %70 {offsets = [1, 0], sizes = [5, 30], strides = [1, 1]} : vector<7x42xf32> to vector<5x30xf32>
    %444 = arith.truncf %443 : vector<5x30xf32> to vector<5x30xbf16>
    %c2_376 = arith.constant 2 : index
    %c0_377 = arith.constant 0 : index
    %c0_378 = arith.constant 0 : index
    %c0_379 = arith.constant 0 : index
    %445 = vector.load %arg4[%c2_376, %c0_377, %c0_378, %c0_379] : memref<5x5x30x80xbf16, #tpu.memory_space<vmem>>, vector<1x1x30x80xbf16>
    %446 = vector.shape_cast %445 : vector<1x1x30x80xbf16> to vector<30x80xbf16>
    %cst_380 = arith.constant dense<0.000000e+00> : vector<5x80xf32>
    %447 = tpu.matmul %444, %446, %cst_380 {dimension_numbers = #tpu.dot_dimension_numbers<[1], [0], [0], [1], [0, 0, 1, 1], [], []>} : vector<5x30xbf16>, vector<30x80xbf16>, vector<5x80xf32> -> vector<5x80xf32>
    %448 = arith.addf %442, %447 : vector<5x80xf32>
    %449 = vector.extract_strided_slice %77 {offsets = [1, 0], sizes = [5, 30], strides = [1, 1]} : vector<7x42xf32> to vector<5x30xf32>
    %450 = arith.truncf %449 : vector<5x30xf32> to vector<5x30xbf16>
    %c2_381 = arith.constant 2 : index
    %c1_382 = arith.constant 1 : index
    %c0_383 = arith.constant 0 : index
    %c0_384 = arith.constant 0 : index
    %451 = vector.load %arg4[%c2_381, %c1_382, %c0_383, %c0_384] : memref<5x5x30x80xbf16, #tpu.memory_space<vmem>>, vector<1x1x30x80xbf16>
    %452 = vector.shape_cast %451 : vector<1x1x30x80xbf16> to vector<30x80xbf16>
    %cst_385 = arith.constant dense<0.000000e+00> : vector<5x80xf32>
    %453 = tpu.matmul %450, %452, %cst_385 {dimension_numbers = #tpu.dot_dimension_numbers<[1], [0], [0], [1], [0, 0, 1, 1], [], []>} : vector<5x30xbf16>, vector<30x80xbf16>, vector<5x80xf32> -> vector<5x80xf32>
    %454 = arith.addf %448, %453 : vector<5x80xf32>
    %455 = vector.extract_strided_slice %70 {offsets = [1, 6], sizes = [5, 30], strides = [1, 1]} : vector<7x42xf32> to vector<5x30xf32>
    %456 = arith.truncf %455 : vector<5x30xf32> to vector<5x30xbf16>
    %c2_386 = arith.constant 2 : index
    %c2_387 = arith.constant 2 : index
    %c0_388 = arith.constant 0 : index
    %c0_389 = arith.constant 0 : index
    %457 = vector.load %arg4[%c2_386, %c2_387, %c0_388, %c0_389] : memref<5x5x30x80xbf16, #tpu.memory_space<vmem>>, vector<1x1x30x80xbf16>
    %458 = vector.shape_cast %457 : vector<1x1x30x80xbf16> to vector<30x80xbf16>
    %cst_390 = arith.constant dense<0.000000e+00> : vector<5x80xf32>
    %459 = tpu.matmul %456, %458, %cst_390 {dimension_numbers = #tpu.dot_dimension_numbers<[1], [0], [0], [1], [0, 0, 1, 1], [], []>} : vector<5x30xbf16>, vector<30x80xbf16>, vector<5x80xf32> -> vector<5x80xf32>
    %460 = arith.addf %454, %459 : vector<5x80xf32>
    %461 = vector.extract_strided_slice %77 {offsets = [1, 6], sizes = [5, 30], strides = [1, 1]} : vector<7x42xf32> to vector<5x30xf32>
    %462 = arith.truncf %461 : vector<5x30xf32> to vector<5x30xbf16>
    %c2_391 = arith.constant 2 : index
    %c3_392 = arith.constant 3 : index
    %c0_393 = arith.constant 0 : index
    %c0_394 = arith.constant 0 : index
    %463 = vector.load %arg4[%c2_391, %c3_392, %c0_393, %c0_394] : memref<5x5x30x80xbf16, #tpu.memory_space<vmem>>, vector<1x1x30x80xbf16>
    %464 = vector.shape_cast %463 : vector<1x1x30x80xbf16> to vector<30x80xbf16>
    %cst_395 = arith.constant dense<0.000000e+00> : vector<5x80xf32>
    %465 = tpu.matmul %462, %464, %cst_395 {dimension_numbers = #tpu.dot_dimension_numbers<[1], [0], [0], [1], [0, 0, 1, 1], [], []>} : vector<5x30xbf16>, vector<30x80xbf16>, vector<5x80xf32> -> vector<5x80xf32>
    %466 = arith.addf %460, %465 : vector<5x80xf32>
    %467 = vector.extract_strided_slice %70 {offsets = [1, 12], sizes = [5, 30], strides = [1, 1]} : vector<7x42xf32> to vector<5x30xf32>
    %468 = arith.truncf %467 : vector<5x30xf32> to vector<5x30xbf16>
    %c2_396 = arith.constant 2 : index
    %c4_397 = arith.constant 4 : index
    %c0_398 = arith.constant 0 : index
    %c0_399 = arith.constant 0 : index
    %469 = vector.load %arg4[%c2_396, %c4_397, %c0_398, %c0_399] : memref<5x5x30x80xbf16, #tpu.memory_space<vmem>>, vector<1x1x30x80xbf16>
    %470 = vector.shape_cast %469 : vector<1x1x30x80xbf16> to vector<30x80xbf16>
    %cst_400 = arith.constant dense<0.000000e+00> : vector<5x80xf32>
    %471 = tpu.matmul %468, %470, %cst_400 {dimension_numbers = #tpu.dot_dimension_numbers<[1], [0], [0], [1], [0, 0, 1, 1], [], []>} : vector<5x30xbf16>, vector<30x80xbf16>, vector<5x80xf32> -> vector<5x80xf32>
    %472 = arith.addf %466, %471 : vector<5x80xf32>
    %473 = vector.extract_strided_slice %56 {offsets = [2, 0], sizes = [5, 30], strides = [1, 1]} : vector<7x42xf32> to vector<5x30xf32>
    %474 = arith.truncf %473 : vector<5x30xf32> to vector<5x30xbf16>
    %c3_401 = arith.constant 3 : index
    %c0_402 = arith.constant 0 : index
    %c0_403 = arith.constant 0 : index
    %c0_404 = arith.constant 0 : index
    %475 = vector.load %arg4[%c3_401, %c0_402, %c0_403, %c0_404] : memref<5x5x30x80xbf16, #tpu.memory_space<vmem>>, vector<1x1x30x80xbf16>
    %476 = vector.shape_cast %475 : vector<1x1x30x80xbf16> to vector<30x80xbf16>
    %cst_405 = arith.constant dense<0.000000e+00> : vector<5x80xf32>
    %477 = tpu.matmul %474, %476, %cst_405 {dimension_numbers = #tpu.dot_dimension_numbers<[1], [0], [0], [1], [0, 0, 1, 1], [], []>} : vector<5x30xbf16>, vector<30x80xbf16>, vector<5x80xf32> -> vector<5x80xf32>
    %478 = arith.addf %472, %477 : vector<5x80xf32>
    %479 = vector.extract_strided_slice %63 {offsets = [2, 0], sizes = [5, 30], strides = [1, 1]} : vector<7x42xf32> to vector<5x30xf32>
    %480 = arith.truncf %479 : vector<5x30xf32> to vector<5x30xbf16>
    %c3_406 = arith.constant 3 : index
    %c1_407 = arith.constant 1 : index
    %c0_408 = arith.constant 0 : index
    %c0_409 = arith.constant 0 : index
    %481 = vector.load %arg4[%c3_406, %c1_407, %c0_408, %c0_409] : memref<5x5x30x80xbf16, #tpu.memory_space<vmem>>, vector<1x1x30x80xbf16>
    %482 = vector.shape_cast %481 : vector<1x1x30x80xbf16> to vector<30x80xbf16>
    %cst_410 = arith.constant dense<0.000000e+00> : vector<5x80xf32>
    %483 = tpu.matmul %480, %482, %cst_410 {dimension_numbers = #tpu.dot_dimension_numbers<[1], [0], [0], [1], [0, 0, 1, 1], [], []>} : vector<5x30xbf16>, vector<30x80xbf16>, vector<5x80xf32> -> vector<5x80xf32>
    %484 = arith.addf %478, %483 : vector<5x80xf32>
    %485 = vector.extract_strided_slice %56 {offsets = [2, 6], sizes = [5, 30], strides = [1, 1]} : vector<7x42xf32> to vector<5x30xf32>
    %486 = arith.truncf %485 : vector<5x30xf32> to vector<5x30xbf16>
    %c3_411 = arith.constant 3 : index
    %c2_412 = arith.constant 2 : index
    %c0_413 = arith.constant 0 : index
    %c0_414 = arith.constant 0 : index
    %487 = vector.load %arg4[%c3_411, %c2_412, %c0_413, %c0_414] : memref<5x5x30x80xbf16, #tpu.memory_space<vmem>>, vector<1x1x30x80xbf16>
    %488 = vector.shape_cast %487 : vector<1x1x30x80xbf16> to vector<30x80xbf16>
    %cst_415 = arith.constant dense<0.000000e+00> : vector<5x80xf32>
    %489 = tpu.matmul %486, %488, %cst_415 {dimension_numbers = #tpu.dot_dimension_numbers<[1], [0], [0], [1], [0, 0, 1, 1], [], []>} : vector<5x30xbf16>, vector<30x80xbf16>, vector<5x80xf32> -> vector<5x80xf32>
    %490 = arith.addf %484, %489 : vector<5x80xf32>
    %491 = vector.extract_strided_slice %63 {offsets = [2, 6], sizes = [5, 30], strides = [1, 1]} : vector<7x42xf32> to vector<5x30xf32>
    %492 = arith.truncf %491 : vector<5x30xf32> to vector<5x30xbf16>
    %c3_416 = arith.constant 3 : index
    %c3_417 = arith.constant 3 : index
    %c0_418 = arith.constant 0 : index
    %c0_419 = arith.constant 0 : index
    %493 = vector.load %arg4[%c3_416, %c3_417, %c0_418, %c0_419] : memref<5x5x30x80xbf16, #tpu.memory_space<vmem>>, vector<1x1x30x80xbf16>
    %494 = vector.shape_cast %493 : vector<1x1x30x80xbf16> to vector<30x80xbf16>
    %cst_420 = arith.constant dense<0.000000e+00> : vector<5x80xf32>
    %495 = tpu.matmul %492, %494, %cst_420 {dimension_numbers = #tpu.dot_dimension_numbers<[1], [0], [0], [1], [0, 0, 1, 1], [], []>} : vector<5x30xbf16>, vector<30x80xbf16>, vector<5x80xf32> -> vector<5x80xf32>
    %496 = arith.addf %490, %495 : vector<5x80xf32>
    %497 = vector.extract_strided_slice %56 {offsets = [2, 12], sizes = [5, 30], strides = [1, 1]} : vector<7x42xf32> to vector<5x30xf32>
    %498 = arith.truncf %497 : vector<5x30xf32> to vector<5x30xbf16>
    %c3_421 = arith.constant 3 : index
    %c4_422 = arith.constant 4 : index
    %c0_423 = arith.constant 0 : index
    %c0_424 = arith.constant 0 : index
    %499 = vector.load %arg4[%c3_421, %c4_422, %c0_423, %c0_424] : memref<5x5x30x80xbf16, #tpu.memory_space<vmem>>, vector<1x1x30x80xbf16>
    %500 = vector.shape_cast %499 : vector<1x1x30x80xbf16> to vector<30x80xbf16>
    %cst_425 = arith.constant dense<0.000000e+00> : vector<5x80xf32>
    %501 = tpu.matmul %498, %500, %cst_425 {dimension_numbers = #tpu.dot_dimension_numbers<[1], [0], [0], [1], [0, 0, 1, 1], [], []>} : vector<5x30xbf16>, vector<30x80xbf16>, vector<5x80xf32> -> vector<5x80xf32>
    %502 = arith.addf %496, %501 : vector<5x80xf32>
    %503 = vector.extract_strided_slice %70 {offsets = [2, 0], sizes = [5, 30], strides = [1, 1]} : vector<7x42xf32> to vector<5x30xf32>
    %504 = arith.truncf %503 : vector<5x30xf32> to vector<5x30xbf16>
    %c4_426 = arith.constant 4 : index
    %c0_427 = arith.constant 0 : index
    %c0_428 = arith.constant 0 : index
    %c0_429 = arith.constant 0 : index
    %505 = vector.load %arg4[%c4_426, %c0_427, %c0_428, %c0_429] : memref<5x5x30x80xbf16, #tpu.memory_space<vmem>>, vector<1x1x30x80xbf16>
    %506 = vector.shape_cast %505 : vector<1x1x30x80xbf16> to vector<30x80xbf16>
    %cst_430 = arith.constant dense<0.000000e+00> : vector<5x80xf32>
    %507 = tpu.matmul %504, %506, %cst_430 {dimension_numbers = #tpu.dot_dimension_numbers<[1], [0], [0], [1], [0, 0, 1, 1], [], []>} : vector<5x30xbf16>, vector<30x80xbf16>, vector<5x80xf32> -> vector<5x80xf32>
    %508 = arith.addf %502, %507 : vector<5x80xf32>
    %509 = vector.extract_strided_slice %77 {offsets = [2, 0], sizes = [5, 30], strides = [1, 1]} : vector<7x42xf32> to vector<5x30xf32>
    %510 = arith.truncf %509 : vector<5x30xf32> to vector<5x30xbf16>
    %c4_431 = arith.constant 4 : index
    %c1_432 = arith.constant 1 : index
    %c0_433 = arith.constant 0 : index
    %c0_434 = arith.constant 0 : index
    %511 = vector.load %arg4[%c4_431, %c1_432, %c0_433, %c0_434] : memref<5x5x30x80xbf16, #tpu.memory_space<vmem>>, vector<1x1x30x80xbf16>
    %512 = vector.shape_cast %511 : vector<1x1x30x80xbf16> to vector<30x80xbf16>
    %cst_435 = arith.constant dense<0.000000e+00> : vector<5x80xf32>
    %513 = tpu.matmul %510, %512, %cst_435 {dimension_numbers = #tpu.dot_dimension_numbers<[1], [0], [0], [1], [0, 0, 1, 1], [], []>} : vector<5x30xbf16>, vector<30x80xbf16>, vector<5x80xf32> -> vector<5x80xf32>
    %514 = arith.addf %508, %513 : vector<5x80xf32>
    %515 = vector.extract_strided_slice %70 {offsets = [2, 6], sizes = [5, 30], strides = [1, 1]} : vector<7x42xf32> to vector<5x30xf32>
    %516 = arith.truncf %515 : vector<5x30xf32> to vector<5x30xbf16>
    %c4_436 = arith.constant 4 : index
    %c2_437 = arith.constant 2 : index
    %c0_438 = arith.constant 0 : index
    %c0_439 = arith.constant 0 : index
    %517 = vector.load %arg4[%c4_436, %c2_437, %c0_438, %c0_439] : memref<5x5x30x80xbf16, #tpu.memory_space<vmem>>, vector<1x1x30x80xbf16>
    %518 = vector.shape_cast %517 : vector<1x1x30x80xbf16> to vector<30x80xbf16>
    %cst_440 = arith.constant dense<0.000000e+00> : vector<5x80xf32>
    %519 = tpu.matmul %516, %518, %cst_440 {dimension_numbers = #tpu.dot_dimension_numbers<[1], [0], [0], [1], [0, 0, 1, 1], [], []>} : vector<5x30xbf16>, vector<30x80xbf16>, vector<5x80xf32> -> vector<5x80xf32>
    %520 = arith.addf %514, %519 : vector<5x80xf32>
    %521 = vector.extract_strided_slice %77 {offsets = [2, 6], sizes = [5, 30], strides = [1, 1]} : vector<7x42xf32> to vector<5x30xf32>
    %522 = arith.truncf %521 : vector<5x30xf32> to vector<5x30xbf16>
    %c4_441 = arith.constant 4 : index
    %c3_442 = arith.constant 3 : index
    %c0_443 = arith.constant 0 : index
    %c0_444 = arith.constant 0 : index
    %523 = vector.load %arg4[%c4_441, %c3_442, %c0_443, %c0_444] : memref<5x5x30x80xbf16, #tpu.memory_space<vmem>>, vector<1x1x30x80xbf16>
    %524 = vector.shape_cast %523 : vector<1x1x30x80xbf16> to vector<30x80xbf16>
    %cst_445 = arith.constant dense<0.000000e+00> : vector<5x80xf32>
    %525 = tpu.matmul %522, %524, %cst_445 {dimension_numbers = #tpu.dot_dimension_numbers<[1], [0], [0], [1], [0, 0, 1, 1], [], []>} : vector<5x30xbf16>, vector<30x80xbf16>, vector<5x80xf32> -> vector<5x80xf32>
    %526 = arith.addf %520, %525 : vector<5x80xf32>
    %527 = vector.extract_strided_slice %70 {offsets = [2, 12], sizes = [5, 30], strides = [1, 1]} : vector<7x42xf32> to vector<5x30xf32>
    %528 = arith.truncf %527 : vector<5x30xf32> to vector<5x30xbf16>
    %c4_446 = arith.constant 4 : index
    %c4_447 = arith.constant 4 : index
    %c0_448 = arith.constant 0 : index
    %c0_449 = arith.constant 0 : index
    %529 = vector.load %arg4[%c4_446, %c4_447, %c0_448, %c0_449] : memref<5x5x30x80xbf16, #tpu.memory_space<vmem>>, vector<1x1x30x80xbf16>
    %530 = vector.shape_cast %529 : vector<1x1x30x80xbf16> to vector<30x80xbf16>
    %cst_450 = arith.constant dense<0.000000e+00> : vector<5x80xf32>
    %531 = tpu.matmul %528, %530, %cst_450 {dimension_numbers = #tpu.dot_dimension_numbers<[1], [0], [0], [1], [0, 0, 1, 1], [], []>} : vector<5x30xbf16>, vector<30x80xbf16>, vector<5x80xf32> -> vector<5x80xf32>
    %532 = arith.addf %526, %531 : vector<5x80xf32>
    %533 = arith.maximumf %381, %532 : vector<5x80xf32>
    %cst_451 = arith.constant 0.000000e+00 : f32
    %534 = vector.broadcast %cst_451 : f32 to vector<5x80xf32>
    %535 = vector.extract_strided_slice %77 {offsets = [0, 0], sizes = [5, 30], strides = [1, 1]} : vector<7x42xf32> to vector<5x30xf32>
    %536 = arith.truncf %535 : vector<5x30xf32> to vector<5x30xbf16>
    %c0_452 = arith.constant 0 : index
    %c0_453 = arith.constant 0 : index
    %c0_454 = arith.constant 0 : index
    %c0_455 = arith.constant 0 : index
    %537 = vector.load %arg4[%c0_452, %c0_453, %c0_454, %c0_455] : memref<5x5x30x80xbf16, #tpu.memory_space<vmem>>, vector<1x1x30x80xbf16>
    %538 = vector.shape_cast %537 : vector<1x1x30x80xbf16> to vector<30x80xbf16>
    %cst_456 = arith.constant dense<0.000000e+00> : vector<5x80xf32>
    %539 = tpu.matmul %536, %538, %cst_456 {dimension_numbers = #tpu.dot_dimension_numbers<[1], [0], [0], [1], [0, 0, 1, 1], [], []>} : vector<5x30xbf16>, vector<30x80xbf16>, vector<5x80xf32> -> vector<5x80xf32>
    %540 = arith.addf %534, %539 : vector<5x80xf32>
    %541 = vector.extract_strided_slice %70 {offsets = [0, 6], sizes = [5, 30], strides = [1, 1]} : vector<7x42xf32> to vector<5x30xf32>
    %542 = arith.truncf %541 : vector<5x30xf32> to vector<5x30xbf16>
    %c0_457 = arith.constant 0 : index
    %c1_458 = arith.constant 1 : index
    %c0_459 = arith.constant 0 : index
    %c0_460 = arith.constant 0 : index
    %543 = vector.load %arg4[%c0_457, %c1_458, %c0_459, %c0_460] : memref<5x5x30x80xbf16, #tpu.memory_space<vmem>>, vector<1x1x30x80xbf16>
    %544 = vector.shape_cast %543 : vector<1x1x30x80xbf16> to vector<30x80xbf16>
    %cst_461 = arith.constant dense<0.000000e+00> : vector<5x80xf32>
    %545 = tpu.matmul %542, %544, %cst_461 {dimension_numbers = #tpu.dot_dimension_numbers<[1], [0], [0], [1], [0, 0, 1, 1], [], []>} : vector<5x30xbf16>, vector<30x80xbf16>, vector<5x80xf32> -> vector<5x80xf32>
    %546 = arith.addf %540, %545 : vector<5x80xf32>
    %547 = vector.extract_strided_slice %77 {offsets = [0, 6], sizes = [5, 30], strides = [1, 1]} : vector<7x42xf32> to vector<5x30xf32>
    %548 = arith.truncf %547 : vector<5x30xf32> to vector<5x30xbf16>
    %c0_462 = arith.constant 0 : index
    %c2_463 = arith.constant 2 : index
    %c0_464 = arith.constant 0 : index
    %c0_465 = arith.constant 0 : index
    %549 = vector.load %arg4[%c0_462, %c2_463, %c0_464, %c0_465] : memref<5x5x30x80xbf16, #tpu.memory_space<vmem>>, vector<1x1x30x80xbf16>
    %550 = vector.shape_cast %549 : vector<1x1x30x80xbf16> to vector<30x80xbf16>
    %cst_466 = arith.constant dense<0.000000e+00> : vector<5x80xf32>
    %551 = tpu.matmul %548, %550, %cst_466 {dimension_numbers = #tpu.dot_dimension_numbers<[1], [0], [0], [1], [0, 0, 1, 1], [], []>} : vector<5x30xbf16>, vector<30x80xbf16>, vector<5x80xf32> -> vector<5x80xf32>
    %552 = arith.addf %546, %551 : vector<5x80xf32>
    %553 = vector.extract_strided_slice %70 {offsets = [0, 12], sizes = [5, 30], strides = [1, 1]} : vector<7x42xf32> to vector<5x30xf32>
    %554 = arith.truncf %553 : vector<5x30xf32> to vector<5x30xbf16>
    %c0_467 = arith.constant 0 : index
    %c3_468 = arith.constant 3 : index
    %c0_469 = arith.constant 0 : index
    %c0_470 = arith.constant 0 : index
    %555 = vector.load %arg4[%c0_467, %c3_468, %c0_469, %c0_470] : memref<5x5x30x80xbf16, #tpu.memory_space<vmem>>, vector<1x1x30x80xbf16>
    %556 = vector.shape_cast %555 : vector<1x1x30x80xbf16> to vector<30x80xbf16>
    %cst_471 = arith.constant dense<0.000000e+00> : vector<5x80xf32>
    %557 = tpu.matmul %554, %556, %cst_471 {dimension_numbers = #tpu.dot_dimension_numbers<[1], [0], [0], [1], [0, 0, 1, 1], [], []>} : vector<5x30xbf16>, vector<30x80xbf16>, vector<5x80xf32> -> vector<5x80xf32>
    %558 = arith.addf %552, %557 : vector<5x80xf32>
    %559 = vector.extract_strided_slice %77 {offsets = [0, 12], sizes = [5, 30], strides = [1, 1]} : vector<7x42xf32> to vector<5x30xf32>
    %560 = arith.truncf %559 : vector<5x30xf32> to vector<5x30xbf16>
    %c0_472 = arith.constant 0 : index
    %c4_473 = arith.constant 4 : index
    %c0_474 = arith.constant 0 : index
    %c0_475 = arith.constant 0 : index
    %561 = vector.load %arg4[%c0_472, %c4_473, %c0_474, %c0_475] : memref<5x5x30x80xbf16, #tpu.memory_space<vmem>>, vector<1x1x30x80xbf16>
    %562 = vector.shape_cast %561 : vector<1x1x30x80xbf16> to vector<30x80xbf16>
    %cst_476 = arith.constant dense<0.000000e+00> : vector<5x80xf32>
    %563 = tpu.matmul %560, %562, %cst_476 {dimension_numbers = #tpu.dot_dimension_numbers<[1], [0], [0], [1], [0, 0, 1, 1], [], []>} : vector<5x30xbf16>, vector<30x80xbf16>, vector<5x80xf32> -> vector<5x80xf32>
    %564 = arith.addf %558, %563 : vector<5x80xf32>
    %565 = vector.extract_strided_slice %63 {offsets = [1, 0], sizes = [5, 30], strides = [1, 1]} : vector<7x42xf32> to vector<5x30xf32>
    %566 = arith.truncf %565 : vector<5x30xf32> to vector<5x30xbf16>
    %c1_477 = arith.constant 1 : index
    %c0_478 = arith.constant 0 : index
    %c0_479 = arith.constant 0 : index
    %c0_480 = arith.constant 0 : index
    %567 = vector.load %arg4[%c1_477, %c0_478, %c0_479, %c0_480] : memref<5x5x30x80xbf16, #tpu.memory_space<vmem>>, vector<1x1x30x80xbf16>
    %568 = vector.shape_cast %567 : vector<1x1x30x80xbf16> to vector<30x80xbf16>
    %cst_481 = arith.constant dense<0.000000e+00> : vector<5x80xf32>
    %569 = tpu.matmul %566, %568, %cst_481 {dimension_numbers = #tpu.dot_dimension_numbers<[1], [0], [0], [1], [0, 0, 1, 1], [], []>} : vector<5x30xbf16>, vector<30x80xbf16>, vector<5x80xf32> -> vector<5x80xf32>
    %570 = arith.addf %564, %569 : vector<5x80xf32>
    %571 = vector.extract_strided_slice %56 {offsets = [1, 6], sizes = [5, 30], strides = [1, 1]} : vector<7x42xf32> to vector<5x30xf32>
    %572 = arith.truncf %571 : vector<5x30xf32> to vector<5x30xbf16>
    %c1_482 = arith.constant 1 : index
    %c1_483 = arith.constant 1 : index
    %c0_484 = arith.constant 0 : index
    %c0_485 = arith.constant 0 : index
    %573 = vector.load %arg4[%c1_482, %c1_483, %c0_484, %c0_485] : memref<5x5x30x80xbf16, #tpu.memory_space<vmem>>, vector<1x1x30x80xbf16>
    %574 = vector.shape_cast %573 : vector<1x1x30x80xbf16> to vector<30x80xbf16>
    %cst_486 = arith.constant dense<0.000000e+00> : vector<5x80xf32>
    %575 = tpu.matmul %572, %574, %cst_486 {dimension_numbers = #tpu.dot_dimension_numbers<[1], [0], [0], [1], [0, 0, 1, 1], [], []>} : vector<5x30xbf16>, vector<30x80xbf16>, vector<5x80xf32> -> vector<5x80xf32>
    %576 = arith.addf %570, %575 : vector<5x80xf32>
    %577 = vector.extract_strided_slice %63 {offsets = [1, 6], sizes = [5, 30], strides = [1, 1]} : vector<7x42xf32> to vector<5x30xf32>
    %578 = arith.truncf %577 : vector<5x30xf32> to vector<5x30xbf16>
    %c1_487 = arith.constant 1 : index
    %c2_488 = arith.constant 2 : index
    %c0_489 = arith.constant 0 : index
    %c0_490 = arith.constant 0 : index
    %579 = vector.load %arg4[%c1_487, %c2_488, %c0_489, %c0_490] : memref<5x5x30x80xbf16, #tpu.memory_space<vmem>>, vector<1x1x30x80xbf16>
    %580 = vector.shape_cast %579 : vector<1x1x30x80xbf16> to vector<30x80xbf16>
    %cst_491 = arith.constant dense<0.000000e+00> : vector<5x80xf32>
    %581 = tpu.matmul %578, %580, %cst_491 {dimension_numbers = #tpu.dot_dimension_numbers<[1], [0], [0], [1], [0, 0, 1, 1], [], []>} : vector<5x30xbf16>, vector<30x80xbf16>, vector<5x80xf32> -> vector<5x80xf32>
    %582 = arith.addf %576, %581 : vector<5x80xf32>
    %583 = vector.extract_strided_slice %56 {offsets = [1, 12], sizes = [5, 30], strides = [1, 1]} : vector<7x42xf32> to vector<5x30xf32>
    %584 = arith.truncf %583 : vector<5x30xf32> to vector<5x30xbf16>
    %c1_492 = arith.constant 1 : index
    %c3_493 = arith.constant 3 : index
    %c0_494 = arith.constant 0 : index
    %c0_495 = arith.constant 0 : index
    %585 = vector.load %arg4[%c1_492, %c3_493, %c0_494, %c0_495] : memref<5x5x30x80xbf16, #tpu.memory_space<vmem>>, vector<1x1x30x80xbf16>
    %586 = vector.shape_cast %585 : vector<1x1x30x80xbf16> to vector<30x80xbf16>
    %cst_496 = arith.constant dense<0.000000e+00> : vector<5x80xf32>
    %587 = tpu.matmul %584, %586, %cst_496 {dimension_numbers = #tpu.dot_dimension_numbers<[1], [0], [0], [1], [0, 0, 1, 1], [], []>} : vector<5x30xbf16>, vector<30x80xbf16>, vector<5x80xf32> -> vector<5x80xf32>
    %588 = arith.addf %582, %587 : vector<5x80xf32>
    %589 = vector.extract_strided_slice %63 {offsets = [1, 12], sizes = [5, 30], strides = [1, 1]} : vector<7x42xf32> to vector<5x30xf32>
    %590 = arith.truncf %589 : vector<5x30xf32> to vector<5x30xbf16>
    %c1_497 = arith.constant 1 : index
    %c4_498 = arith.constant 4 : index
    %c0_499 = arith.constant 0 : index
    %c0_500 = arith.constant 0 : index
    %591 = vector.load %arg4[%c1_497, %c4_498, %c0_499, %c0_500] : memref<5x5x30x80xbf16, #tpu.memory_space<vmem>>, vector<1x1x30x80xbf16>
    %592 = vector.shape_cast %591 : vector<1x1x30x80xbf16> to vector<30x80xbf16>
    %cst_501 = arith.constant dense<0.000000e+00> : vector<5x80xf32>
    %593 = tpu.matmul %590, %592, %cst_501 {dimension_numbers = #tpu.dot_dimension_numbers<[1], [0], [0], [1], [0, 0, 1, 1], [], []>} : vector<5x30xbf16>, vector<30x80xbf16>, vector<5x80xf32> -> vector<5x80xf32>
    %594 = arith.addf %588, %593 : vector<5x80xf32>
    %595 = vector.extract_strided_slice %77 {offsets = [1, 0], sizes = [5, 30], strides = [1, 1]} : vector<7x42xf32> to vector<5x30xf32>
    %596 = arith.truncf %595 : vector<5x30xf32> to vector<5x30xbf16>
    %c2_502 = arith.constant 2 : index
    %c0_503 = arith.constant 0 : index
    %c0_504 = arith.constant 0 : index
    %c0_505 = arith.constant 0 : index
    %597 = vector.load %arg4[%c2_502, %c0_503, %c0_504, %c0_505] : memref<5x5x30x80xbf16, #tpu.memory_space<vmem>>, vector<1x1x30x80xbf16>
    %598 = vector.shape_cast %597 : vector<1x1x30x80xbf16> to vector<30x80xbf16>
    %cst_506 = arith.constant dense<0.000000e+00> : vector<5x80xf32>
    %599 = tpu.matmul %596, %598, %cst_506 {dimension_numbers = #tpu.dot_dimension_numbers<[1], [0], [0], [1], [0, 0, 1, 1], [], []>} : vector<5x30xbf16>, vector<30x80xbf16>, vector<5x80xf32> -> vector<5x80xf32>
    %600 = arith.addf %594, %599 : vector<5x80xf32>
    %601 = vector.extract_strided_slice %70 {offsets = [1, 6], sizes = [5, 30], strides = [1, 1]} : vector<7x42xf32> to vector<5x30xf32>
    %602 = arith.truncf %601 : vector<5x30xf32> to vector<5x30xbf16>
    %c2_507 = arith.constant 2 : index
    %c1_508 = arith.constant 1 : index
    %c0_509 = arith.constant 0 : index
    %c0_510 = arith.constant 0 : index
    %603 = vector.load %arg4[%c2_507, %c1_508, %c0_509, %c0_510] : memref<5x5x30x80xbf16, #tpu.memory_space<vmem>>, vector<1x1x30x80xbf16>
    %604 = vector.shape_cast %603 : vector<1x1x30x80xbf16> to vector<30x80xbf16>
    %cst_511 = arith.constant dense<0.000000e+00> : vector<5x80xf32>
    %605 = tpu.matmul %602, %604, %cst_511 {dimension_numbers = #tpu.dot_dimension_numbers<[1], [0], [0], [1], [0, 0, 1, 1], [], []>} : vector<5x30xbf16>, vector<30x80xbf16>, vector<5x80xf32> -> vector<5x80xf32>
    %606 = arith.addf %600, %605 : vector<5x80xf32>
    %607 = vector.extract_strided_slice %77 {offsets = [1, 6], sizes = [5, 30], strides = [1, 1]} : vector<7x42xf32> to vector<5x30xf32>
    %608 = arith.truncf %607 : vector<5x30xf32> to vector<5x30xbf16>
    %c2_512 = arith.constant 2 : index
    %c2_513 = arith.constant 2 : index
    %c0_514 = arith.constant 0 : index
    %c0_515 = arith.constant 0 : index
    %609 = vector.load %arg4[%c2_512, %c2_513, %c0_514, %c0_515] : memref<5x5x30x80xbf16, #tpu.memory_space<vmem>>, vector<1x1x30x80xbf16>
    %610 = vector.shape_cast %609 : vector<1x1x30x80xbf16> to vector<30x80xbf16>
    %cst_516 = arith.constant dense<0.000000e+00> : vector<5x80xf32>
    %611 = tpu.matmul %608, %610, %cst_516 {dimension_numbers = #tpu.dot_dimension_numbers<[1], [0], [0], [1], [0, 0, 1, 1], [], []>} : vector<5x30xbf16>, vector<30x80xbf16>, vector<5x80xf32> -> vector<5x80xf32>
    %612 = arith.addf %606, %611 : vector<5x80xf32>
    %613 = vector.extract_strided_slice %70 {offsets = [1, 12], sizes = [5, 30], strides = [1, 1]} : vector<7x42xf32> to vector<5x30xf32>
    %614 = arith.truncf %613 : vector<5x30xf32> to vector<5x30xbf16>
    %c2_517 = arith.constant 2 : index
    %c3_518 = arith.constant 3 : index
    %c0_519 = arith.constant 0 : index
    %c0_520 = arith.constant 0 : index
    %615 = vector.load %arg4[%c2_517, %c3_518, %c0_519, %c0_520] : memref<5x5x30x80xbf16, #tpu.memory_space<vmem>>, vector<1x1x30x80xbf16>
    %616 = vector.shape_cast %615 : vector<1x1x30x80xbf16> to vector<30x80xbf16>
    %cst_521 = arith.constant dense<0.000000e+00> : vector<5x80xf32>
    %617 = tpu.matmul %614, %616, %cst_521 {dimension_numbers = #tpu.dot_dimension_numbers<[1], [0], [0], [1], [0, 0, 1, 1], [], []>} : vector<5x30xbf16>, vector<30x80xbf16>, vector<5x80xf32> -> vector<5x80xf32>
    %618 = arith.addf %612, %617 : vector<5x80xf32>
    %619 = vector.extract_strided_slice %77 {offsets = [1, 12], sizes = [5, 30], strides = [1, 1]} : vector<7x42xf32> to vector<5x30xf32>
    %620 = arith.truncf %619 : vector<5x30xf32> to vector<5x30xbf16>
    %c2_522 = arith.constant 2 : index
    %c4_523 = arith.constant 4 : index
    %c0_524 = arith.constant 0 : index
    %c0_525 = arith.constant 0 : index
    %621 = vector.load %arg4[%c2_522, %c4_523, %c0_524, %c0_525] : memref<5x5x30x80xbf16, #tpu.memory_space<vmem>>, vector<1x1x30x80xbf16>
    %622 = vector.shape_cast %621 : vector<1x1x30x80xbf16> to vector<30x80xbf16>
    %cst_526 = arith.constant dense<0.000000e+00> : vector<5x80xf32>
    %623 = tpu.matmul %620, %622, %cst_526 {dimension_numbers = #tpu.dot_dimension_numbers<[1], [0], [0], [1], [0, 0, 1, 1], [], []>} : vector<5x30xbf16>, vector<30x80xbf16>, vector<5x80xf32> -> vector<5x80xf32>
    %624 = arith.addf %618, %623 : vector<5x80xf32>
    %625 = vector.extract_strided_slice %63 {offsets = [2, 0], sizes = [5, 30], strides = [1, 1]} : vector<7x42xf32> to vector<5x30xf32>
    %626 = arith.truncf %625 : vector<5x30xf32> to vector<5x30xbf16>
    %c3_527 = arith.constant 3 : index
    %c0_528 = arith.constant 0 : index
    %c0_529 = arith.constant 0 : index
    %c0_530 = arith.constant 0 : index
    %627 = vector.load %arg4[%c3_527, %c0_528, %c0_529, %c0_530] : memref<5x5x30x80xbf16, #tpu.memory_space<vmem>>, vector<1x1x30x80xbf16>
    %628 = vector.shape_cast %627 : vector<1x1x30x80xbf16> to vector<30x80xbf16>
    %cst_531 = arith.constant dense<0.000000e+00> : vector<5x80xf32>
    %629 = tpu.matmul %626, %628, %cst_531 {dimension_numbers = #tpu.dot_dimension_numbers<[1], [0], [0], [1], [0, 0, 1, 1], [], []>} : vector<5x30xbf16>, vector<30x80xbf16>, vector<5x80xf32> -> vector<5x80xf32>
    %630 = arith.addf %624, %629 : vector<5x80xf32>
    %631 = vector.extract_strided_slice %56 {offsets = [2, 6], sizes = [5, 30], strides = [1, 1]} : vector<7x42xf32> to vector<5x30xf32>
    %632 = arith.truncf %631 : vector<5x30xf32> to vector<5x30xbf16>
    %c3_532 = arith.constant 3 : index
    %c1_533 = arith.constant 1 : index
    %c0_534 = arith.constant 0 : index
    %c0_535 = arith.constant 0 : index
    %633 = vector.load %arg4[%c3_532, %c1_533, %c0_534, %c0_535] : memref<5x5x30x80xbf16, #tpu.memory_space<vmem>>, vector<1x1x30x80xbf16>
    %634 = vector.shape_cast %633 : vector<1x1x30x80xbf16> to vector<30x80xbf16>
    %cst_536 = arith.constant dense<0.000000e+00> : vector<5x80xf32>
    %635 = tpu.matmul %632, %634, %cst_536 {dimension_numbers = #tpu.dot_dimension_numbers<[1], [0], [0], [1], [0, 0, 1, 1], [], []>} : vector<5x30xbf16>, vector<30x80xbf16>, vector<5x80xf32> -> vector<5x80xf32>
    %636 = arith.addf %630, %635 : vector<5x80xf32>
    %637 = vector.extract_strided_slice %63 {offsets = [2, 6], sizes = [5, 30], strides = [1, 1]} : vector<7x42xf32> to vector<5x30xf32>
    %638 = arith.truncf %637 : vector<5x30xf32> to vector<5x30xbf16>
    %c3_537 = arith.constant 3 : index
    %c2_538 = arith.constant 2 : index
    %c0_539 = arith.constant 0 : index
    %c0_540 = arith.constant 0 : index
    %639 = vector.load %arg4[%c3_537, %c2_538, %c0_539, %c0_540] : memref<5x5x30x80xbf16, #tpu.memory_space<vmem>>, vector<1x1x30x80xbf16>
    %640 = vector.shape_cast %639 : vector<1x1x30x80xbf16> to vector<30x80xbf16>
    %cst_541 = arith.constant dense<0.000000e+00> : vector<5x80xf32>
    %641 = tpu.matmul %638, %640, %cst_541 {dimension_numbers = #tpu.dot_dimension_numbers<[1], [0], [0], [1], [0, 0, 1, 1], [], []>} : vector<5x30xbf16>, vector<30x80xbf16>, vector<5x80xf32> -> vector<5x80xf32>
    %642 = arith.addf %636, %641 : vector<5x80xf32>
    %643 = vector.extract_strided_slice %56 {offsets = [2, 12], sizes = [5, 30], strides = [1, 1]} : vector<7x42xf32> to vector<5x30xf32>
    %644 = arith.truncf %643 : vector<5x30xf32> to vector<5x30xbf16>
    %c3_542 = arith.constant 3 : index
    %c3_543 = arith.constant 3 : index
    %c0_544 = arith.constant 0 : index
    %c0_545 = arith.constant 0 : index
    %645 = vector.load %arg4[%c3_542, %c3_543, %c0_544, %c0_545] : memref<5x5x30x80xbf16, #tpu.memory_space<vmem>>, vector<1x1x30x80xbf16>
    %646 = vector.shape_cast %645 : vector<1x1x30x80xbf16> to vector<30x80xbf16>
    %cst_546 = arith.constant dense<0.000000e+00> : vector<5x80xf32>
    %647 = tpu.matmul %644, %646, %cst_546 {dimension_numbers = #tpu.dot_dimension_numbers<[1], [0], [0], [1], [0, 0, 1, 1], [], []>} : vector<5x30xbf16>, vector<30x80xbf16>, vector<5x80xf32> -> vector<5x80xf32>
    %648 = arith.addf %642, %647 : vector<5x80xf32>
    %649 = vector.extract_strided_slice %63 {offsets = [2, 12], sizes = [5, 30], strides = [1, 1]} : vector<7x42xf32> to vector<5x30xf32>
    %650 = arith.truncf %649 : vector<5x30xf32> to vector<5x30xbf16>
    %c3_547 = arith.constant 3 : index
    %c4_548 = arith.constant 4 : index
    %c0_549 = arith.constant 0 : index
    %c0_550 = arith.constant 0 : index
    %651 = vector.load %arg4[%c3_547, %c4_548, %c0_549, %c0_550] : memref<5x5x30x80xbf16, #tpu.memory_space<vmem>>, vector<1x1x30x80xbf16>
    %652 = vector.shape_cast %651 : vector<1x1x30x80xbf16> to vector<30x80xbf16>
    %cst_551 = arith.constant dense<0.000000e+00> : vector<5x80xf32>
    %653 = tpu.matmul %650, %652, %cst_551 {dimension_numbers = #tpu.dot_dimension_numbers<[1], [0], [0], [1], [0, 0, 1, 1], [], []>} : vector<5x30xbf16>, vector<30x80xbf16>, vector<5x80xf32> -> vector<5x80xf32>
    %654 = arith.addf %648, %653 : vector<5x80xf32>
    %655 = vector.extract_strided_slice %77 {offsets = [2, 0], sizes = [5, 30], strides = [1, 1]} : vector<7x42xf32> to vector<5x30xf32>
    %656 = arith.truncf %655 : vector<5x30xf32> to vector<5x30xbf16>
    %c4_552 = arith.constant 4 : index
    %c0_553 = arith.constant 0 : index
    %c0_554 = arith.constant 0 : index
    %c0_555 = arith.constant 0 : index
    %657 = vector.load %arg4[%c4_552, %c0_553, %c0_554, %c0_555] : memref<5x5x30x80xbf16, #tpu.memory_space<vmem>>, vector<1x1x30x80xbf16>
    %658 = vector.shape_cast %657 : vector<1x1x30x80xbf16> to vector<30x80xbf16>
    %cst_556 = arith.constant dense<0.000000e+00> : vector<5x80xf32>
    %659 = tpu.matmul %656, %658, %cst_556 {dimension_numbers = #tpu.dot_dimension_numbers<[1], [0], [0], [1], [0, 0, 1, 1], [], []>} : vector<5x30xbf16>, vector<30x80xbf16>, vector<5x80xf32> -> vector<5x80xf32>
    %660 = arith.addf %654, %659 : vector<5x80xf32>
    %661 = vector.extract_strided_slice %70 {offsets = [2, 6], sizes = [5, 30], strides = [1, 1]} : vector<7x42xf32> to vector<5x30xf32>
    %662 = arith.truncf %661 : vector<5x30xf32> to vector<5x30xbf16>
    %c4_557 = arith.constant 4 : index
    %c1_558 = arith.constant 1 : index
    %c0_559 = arith.constant 0 : index
    %c0_560 = arith.constant 0 : index
    %663 = vector.load %arg4[%c4_557, %c1_558, %c0_559, %c0_560] : memref<5x5x30x80xbf16, #tpu.memory_space<vmem>>, vector<1x1x30x80xbf16>
    %664 = vector.shape_cast %663 : vector<1x1x30x80xbf16> to vector<30x80xbf16>
    %cst_561 = arith.constant dense<0.000000e+00> : vector<5x80xf32>
    %665 = tpu.matmul %662, %664, %cst_561 {dimension_numbers = #tpu.dot_dimension_numbers<[1], [0], [0], [1], [0, 0, 1, 1], [], []>} : vector<5x30xbf16>, vector<30x80xbf16>, vector<5x80xf32> -> vector<5x80xf32>
    %666 = arith.addf %660, %665 : vector<5x80xf32>
    %667 = vector.extract_strided_slice %77 {offsets = [2, 6], sizes = [5, 30], strides = [1, 1]} : vector<7x42xf32> to vector<5x30xf32>
    %668 = arith.truncf %667 : vector<5x30xf32> to vector<5x30xbf16>
    %c4_562 = arith.constant 4 : index
    %c2_563 = arith.constant 2 : index
    %c0_564 = arith.constant 0 : index
    %c0_565 = arith.constant 0 : index
    %669 = vector.load %arg4[%c4_562, %c2_563, %c0_564, %c0_565] : memref<5x5x30x80xbf16, #tpu.memory_space<vmem>>, vector<1x1x30x80xbf16>
    %670 = vector.shape_cast %669 : vector<1x1x30x80xbf16> to vector<30x80xbf16>
    %cst_566 = arith.constant dense<0.000000e+00> : vector<5x80xf32>
    %671 = tpu.matmul %668, %670, %cst_566 {dimension_numbers = #tpu.dot_dimension_numbers<[1], [0], [0], [1], [0, 0, 1, 1], [], []>} : vector<5x30xbf16>, vector<30x80xbf16>, vector<5x80xf32> -> vector<5x80xf32>
    %672 = arith.addf %666, %671 : vector<5x80xf32>
    %673 = vector.extract_strided_slice %70 {offsets = [2, 12], sizes = [5, 30], strides = [1, 1]} : vector<7x42xf32> to vector<5x30xf32>
    %674 = arith.truncf %673 : vector<5x30xf32> to vector<5x30xbf16>
    %c4_567 = arith.constant 4 : index
    %c3_568 = arith.constant 3 : index
    %c0_569 = arith.constant 0 : index
    %c0_570 = arith.constant 0 : index
    %675 = vector.load %arg4[%c4_567, %c3_568, %c0_569, %c0_570] : memref<5x5x30x80xbf16, #tpu.memory_space<vmem>>, vector<1x1x30x80xbf16>
    %676 = vector.shape_cast %675 : vector<1x1x30x80xbf16> to vector<30x80xbf16>
    %cst_571 = arith.constant dense<0.000000e+00> : vector<5x80xf32>
    %677 = tpu.matmul %674, %676, %cst_571 {dimension_numbers = #tpu.dot_dimension_numbers<[1], [0], [0], [1], [0, 0, 1, 1], [], []>} : vector<5x30xbf16>, vector<30x80xbf16>, vector<5x80xf32> -> vector<5x80xf32>
    %678 = arith.addf %672, %677 : vector<5x80xf32>
    %679 = vector.extract_strided_slice %77 {offsets = [2, 12], sizes = [5, 30], strides = [1, 1]} : vector<7x42xf32> to vector<5x30xf32>
    %680 = arith.truncf %679 : vector<5x30xf32> to vector<5x30xbf16>
    %c4_572 = arith.constant 4 : index
    %c4_573 = arith.constant 4 : index
    %c0_574 = arith.constant 0 : index
    %c0_575 = arith.constant 0 : index
    %681 = vector.load %arg4[%c4_572, %c4_573, %c0_574, %c0_575] : memref<5x5x30x80xbf16, #tpu.memory_space<vmem>>, vector<1x1x30x80xbf16>
    %682 = vector.shape_cast %681 : vector<1x1x30x80xbf16> to vector<30x80xbf16>
    %cst_576 = arith.constant dense<0.000000e+00> : vector<5x80xf32>
    %683 = tpu.matmul %680, %682, %cst_576 {dimension_numbers = #tpu.dot_dimension_numbers<[1], [0], [0], [1], [0, 0, 1, 1], [], []>} : vector<5x30xbf16>, vector<30x80xbf16>, vector<5x80xf32> -> vector<5x80xf32>
    %684 = arith.addf %678, %683 : vector<5x80xf32>
    %685 = arith.maximumf %533, %684 : vector<5x80xf32>
    %686 = vector.broadcast %78 : vector<1x80xf32> to vector<5x80xf32>
    %687 = arith.addf %685, %686 : vector<5x80xf32>
    %cst_577 = arith.constant 0.000000e+00 : f32
    %688 = vector.broadcast %cst_577 : f32 to vector<5x80xf32>
    %689 = arith.maximumf %687, %688 : vector<5x80xf32>
    %c0_578 = arith.constant 0 : index
    %c0_579 = arith.constant 0 : index
    %690 = vector.load %arg7[%c0_578, %c0_579] : memref<1x120xf32, #tpu.memory_space<vmem>>, vector<1x120xf32>
    %691 = vector.extract_strided_slice %689 {offsets = [0, 0], sizes = [1, 80], strides = [1, 1]} : vector<5x80xf32> to vector<1x80xf32>
    %692 = arith.truncf %691 : vector<1x80xf32> to vector<1x80xbf16>
    %c0_580 = arith.constant 0 : index
    %c0_581 = arith.constant 0 : index
    %c0_582 = arith.constant 0 : index
    %693 = vector.load %arg6[%c0_580, %c0_581, %c0_582] : memref<5x80x120xbf16, #tpu.memory_space<vmem>>, vector<1x80x120xbf16>
    %694 = vector.shape_cast %693 : vector<1x80x120xbf16> to vector<80x120xbf16>
    %cst_583 = arith.constant dense<0.000000e+00> : vector<1x120xf32>
    %695 = tpu.matmul %692, %694, %cst_583 {dimension_numbers = #tpu.dot_dimension_numbers<[1], [0], [0], [1], [0, 0, 1, 1], [], []>} : vector<1x80xbf16>, vector<80x120xbf16>, vector<1x120xf32> -> vector<1x120xf32>
    %696 = arith.addf %690, %695 : vector<1x120xf32>
    %697 = vector.extract_strided_slice %689 {offsets = [1, 0], sizes = [1, 80], strides = [1, 1]} : vector<5x80xf32> to vector<1x80xf32>
    %698 = arith.truncf %697 : vector<1x80xf32> to vector<1x80xbf16>
    %c1_584 = arith.constant 1 : index
    %c0_585 = arith.constant 0 : index
    %c0_586 = arith.constant 0 : index
    %699 = vector.load %arg6[%c1_584, %c0_585, %c0_586] : memref<5x80x120xbf16, #tpu.memory_space<vmem>>, vector<1x80x120xbf16>
    %700 = vector.shape_cast %699 : vector<1x80x120xbf16> to vector<80x120xbf16>
    %cst_587 = arith.constant dense<0.000000e+00> : vector<1x120xf32>
    %701 = tpu.matmul %698, %700, %cst_587 {dimension_numbers = #tpu.dot_dimension_numbers<[1], [0], [0], [1], [0, 0, 1, 1], [], []>} : vector<1x80xbf16>, vector<80x120xbf16>, vector<1x120xf32> -> vector<1x120xf32>
    %702 = arith.addf %696, %701 : vector<1x120xf32>
    %703 = vector.extract_strided_slice %689 {offsets = [2, 0], sizes = [1, 80], strides = [1, 1]} : vector<5x80xf32> to vector<1x80xf32>
    %704 = arith.truncf %703 : vector<1x80xf32> to vector<1x80xbf16>
    %c2_588 = arith.constant 2 : index
    %c0_589 = arith.constant 0 : index
    %c0_590 = arith.constant 0 : index
    %705 = vector.load %arg6[%c2_588, %c0_589, %c0_590] : memref<5x80x120xbf16, #tpu.memory_space<vmem>>, vector<1x80x120xbf16>
    %706 = vector.shape_cast %705 : vector<1x80x120xbf16> to vector<80x120xbf16>
    %cst_591 = arith.constant dense<0.000000e+00> : vector<1x120xf32>
    %707 = tpu.matmul %704, %706, %cst_591 {dimension_numbers = #tpu.dot_dimension_numbers<[1], [0], [0], [1], [0, 0, 1, 1], [], []>} : vector<1x80xbf16>, vector<80x120xbf16>, vector<1x120xf32> -> vector<1x120xf32>
    %708 = arith.addf %702, %707 : vector<1x120xf32>
    %709 = vector.extract_strided_slice %689 {offsets = [3, 0], sizes = [1, 80], strides = [1, 1]} : vector<5x80xf32> to vector<1x80xf32>
    %710 = arith.truncf %709 : vector<1x80xf32> to vector<1x80xbf16>
    %c3_592 = arith.constant 3 : index
    %c0_593 = arith.constant 0 : index
    %c0_594 = arith.constant 0 : index
    %711 = vector.load %arg6[%c3_592, %c0_593, %c0_594] : memref<5x80x120xbf16, #tpu.memory_space<vmem>>, vector<1x80x120xbf16>
    %712 = vector.shape_cast %711 : vector<1x80x120xbf16> to vector<80x120xbf16>
    %cst_595 = arith.constant dense<0.000000e+00> : vector<1x120xf32>
    %713 = tpu.matmul %710, %712, %cst_595 {dimension_numbers = #tpu.dot_dimension_numbers<[1], [0], [0], [1], [0, 0, 1, 1], [], []>} : vector<1x80xbf16>, vector<80x120xbf16>, vector<1x120xf32> -> vector<1x120xf32>
    %714 = arith.addf %708, %713 : vector<1x120xf32>
    %715 = vector.extract_strided_slice %689 {offsets = [4, 0], sizes = [1, 80], strides = [1, 1]} : vector<5x80xf32> to vector<1x80xf32>
    %716 = arith.truncf %715 : vector<1x80xf32> to vector<1x80xbf16>
    %c4_596 = arith.constant 4 : index
    %c0_597 = arith.constant 0 : index
    %c0_598 = arith.constant 0 : index
    %717 = vector.load %arg6[%c4_596, %c0_597, %c0_598] : memref<5x80x120xbf16, #tpu.memory_space<vmem>>, vector<1x80x120xbf16>
    %718 = vector.shape_cast %717 : vector<1x80x120xbf16> to vector<80x120xbf16>
    %cst_599 = arith.constant dense<0.000000e+00> : vector<1x120xf32>
    %719 = tpu.matmul %716, %718, %cst_599 {dimension_numbers = #tpu.dot_dimension_numbers<[1], [0], [0], [1], [0, 0, 1, 1], [], []>} : vector<1x80xbf16>, vector<80x120xbf16>, vector<1x120xf32> -> vector<1x120xf32>
    %720 = arith.addf %714, %719 : vector<1x120xf32>
    %cst_600 = arith.constant 0.000000e+00 : f32
    %721 = vector.broadcast %cst_600 : f32 to vector<1x120xf32>
    %722 = arith.maximumf %720, %721 : vector<1x120xf32>
    %723 = arith.truncf %722 : vector<1x120xf32> to vector<1x120xbf16>
    %c0_601 = arith.constant 0 : index
    %c0_602 = arith.constant 0 : index
    %724 = vector.load %arg8[%c0_601, %c0_602] : memref<120x84xbf16, #tpu.memory_space<vmem>>, vector<120x84xbf16>
    %cst_603 = arith.constant dense<0.000000e+00> : vector<1x84xf32>
    %725 = tpu.matmul %723, %724, %cst_603 {dimension_numbers = #tpu.dot_dimension_numbers<[1], [0], [0], [1], [0, 0, 1, 1], [], []>} : vector<1x120xbf16>, vector<120x84xbf16>, vector<1x84xf32> -> vector<1x84xf32>
    %c0_604 = arith.constant 0 : index
    %c0_605 = arith.constant 0 : index
    %726 = vector.load %arg9[%c0_604, %c0_605] : memref<1x84xf32, #tpu.memory_space<vmem>>, vector<1x84xf32>
    %727 = arith.addf %725, %726 : vector<1x84xf32>
    %cst_606 = arith.constant 0.000000e+00 : f32
    %728 = vector.broadcast %cst_606 : f32 to vector<1x84xf32>
    %729 = arith.maximumf %727, %728 : vector<1x84xf32>
    %730 = arith.truncf %729 : vector<1x84xf32> to vector<1x84xbf16>
    %c0_607 = arith.constant 0 : index
    %c0_608 = arith.constant 0 : index
    %731 = vector.load %arg10[%c0_607, %c0_608] : memref<84x10xbf16, #tpu.memory_space<vmem>>, vector<84x10xbf16>
    %cst_609 = arith.constant dense<0.000000e+00> : vector<1x10xf32>
    %732 = tpu.matmul %730, %731, %cst_609 {dimension_numbers = #tpu.dot_dimension_numbers<[1], [0], [0], [1], [0, 0, 1, 1], [], []>} : vector<1x84xbf16>, vector<84x10xbf16>, vector<1x10xf32> -> vector<1x10xf32>
    %c0_610 = arith.constant 0 : index
    %c0_611 = arith.constant 0 : index
    %733 = vector.load %arg11[%c0_610, %c0_611] : memref<1x10xf32, #tpu.memory_space<vmem>>, vector<1x10xf32>
    %734 = arith.addf %732, %733 : vector<1x10xf32>
    %c0_612 = arith.constant 0 : index
    %c0_613 = arith.constant 0 : index
    %c0_614 = arith.constant 0 : index
    %735 = vector.load %arg12[%c0_612, %c0_613, %c0_614] : memref<1x1x10xf32, #tpu.memory_space<vmem>>, vector<1x1x10xf32>
    %736 = vector.shape_cast %735 : vector<1x1x10xf32> to vector<1x10xf32>
    %737 = vector.shape_cast %734 : vector<1x10xf32> to vector<1x1x10xf32>
    tpu.vector_store %arg12[%c0_612, %c0_613, %c0_614], %737 {strides = array<i32>} : memref<1x1x10xf32, #tpu.memory_space<vmem>>, vector<1x1x10xf32>,
    return
  }
  func.func @transform_0(%arg0: i32) -> (i32, i32, i32, i32) {
    %c0_i32 = arith.constant 0 : i32
    %c0_i32_0 = arith.constant 0 : i32
    %c0_i32_1 = arith.constant 0 : i32
    %c0_i32_2 = arith.constant 0 : i32
    return %arg0, %c0_i32, %c0_i32_0, %c0_i32_1 : i32, i32, i32, i32
  }
  func.func @transform_1(%arg0: i32) -> (i32, i32) {
    %c0_i32 = arith.constant 0 : i32
    %c0_i32_0 = arith.constant 0 : i32
    %c0_i32_1 = arith.constant 0 : i32
    return %c0_i32, %c0_i32_0 : i32, i32
  }
  func.func @transform_2(%arg0: i32) -> (i32, i32) {
    %c0_i32 = arith.constant 0 : i32
    %c0_i32_0 = arith.constant 0 : i32
    %c0_i32_1 = arith.constant 0 : i32
    return %c0_i32, %c0_i32_0 : i32, i32
  }
  func.func @transform_3(%arg0: i32) -> (i32, i32, i32, i32) {
    %c0_i32 = arith.constant 0 : i32
    %c0_i32_0 = arith.constant 0 : i32
    %c0_i32_1 = arith.constant 0 : i32
    %c0_i32_2 = arith.constant 0 : i32
    %c0_i32_3 = arith.constant 0 : i32
    return %c0_i32, %c0_i32_0, %c0_i32_1, %c0_i32_2 : i32, i32, i32, i32
  }
  func.func @transform_4(%arg0: i32) -> (i32, i32) {
    %c0_i32 = arith.constant 0 : i32
    %c0_i32_0 = arith.constant 0 : i32
    %c0_i32_1 = arith.constant 0 : i32
    return %c0_i32, %c0_i32_0 : i32, i32
  }
  func.func @transform_5(%arg0: i32) -> (i32, i32, i32) {
    %c0_i32 = arith.constant 0 : i32
    %c0_i32_0 = arith.constant 0 : i32
    %c0_i32_1 = arith.constant 0 : i32
    %c0_i32_2 = arith.constant 0 : i32
    return %c0_i32, %c0_i32_0, %c0_i32_1 : i32, i32, i32
  }
  func.func @transform_6(%arg0: i32) -> (i32, i32) {
    %c0_i32 = arith.constant 0 : i32
    %c0_i32_0 = arith.constant 0 : i32
    %c0_i32_1 = arith.constant 0 : i32
    return %c0_i32, %c0_i32_0 : i32, i32
  }
  func.func @transform_7(%arg0: i32) -> (i32, i32) {
    %c0_i32 = arith.constant 0 : i32
    %c0_i32_0 = arith.constant 0 : i32
    %c0_i32_1 = arith.constant 0 : i32
    return %c0_i32, %c0_i32_0 : i32, i32
  }
  func.func @transform_8(%arg0: i32) -> (i32, i32) {
    %c0_i32 = arith.constant 0 : i32
    %c0_i32_0 = arith.constant 0 : i32
    %c0_i32_1 = arith.constant 0 : i32
    return %c0_i32, %c0_i32_0 : i32, i32
  }
  func.func @transform_9(%arg0: i32) -> (i32, i32) {
    %c0_i32 = arith.constant 0 : i32
    %c0_i32_0 = arith.constant 0 : i32
    %c0_i32_1 = arith.constant 0 : i32
    return %c0_i32, %c0_i32_0 : i32, i32
  }
  func.func @transform_10(%arg0: i32) -> (i32, i32) {
    %c0_i32 = arith.constant 0 : i32
    %c0_i32_0 = arith.constant 0 : i32
    %c0_i32_1 = arith.constant 0 : i32
    return %c0_i32, %c0_i32_0 : i32, i32
  }
  func.func @transform_11(%arg0: i32) -> (i32, i32, i32) {
    %c0_i32 = arith.constant 0 : i32
    %c0_i32_0 = arith.constant 0 : i32
    %c0_i32_1 = arith.constant 0 : i32
    return %arg0, %c0_i32, %c0_i32_0 : i32, i32, i32
  }
}

</mosaic_0001>

<llo_original>
// kernel: tile.13
$region0: #{tile.13}
  #allocation0 [shape = 's32[1]{0}', space=sflag, size = 0x4, scoped, tag = 'scoped memory for tile.13']
  %s0 = inlined_call_operand.vmem [shape: f32[6], index: 0, kind: input, shape index: {}]
  %s1 = inlined_call_operand.vmem [shape: f32[7,6], index: 1, kind: output, shape index: {}]
  // Predicated region
  $region2: #{tile.13} parent=0 // pred_check
    _
  $region3: #{tile.13} parent=0 // pred_check_branch
    %3 = sbr.rel (0) target = $region5
  $region4: #{tile.13} parent=0 // pred_region
    _
  $region5: #{tile.13} parent=0 // pred_fallthru
    _
  %v4 = vld [vmem:[%s0] ss:$0 sm:$0xff]
  %5 = vst [vmem:[%s1] sm:$0xff] %v4

// kernel: tile.14
$region0: #{tile.14}
  %s0 = inlined_call_operand.vmem [shape: f32[7,6], index: 0, kind: input, shape index: {}]
  %s1 = inlined_call_operand.vmem [shape: f32[1,42], index: 1, kind: output, shape index: {}]
  $region1: #{tile.14} parent=0
    #allocation0 [shape = 'u8[4096]{0}', space=vmem, size = 0x1000, scoped, tag = 'scoped mem for output reshape']
    %v2 = vld [vmem:[%s0] sm:$0x1]
    %vm3 = vcmask 48128
    %4 = vst.msk [vmem:[#allocation0] sm:$0x1] %vm3, %v2
    %s5 = scalar_lea.vmem %s0, 6
    %v6 = vld [vmem:[%s5] sm:$0x1]
    %7 = vrot.lane.b32.xlu0 %v6, 36
    %v8 = vpop.permute.xlu0 %7
    %vm9 = vcmask 343328
    %10 = vst.msk [vmem:[#allocation0] sm:$0x1] %vm9, %v8
    %s11 = scalar_lea.vmem %s0, 5
    %v12 = vld [vmem:[%s11] sm:$0x1]
    %13 = vrot.lane.b32.xlu0 %v12, 30
    %v14 = vpop.permute.xlu0 %13
    %vm15 = vcmask 294128
    %16 = vst.msk [vmem:[#allocation0] sm:$0x1] %vm15, %v14
    %s17 = scalar_lea.vmem %s0, 4
    %v18 = vld [vmem:[%s17] sm:$0x1]
    %19 = vrot.lane.b32.xlu0 %v18, 24
    %v20 = vpop.permute.xlu0 %19
    %vm21 = vcmask 244928
    %22 = vst.msk [vmem:[#allocation0] sm:$0x1] %vm21, %v20
    %s23 = scalar_lea.vmem %s0, 3
    %v24 = vld [vmem:[%s23] sm:$0x1]
    %25 = vrot.lane.b32.xlu0 %v24, 18
    %v26 = vpop.permute.xlu0 %25
    %vm27 = vcmask 195728
    %28 = vst.msk [vmem:[#allocation0] sm:$0x1] %vm27, %v26
    %s29 = scalar_lea.vmem %s0, 2
    %v30 = vld [vmem:[%s29] sm:$0x1]
    %31 = vrot.lane.b32.xlu0 %v30, 12
    %v32 = vpop.permute.xlu0 %31
    %vm33 = vcmask 146528
    %34 = vst.msk [vmem:[#allocation0] sm:$0x1] %vm33, %v32
    %s35 = scalar_lea.vmem %s0, 1
    %v36 = vld [vmem:[%s35] sm:$0x1]
    %37 = vrot.lane.b32.xlu0 %v36, 6
    %v38 = vpop.permute.xlu0 %37
    %vm39 = vcmask 97328
    %40 = vst.msk [vmem:[#allocation0] sm:$0x1] %vm39, %v38
    %s42 = ssub.s32 2, 1
    %v43 = vld [vmem:[#allocation0] sm:%s42]
    %s45 = ssub.s32 2, 1
    %46 = vst [vmem:[%s1] sm:%s45] %v43

// kernel: tile.18
$region0: #{tile.18}
  #allocation0 [shape = 's32[1]{0}', space=sflag, size = 0x4, scoped, tag = 'scoped memory for tile.18']
  %s0 = inlined_call_operand.vmem [shape: f32[16], index: 0, kind: input, shape index: {}]
  %s1 = inlined_call_operand.vmem [shape: f32[5,16], index: 1, kind: output, shape index: {}]
  // Predicated region
  $region2: #{tile.18} parent=0 // pred_check
    _
  $region3: #{tile.18} parent=0 // pred_check_branch
    %3 = sbr.rel (0) target = $region5
  $region4: #{tile.18} parent=0 // pred_region
    _
  $region5: #{tile.18} parent=0 // pred_fallthru
    _
  %v4 = vld [vmem:[%s0] ss:$0 sm:$0xff]
  %5 = vst [vmem:[%s1] sm:$0xff] %v4

// kernel: tile.19
$region0: #{tile.19}
  %s0 = inlined_call_operand.vmem [shape: f32[5,16], index: 0, kind: input, shape index: {}]
  %s1 = inlined_call_operand.vmem [shape: f32[1,80], index: 1, kind: output, shape index: {}]
  $region1: #{tile.19} parent=0
    #allocation0 [shape = 'u8[4096]{0}', space=vmem, size = 0x1000, scoped, tag = 'scoped mem for output reshape']
    %v2 = vld [vmem:[%s0] sm:$0x1]
    %vm3 = vcmask 130048
    %4 = vst.msk [vmem:[#allocation0] sm:$0x1] %vm3, %v2
    %s5 = scalar_lea.vmem %s0, 4
    %v6 = vld [vmem:[%s5] sm:$0x1]
    %7 = vrot.lane.b32.xlu0 %v6, 64
    %v8 = vpop.permute.xlu0 %7
    %vm9 = vcmask 654848
    %10 = vst.msk [vmem:[#allocation0] sm:$0x1] %vm9, %v8
    %s11 = scalar_lea.vmem %s0, 3
    %v12 = vld [vmem:[%s11] sm:$0x1]
    %13 = vrot.lane.b32.xlu0 %v12, 48
    %v14 = vpop.permute.xlu0 %13
    %vm15 = vcmask 523648
    %16 = vst.msk [vmem:[#allocation0] sm:$0x1] %vm15, %v14
    %s17 = scalar_lea.vmem %s0, 2
    %v18 = vld [vmem:[%s17] sm:$0x1]
    %19 = vrot.lane.b32.xlu0 %v18, 32
    %v20 = vpop.permute.xlu0 %19
    %vm21 = vcmask 392448
    %22 = vst.msk [vmem:[#allocation0] sm:$0x1] %vm21, %v20
    %s23 = scalar_lea.vmem %s0, 1
    %v24 = vld [vmem:[%s23] sm:$0x1]
    %25 = vrot.lane.b32.xlu0 %v24, 16
    %v26 = vpop.permute.xlu0 %25
    %vm27 = vcmask 261248
    %28 = vst.msk [vmem:[#allocation0] sm:$0x1] %vm27, %v26
    %s30 = ssub.s32 2, 1
    %v31 = vld [vmem:[#allocation0] sm:%s30]
    %s33 = ssub.s32 2, 1
    %34 = vst [vmem:[%s1] sm:%s33] %v31

// kernel: lenet5_forward.1
$region0: #{lenet5_forward.1}
  #allocation0 [shape = 'u32[]', space=smem, size = 0x4, offset = 0x4, fixed_abs, tag = 'smem constant byte address 0x4 - core index']
  #allocation1 [shape = 'u32[72,128]{1,0:T(1,128)}', space=vmem, size = 0x9000, scoped, tag = 'internal scratch']
  %s0 = inlined_call_operand.vmem [shape: bf16[2,16,7,175], index: 0, kind: input, shape index: {}]
  %s1 = inlined_call_operand.vmem [shape: bf16[175,42], index: 1, kind: input, shape index: {}]
  %s2 = inlined_call_operand.vmem [shape: f32[1,42], index: 2, kind: input, shape index: {}]
  %s3 = inlined_call_operand.vmem [shape: bf16[5,5,30,80], index: 3, kind: input, shape index: {}]
  %s4 = inlined_call_operand.vmem [shape: f32[1,80], index: 4, kind: input, shape index: {}]
  %s5 = inlined_call_operand.vmem [shape: bf16[5,80,120], index: 5, kind: input, shape index: {}]
  %s6 = inlined_call_operand.vmem [shape: f32[1,120], index: 6, kind: input, shape index: {}]
  %s7 = inlined_call_operand.vmem [shape: bf16[120,84], index: 7, kind: input, shape index: {}]
  %s8 = inlined_call_operand.vmem [shape: f32[1,84], index: 8, kind: input, shape index: {}]
  %s9 = inlined_call_operand.vmem [shape: bf16[84,10], index: 9, kind: input, shape index: {}]
  %s10 = inlined_call_operand.vmem [shape: f32[1,10], index: 10, kind: input, shape index: {}]
  %s11 = inlined_call_operand.hbm [shape: f32[2,1,10], index: 11, kind: output, shape index: {}]
  %s12 = sld [smem:[#allocation0]]
  $region77: #{lenet5_forward.1} parent=0
    _
  %s14 = ssub.s32 1, %s12
  %s15 = scalar_select 0, %s14, %s12
  $region1: #{lenet5_forward.1} parent=0
    #allocation2 [shape = 'u8[1024]{0}', space=vmem, size = 0x400, scoped, tag = 'output window, operand 0']
    #allocation3 [shape = 's32[2]{0}', space=sflag, size = 0x8, scoped, tag = 'scoped memory for lenet5_forward.1']
    %16 = vsyncpa [#allocation3], 0
    %s17 = scalar_lea.sflag [#allocation3], 1
    %18 = vsyncpa %s17, 0
    loop: start=0, step=1, limit=4
    $region2: #{lenet5_forward.1} parent=1 // loop_pre_header
      _
    $region3: #{lenet5_forward.1} parent=1 // loop_header
      %s20 = sphi 0, %s24
      %p21 = scmp.ge.s32.totalorder %s20, 4
      %s30 = sphi 0, %s32
      %s33 = sphi 0, %s30
      %s34 = sphi 0, %s33
      %s50 = sphi 0, %s34
      %s54 = sphi 0, %s54
      %s56 = sphi 0, %s54
      %s57 = sphi 0, %s56
      %s71 = sphi 0, %s57
      %s75 = sphi 0, %s75
      %s77 = sphi 0, %s75
      %s78 = sphi 0, %s77
      %s92 = sphi 0, %s78
      %s96 = sphi 0, %s96
      %s98 = sphi 0, %s96
      %s99 = sphi 0, %s98
      %s113 = sphi 0, %s99
      %s117 = sphi 0, %s117
      %s119 = sphi 0, %s117
      %s120 = sphi 0, %s119
      %s134 = sphi 0, %s120
      %s138 = sphi 0, %s138
      %s140 = sphi 0, %s138
      %s141 = sphi 0, %s140
      %s155 = sphi 0, %s141
      %s159 = sphi 0, %s159
      %s161 = sphi 0, %s159
      %s162 = sphi 0, %s161
      %s176 = sphi 0, %s162
      %s180 = sphi 0, %s180
      %s182 = sphi 0, %s180
      %s183 = sphi 0, %s182
      %s197 = sphi 0, %s183
      %s201 = sphi 0, %s201
      %s203 = sphi 0, %s201
      %s204 = sphi 0, %s203
      %s218 = sphi 0, %s204
      %s222 = sphi 0, %s222
      %s224 = sphi 0, %s222
      %s225 = sphi 0, %s224
      %s239 = sphi 0, %s225
      %s243 = sphi 0, %s243
      %s245 = sphi 0, %s243
      %s246 = sphi 0, %s245
      %s260 = sphi 0, %s246
      %s266 = sphi 0, %s268
      %s269 = sphi 0, %s266
      %s270 = sphi 0, %s269
      %s286 = sphi 0, %s270
    $region4: #{lenet5_forward.1} parent=1 // loop_header_branch
      %23 = sbr.rel (%p21) target = $region8
    $region5: #{lenet5_forward.1} parent=1 // loop_body
      %s25 = ssub.s32 %s20, 1
      %s26 = ssub.s32 %s20, 2
      %s27 = sadd.s32 %s20, 1
      %s28 = ssub.s32 %s20, %s27
      %p29 = scmp.eq.s32.totalorder %s28, 0
      %s31 = sadd.s32 %s30, 1
      %s32 = scalar_select %p29, %s30, %s31
      %p35 = pneg %p29
      %p36 = scmp.eq.s32.totalorder %s20, 1
      %p37 = por %p35, %p36
      %p38 = scmp.ne.s32.totalorder %s30, %s33
      %p39 = scmp.eq.s32.totalorder %s20, 0
      %p40 = por %p38, %p39
      %p41 = scmp.ne.s32.totalorder %s30, %s33
      %p42 = scmp.eq.s32.totalorder %s25, 1
      %p43 = por %p41, %p42
      %p44 = scmp.ne.s32.totalorder %s33, %s34
      %p45 = scmp.eq.s32.totalorder %s25, 0
      %p46 = por %p44, %p45
      %p47 = scmp.ne.s32.totalorder %s33, %s34
      %p48 = scmp.eq.s32.totalorder %s26, 1
      %p49 = por %p47, %p48
      %p51 = scmp.ne.s32.totalorder %s34, %s50
      %p52 = scmp.eq.s32.totalorder %s26, 0
      %p53 = por %p51, %p52
      %s55 = sadd.s32 %s54, 1
      %p58 = scmp.eq.s32.totalorder %s20, 1
      %p59 = scmp.ne.s32.totalorder %s54, %s56
      %p60 = scmp.eq.s32.totalorder %s20, 0
      %p61 = por %p59, %p60
      %p62 = scmp.ne.s32.totalorder %s54, %s56
      %p63 = scmp.eq.s32.totalorder %s25, 1
      %p64 = por %p62, %p63
      %p65 = scmp.ne.s32.totalorder %s56, %s57
      %p66 = scmp.eq.s32.totalorder %s25, 0
      %p67 = por %p65, %p66
      %p68 = scmp.ne.s32.totalorder %s56, %s57
      %p69 = scmp.eq.s32.totalorder %s26, 1
      %p70 = por %p68, %p69
      %p72 = scmp.ne.s32.totalorder %s57, %s71
      %p73 = scmp.eq.s32.totalorder %s26, 0
      %p74 = por %p72, %p73
      %s76 = sadd.s32 %s75, 1
      %p79 = scmp.eq.s32.totalorder %s20, 1
      %p80 = scmp.ne.s32.totalorder %s75, %s77
      %p81 = scmp.eq.s32.totalorder %s20, 0
      %p82 = por %p80, %p81
      %p83 = scmp.ne.s32.totalorder %s75, %s77
      %p84 = scmp.eq.s32.totalorder %s25, 1
      %p85 = por %p83, %p84
      %p86 = scmp.ne.s32.totalorder %s77, %s78
      %p87 = scmp.eq.s32.totalorder %s25, 0
      %p88 = por %p86, %p87
      %p89 = scmp.ne.s32.totalorder %s77, %s78
      %p90 = scmp.eq.s32.totalorder %s26, 1
      %p91 = por %p89, %p90
      %p93 = scmp.ne.s32.totalorder %s78, %s92
      %p94 = scmp.eq.s32.totalorder %s26, 0
      %p95 = por %p93, %p94
      %s97 = sadd.s32 %s96, 1
      %p100 = scmp.eq.s32.totalorder %s20, 1
      %p101 = scmp.ne.s32.totalorder %s96, %s98
      %p102 = scmp.eq.s32.totalorder %s20, 0
      %p103 = por %p101, %p102
      %p104 = scmp.ne.s32.totalorder %s96, %s98
      %p105 = scmp.eq.s32.totalorder %s25, 1
      %p106 = por %p104, %p105
      %p107 = scmp.ne.s32.totalorder %s98, %s99
      %p108 = scmp.eq.s32.totalorder %s25, 0
      %p109 = por %p107, %p108
      %p110 = scmp.ne.s32.totalorder %s98, %s99
      %p111 = scmp.eq.s32.totalorder %s26, 1
      %p112 = por %p110, %p111
      %p114 = scmp.ne.s32.totalorder %s99, %s113
      %p115 = scmp.eq.s32.totalorder %s26, 0
      %p116 = por %p114, %p115
      %s118 = sadd.s32 %s117, 1
      %p121 = scmp.eq.s32.totalorder %s20, 1
      %p122 = scmp.ne.s32.totalorder %s117, %s119
      %p123 = scmp.eq.s32.totalorder %s20, 0
      %p124 = por %p122, %p123
      %p125 = scmp.ne.s32.totalorder %s117, %s119
      %p126 = scmp.eq.s32.totalorder %s25, 1
      %p127 = por %p125, %p126
      %p128 = scmp.ne.s32.totalorder %s119, %s120
      %p129 = scmp.eq.s32.totalorder %s25, 0
      %p130 = por %p128, %p129
      %p131 = scmp.ne.s32.totalorder %s119, %s120
      %p132 = scmp.eq.s32.totalorder %s26, 1
      %p133 = por %p131, %p132
      %p135 = scmp.ne.s32.totalorder %s120, %s134
      %p136 = scmp.eq.s32.totalorder %s26, 0
      %p137 = por %p135, %p136
      %s139 = sadd.s32 %s138, 1
      %p142 = scmp.eq.s32.totalorder %s20, 1
      %p143 = scmp.ne.s32.totalorder %s138, %s140
      %p144 = scmp.eq.s32.totalorder %s20, 0
      %p145 = por %p143, %p144
      %p146 = scmp.ne.s32.totalorder %s138, %s140
      %p147 = scmp.eq.s32.totalorder %s25, 1
      %p148 = por %p146, %p147
      %p149 = scmp.ne.s32.totalorder %s140, %s141
      %p150 = scmp.eq.s32.totalorder %s25, 0
      %p151 = por %p149, %p150
      %p152 = scmp.ne.s32.totalorder %s140, %s141
      %p153 = scmp.eq.s32.totalorder %s26, 1
      %p154 = por %p152, %p153
      %p156 = scmp.ne.s32.totalorder %s141, %s155
      %p157 = scmp.eq.s32.totalorder %s26, 0
      %p158 = por %p156, %p157
      %s160 = sadd.s32 %s159, 1
      %p163 = scmp.eq.s32.totalorder %s20, 1
      %p164 = scmp.ne.s32.totalorder %s159, %s161
      %p165 = scmp.eq.s32.totalorder %s20, 0
      %p166 = por %p164, %p165
      %p167 = scmp.ne.s32.totalorder %s159, %s161
      %p168 = scmp.eq.s32.totalorder %s25, 1
      %p169 = por %p167, %p168
      %p170 = scmp.ne.s32.totalorder %s161, %s162
      %p171 = scmp.eq.s32.totalorder %s25, 0
      %p172 = por %p170, %p171
      %p173 = scmp.ne.s32.totalorder %s161, %s162
      %p174 = scmp.eq.s32.totalorder %s26, 1
      %p175 = por %p173, %p174
      %p177 = scmp.ne.s32.totalorder %s162, %s176
      %p178 = scmp.eq.s32.totalorder %s26, 0
      %p179 = por %p177, %p178
      %s181 = sadd.s32 %s180, 1
      %p184 = scmp.eq.s32.totalorder %s20, 1
      %p185 = scmp.ne.s32.totalorder %s180, %s182
      %p186 = scmp.eq.s32.totalorder %s20, 0
      %p187 = por %p185, %p186
      %p188 = scmp.ne.s32.totalorder %s180, %s182
      %p189 = scmp.eq.s32.totalorder %s25, 1
      %p190 = por %p188, %p189
      %p191 = scmp.ne.s32.totalorder %s182, %s183
      %p192 = scmp.eq.s32.totalorder %s25, 0
      %p193 = por %p191, %p192
      %p194 = scmp.ne.s32.totalorder %s182, %s183
      %p195 = scmp.eq.s32.totalorder %s26, 1
      %p196 = por %p194, %p195
      %p198 = scmp.ne.s32.totalorder %s183, %s197
      %p199 = scmp.eq.s32.totalorder %s26, 0
      %p200 = por %p198, %p199
      %s202 = sadd.s32 %s201, 1
      %p205 = scmp.eq.s32.totalorder %s20, 1
      %p206 = scmp.ne.s32.totalorder %s201, %s203
      %p207 = scmp.eq.s32.totalorder %s20, 0
      %p208 = por %p206, %p207
      %p209 = scmp.ne.s32.totalorder %s201, %s203
      %p210 = scmp.eq.s32.totalorder %s25, 1
      %p211 = por %p209, %p210
      %p212 = scmp.ne.s32.totalorder %s203, %s204
      %p213 = scmp.eq.s32.totalorder %s25, 0
      %p214 = por %p212, %p213
      %p215 = scmp.ne.s32.totalorder %s203, %s204
      %p216 = scmp.eq.s32.totalorder %s26, 1
      %p217 = por %p215, %p216
      %p219 = scmp.ne.s32.totalorder %s204, %s218
      %p220 = scmp.eq.s32.totalorder %s26, 0
      %p221 = por %p219, %p220
      %s223 = sadd.s32 %s222, 1
      %p226 = scmp.eq.s32.totalorder %s20, 1
      %p227 = scmp.ne.s32.totalorder %s222, %s224
      %p228 = scmp.eq.s32.totalorder %s20, 0
      %p229 = por %p227, %p228
      %p230 = scmp.ne.s32.totalorder %s222, %s224
      %p231 = scmp.eq.s32.totalorder %s25, 1
      %p232 = por %p230, %p231
      %p233 = scmp.ne.s32.totalorder %s224, %s225
      %p234 = scmp.eq.s32.totalorder %s25, 0
      %p235 = por %p233, %p234
      %p236 = scmp.ne.s32.totalorder %s224, %s225
      %p237 = scmp.eq.s32.totalorder %s26, 1
      %p238 = por %p236, %p237
      %p240 = scmp.ne.s32.totalorder %s225, %s239
      %p241 = scmp.eq.s32.totalorder %s26, 0
      %p242 = por %p240, %p241
      %s244 = sadd.s32 %s243, 1
      %p247 = scmp.eq.s32.totalorder %s20, 1
      %p248 = scmp.ne.s32.totalorder %s243, %s245
      %p249 = scmp.eq.s32.totalorder %s20, 0
      %p250 = por %p248, %p249
      %p251 = scmp.ne.s32.totalorder %s243, %s245
      %p252 = scmp.eq.s32.totalorder %s25, 1
      %p253 = por %p251, %p252
      %p254 = scmp.ne.s32.totalorder %s245, %s246
      %p255 = scmp.eq.s32.totalorder %s25, 0
      %p256 = por %p254, %p255
      %p257 = scmp.ne.s32.totalorder %s245, %s246
      %p258 = scmp.eq.s32.totalorder %s26, 1
      %p259 = por %p257, %p258
      %p261 = scmp.ne.s32.totalorder %s246, %s260
      %p262 = scmp.eq.s32.totalorder %s26, 0
      %p263 = por %p261, %p262
      %s264 = ssub.s32 %s20, %s27
      %p265 = scmp.eq.s32.totalorder %s264, 0
      %s267 = sadd.s32 %s266, 1
      %s268 = scalar_select %p265, %s266, %s267
      %p271 = pneg %p265
      %p272 = scmp.eq.s32.totalorder %s20, 1
      %p273 = por %p271, %p272
      %p274 = scmp.ne.s32.totalorder %s266, %s269
      %p275 = scmp.eq.s32.totalorder %s20, 0
      %p276 = por %p274, %p275
      %p277 = scmp.ne.s32.totalorder %s266, %s269
      %p278 = scmp.eq.s32.totalorder %s25, 1
      %p279 = por %p277, %p278
      %p280 = scmp.ne.s32.totalorder %s269, %s270
      %p281 = scmp.eq.s32.totalorder %s25, 0
      %p282 = por %p280, %p281
      %p283 = scmp.ne.s32.totalorder %s269, %s270
      %p284 = scmp.eq.s32.totalorder %s26, 1
      %p285 = por %p283, %p284
      %p287 = scmp.ne.s32.totalorder %s270, %s286
      %p288 = scmp.eq.s32.totalorder %s26, 0
      %p289 = por %p287, %p288
      %p290 = scmp.le.s32.totalorder 1, %s20
      %p291 = scmp.lt.s32.totalorder %s20, 3
      %p292 = pnand %p290, %p291
      %p293 = pneg %p292
      // Predicated region
      $region9: #{lenet5_forward.1} parent=5 // pred_check
        _
      $region10: #{lenet5_forward.1} parent=5 // pred_check_branch
        %295 = sbr.rel (%p292) target = $region12
      $region11: #{lenet5_forward.1} parent=5 // pred_region
        %s296 = ssub.s32 %s20, 1
        // Predicated region
        $region13: #{lenet5_forward.1} parent=11 // pred_check
          %p297 = pneg %p67
        $region14: #{lenet5_forward.1} parent=11 // pred_check_branch
          %299 = sbr.rel (%p297) target = $region16
        $region15: #{lenet5_forward.1} parent=11 // pred_region
          _
        $region16: #{lenet5_forward.1} parent=11 // pred_fallthru
          _
        // Predicated region
        $region17: #{lenet5_forward.1} parent=11 // pred_check
          %p300 = pneg %p88
        $region18: #{lenet5_forward.1} parent=11 // pred_check_branch
          %302 = sbr.rel (%p300) target = $region20
        $region19: #{lenet5_forward.1} parent=11 // pred_region
          _
        $region20: #{lenet5_forward.1} parent=11 // pred_fallthru
          _
        // Predicated region
        $region21: #{lenet5_forward.1} parent=11 // pred_check
          %p303 = pneg %p109
        $region22: #{lenet5_forward.1} parent=11 // pred_check_branch
          %305 = sbr.rel (%p303) target = $region24
        $region23: #{lenet5_forward.1} parent=11 // pred_region
          _
        $region24: #{lenet5_forward.1} parent=11 // pred_fallthru
          _
        // Predicated region
        $region25: #{lenet5_forward.1} parent=11 // pred_check
          %p306 = pneg %p130
        $region26: #{lenet5_forward.1} parent=11 // pred_check_branch
          %308 = sbr.rel (%p306) target = $region28
        $region27: #{lenet5_forward.1} parent=11 // pred_region
          _
        $region28: #{lenet5_forward.1} parent=11 // pred_fallthru
          _
        // Predicated region
        $region29: #{lenet5_forward.1} parent=11 // pred_check
          %p309 = pneg %p151
        $region30: #{lenet5_forward.1} parent=11 // pred_check_branch
          %311 = sbr.rel (%p309) target = $region32
        $region31: #{lenet5_forward.1} parent=11 // pred_region
          _
        $region32: #{lenet5_forward.1} parent=11 // pred_fallthru
          _
        // Predicated region
        $region33: #{lenet5_forward.1} parent=11 // pred_check
          %p312 = pneg %p172
        $region34: #{lenet5_forward.1} parent=11 // pred_check_branch
          %314 = sbr.rel (%p312) target = $region36
        $region35: #{lenet5_forward.1} parent=11 // pred_region
          _
        $region36: #{lenet5_forward.1} parent=11 // pred_fallthru
          _
        // Predicated region
        $region37: #{lenet5_forward.1} parent=11 // pred_check
          %p315 = pneg %p193
        $region38: #{lenet5_forward.1} parent=11 // pred_check_branch
          %317 = sbr.rel (%p315) target = $region40
        $region39: #{lenet5_forward.1} parent=11 // pred_region
          _
        $region40: #{lenet5_forward.1} parent=11 // pred_fallthru
          _
        // Predicated region
        $region41: #{lenet5_forward.1} parent=11 // pred_check
          %p318 = pneg %p214
        $region42: #{lenet5_forward.1} parent=11 // pred_check_branch
          %320 = sbr.rel (%p318) target = $region44
        $region43: #{lenet5_forward.1} parent=11 // pred_region
          _
        $region44: #{lenet5_forward.1} parent=11 // pred_fallthru
          _
        // Predicated region
        $region45: #{lenet5_forward.1} parent=11 // pred_check
          %p321 = pneg %p235
        $region46: #{lenet5_forward.1} parent=11 // pred_check_branch
          %323 = sbr.rel (%p321) target = $region48
        $region47: #{lenet5_forward.1} parent=11 // pred_region
          _
        $region48: #{lenet5_forward.1} parent=11 // pred_fallthru
          _
        // Predicated region
        $region49: #{lenet5_forward.1} parent=11 // pred_check
          %p324 = pneg %p256
        $region50: #{lenet5_forward.1} parent=11 // pred_check_branch
          %326 = sbr.rel (%p324) target = $region52
        $region51: #{lenet5_forward.1} parent=11 // pred_region
          _
        $region52: #{lenet5_forward.1} parent=11 // pred_fallthru
          _
      $region12: #{lenet5_forward.1} parent=5 // pred_fallthru
        _
      %p327 = scmp.lt.s32.totalorder %s20, 2
      // Predicated region
      $region53: #{lenet5_forward.1} parent=5 // pred_check
        %p328 = pneg %p327
      $region54: #{lenet5_forward.1} parent=5 // pred_check_branch
        %330 = sbr.rel (%p328) target = $region56
      $region55: #{lenet5_forward.1} parent=5 // pred_region
        // Predicated region
        $region57: #{lenet5_forward.1} parent=55 // pred_check
          %p331 = pneg %p40
        $region58: #{lenet5_forward.1} parent=55 // pred_check_branch
          %333 = sbr.rel (%p331) target = $region60
        $region59: #{lenet5_forward.1} parent=55 // pred_region
          %p334 = scmp.lt.s32.totalorder %s20, 1
          %s335 = scalar_select %p334, %s20, 1
          %s336 = smul.addr %s335, 32
          %s337 = smul.addr %s336, 4
          %s338 = scalar_lea.vmem %s0, %s337
        $region60: #{lenet5_forward.1} parent=55 // pred_fallthru
          _
      $region56: #{lenet5_forward.1} parent=5 // pred_fallthru
        _
      %p339 = scmp.le.s32.totalorder 1, %s20
      %p340 = scmp.lt.s32.totalorder %s20, 3
      %p341 = pnand %p339, %p340
      %p342 = pneg %p341
      // Predicated region
      $region61: #{lenet5_forward.1} parent=5 // pred_check
        _
      $region62: #{lenet5_forward.1} parent=5 // pred_check_branch
        %344 = sbr.rel (%p341) target = $region64
      $region63: #{lenet5_forward.1} parent=5 // pred_region
        %s345 = ssub.s32 %s20, 1
        %p346 = scmp.lt.s32.totalorder %s25, 1
        %s347 = scalar_select %p346, %s25, 1
        %s348 = smul.addr %s347, 32
        %s349 = smul.addr %s348, 4
        %s350 = scalar_lea.vmem %s0, %s349
        %p351 = pneg %p46
        %p352 = pneg %p43
        %p353 = pneg %p67
        %p354 = pneg %p64
        %p355 = pneg %p88
        %p356 = pneg %p85
        %p357 = pneg %p109
        %p358 = pneg %p106
        %p359 = pneg %p130
        %p360 = pneg %p127
        %p361 = pneg %p151
        %p362 = pneg %p148
        %p363 = pneg %p172
        %p364 = pneg %p169
        %p365 = pneg %p193
        %p366 = pneg %p190
        %p367 = pneg %p214
        %p368 = pneg %p211
        %p369 = pneg %p235
        %p370 = pneg %p232
        %p371 = pneg %p256
        %p372 = pneg %p253
        %p373 = pneg %p282
        %p374 = pneg %p279
        %s375 = sand.u32 %s269, 1
        %s376 = scalar_lea.sflag [#allocation3], %s375
        %s377 = sand.u32 %s269, 1
        %s378 = scalar_lea.vmem [#allocation2], %s377
        %p379 = scmp.lt.s32.totalorder %s25, 1
        %s380 = scalar_select %p379, %s25, 1
        %s381 = smul.addr %s380, 32
        %s382 = smul.addr %s381, 4
        %s383 = scalar_lea.vmem %s0, %s382
        %v385 = vld [vmem:[%s1] sm:$0xf]
        %v386 = vld [vmem:[%s1 + $0x4] sm:$0xf]
        %v387 = vld [vmem:[%s1 + $0x8] sm:$0xf]
        %v388 = vld [vmem:[%s1 + $0xc] sm:$0xf]
        %v389 = vld [vmem:[%s1 + $0x10] sm:$0xf]
        %v390 = vld [vmem:[%s1 + $0x14] sm:$0xf]
        %v391 = vld [vmem:[%s1 + $0x18] sm:$0xf]
        %v392 = vld [vmem:[%s1 + $0x1c] sm:$0xf]
        %v393 = vld [vmem:[%s1 + $0x20] sm:$0xf]
        %v394 = vld [vmem:[%s1 + $0x24] sm:$0xf]
        %v395 = vld [vmem:[%s1 + $0x28] sm:$0xf]
        %v396 = vld [vmem:[%s1 + $0x2c] sm:$0xf]
        %v397 = vld [vmem:[%s1 + $0x30] sm:$0xf]
        %v398 = vld [vmem:[%s1 + $0x34] sm:$0xf]
        %v399 = vld [vmem:[%s1 + $0x38] sm:$0xf]
        %v400 = vld [vmem:[%s1 + $0x3c] sm:$0xf]
        %v401 = vld [vmem:[%s1 + $0x40] sm:$0xf]
        %v402 = vld [vmem:[%s1 + $0x44] sm:$0xf]
        %v403 = vld [vmem:[%s1 + $0x48] sm:$0xf]
        %v404 = vld [vmem:[%s1 + $0x4c] sm:$0xf]
        %v405 = vld [vmem:[%s1 + $0x50] sm:$0xf]
        %v406 = vld [vmem:[%s1 + $0x54] sm:$0xf]
        %v407 = vld [vmem:[%s383] sm:$0xff]
        %v409 = vunpack.c.l.b16 %v407
        %v410 = vunpack.c.h.b16 %v407
        %v411 = vpack.c.b16 %v409, %v409
        %v412 = vpack.c.b16 %v410, %v410
        %v436 = vunpack.c.l.b16 %v385
        %v437 = vunpack.c.l.b16 %v386
        %v438 = vunpack.c.l.b16 %v387
        %v439 = vunpack.c.l.b16 %v388
        %v440 = vunpack.c.l.b16 %v389
        %v441 = vunpack.c.l.b16 %v390
        %v442 = vunpack.c.l.b16 %v391
        %v443 = vunpack.c.l.b16 %v392
        %v444 = vunpack.c.l.b16 %v393
        %v445 = vunpack.c.l.b16 %v394
        %v446 = vunpack.c.l.b16 %v395
        %v447 = vunpack.c.l.b16 %v396
        %v448 = vunpack.c.l.b16 %v397
        %v449 = vunpack.c.l.b16 %v398
        %v450 = vunpack.c.l.b16 %v399
        %v451 = vunpack.c.l.b16 %v400
        %v452 = vunpack.c.l.b16 %v401
        %v453 = vunpack.c.l.b16 %v402
        %v454 = vunpack.c.l.b16 %v403
        %v455 = vunpack.c.l.b16 %v404
        %v456 = vunpack.c.l.b16 %v405
        %v457 = vunpack.c.l.b16 %v406
        %v458 = vpack.c.b16 %v437, %v436
        %v459 = vpack.c.b16 %v439, %v438
        %v460 = vpack.c.b16 %v441, %v440
        %v461 = vpack.c.b16 %v443, %v442
        %v462 = vpack.c.b16 %v445, %v444
        %v463 = vpack.c.b16 %v447, %v446
        %v464 = vpack.c.b16 %v449, %v448
        %v465 = vpack.c.b16 %v451, %v450
        %v466 = vpack.c.b16 %v453, %v452
        %v467 = vpack.c.b16 %v455, %v454
        %v468 = vpack.c.b16 %v457, %v456
        %vm479 = vcmask 384000
        %v481 = vsel %vm479, %v412, 0
        %vm483 = vcmask 1046528
        %vm484 = vcmask 1047552
        %v485 = vsel %vm483, 4294967295, 65535
        %v486 = vsel %vm484, %v485, 0
        %v488 = vand.u32 %v468, %v486
        %490 = vmatpush.bf16.msra.mxu0 %v465
        %491 = vmatpush.bf16.msra.mxu0 %v464
        %492 = vmatpush.bf16.msra.mxu0 %v463
        %493 = vmatpush.bf16.msra.mxu0 %v462
        %494 = vmatpush.bf16.msra.mxu0 %v461
        %495 = vmatpush.bf16.msra.mxu0 %v460
        %496 = vmatpush.bf16.msra.mxu0 %v459
        %497 = vmatpush.bf16.msra.mxu0 %v458
        %498 = vmatmul.bf16.gmra.mxu0 %v411
        %v499 = vpop.f32.mrf.mxu0
        %v500 = vadd.f32 0.0, %v499
        %v501 = vpop.f32.mrf.mxu0
        %502 = vdwg.mxu0
        %503 = vmatpush.bf16.msra.mxu0 0
        %504 = vmatpush.bf16.msra.mxu0 0
        %505 = vmatpush.bf16.msra.mxu0 0
        %506 = vmatpush.bf16.msra.mxu0 0
        %507 = vmatpush.bf16.msra.mxu0 0
        %508 = vmatpush.bf16.msra.mxu0 %v488
        %509 = vmatpush.bf16.msra.mxu0 %v467
        %510 = vmatpush.bf16.msra.mxu0 %v466
        %511 = vmatmul.bf16.gmra.mxu0 %v481
        %v512 = vpop.f32.mrf.mxu0
        %v513 = vadd.f32 %v500, %v512
        %v514 = vpop.f32.mrf.mxu0
        %515 = vdwg.mxu0
        %s516 = scalar_lea.vmem %s383, 8
        %v517 = vld [vmem:[%s516] sm:$0xff]
        %v519 = vunpack.c.l.b16 %v517
        %v520 = vunpack.c.h.b16 %v517
        %v521 = vpack.c.b16 %v519, %v519
        %v522 = vpack.c.b16 %v520, %v520
        %v525 = vsel %vm479, %v522, 0
        %527 = vmatpush.bf16.msra.mxu0 %v465
        %528 = vmatpush.bf16.msra.mxu0 %v464
        %529 = vmatpush.bf16.msra.mxu0 %v463
        %530 = vmatpush.bf16.msra.mxu0 %v462
        %531 = vmatpush.bf16.msra.mxu0 %v461
        %532 = vmatpush.bf16.msra.mxu0 %v460
        %533 = vmatpush.bf16.msra.mxu0 %v459
        %534 = vmatpush.bf16.msra.mxu0 %v458
        %535 = vmatmul.bf16.gmra.mxu0 %v521
        %v536 = vpop.f32.mrf.mxu0
        %v537 = vadd.f32 0.0, %v536
        %v538 = vpop.f32.mrf.mxu0
        %539 = vdwg.mxu0
        %540 = vmatpush.bf16.msra.mxu0 0
        %541 = vmatpush.bf16.msra.mxu0 0
        %542 = vmatpush.bf16.msra.mxu0 0
        %543 = vmatpush.bf16.msra.mxu0 0
        %544 = vmatpush.bf16.msra.mxu0 0
        %545 = vmatpush.bf16.msra.mxu0 %v488
        %546 = vmatpush.bf16.msra.mxu0 %v467
        %547 = vmatpush.bf16.msra.mxu0 %v466
        %548 = vmatmul.bf16.gmra.mxu0 %v525
        %v549 = vpop.f32.mrf.mxu0
        %v550 = vadd.f32 %v537, %v549
        %v551 = vpop.f32.mrf.mxu0
        %552 = vdwg.mxu0
        %s553 = scalar_lea.vmem %s383, 16
        %v554 = vld [vmem:[%s553] sm:$0xff]
        %v556 = vunpack.c.l.b16 %v554
        %v557 = vunpack.c.h.b16 %v554
        %v558 = vpack.c.b16 %v556, %v556
        %v559 = vpack.c.b16 %v557, %v557
        %v562 = vsel %vm479, %v559, 0
        %564 = vmatpush.bf16.msra.mxu0 %v465
        %565 = vmatpush.bf16.msra.mxu0 %v464
        %566 = vmatpush.bf16.msra.mxu0 %v463
        %567 = vmatpush.bf16.msra.mxu0 %v462
        %568 = vmatpush.bf16.msra.mxu0 %v461
        %569 = vmatpush.bf16.msra.mxu0 %v460
        %570 = vmatpush.bf16.msra.mxu0 %v459
        %571 = vmatpush.bf16.msra.mxu0 %v458
        %572 = vmatmul.bf16.gmra.mxu0 %v558
        %v573 = vpop.f32.mrf.mxu0
        %v574 = vadd.f32 0.0, %v573
        %v575 = vpop.f32.mrf.mxu0
        %576 = vdwg.mxu0
        %577 = vmatpush.bf16.msra.mxu0 0
        %578 = vmatpush.bf16.msra.mxu0 0
        %579 = vmatpush.bf16.msra.mxu0 0
        %580 = vmatpush.bf16.msra.mxu0 0
        %581 = vmatpush.bf16.msra.mxu0 0
        %582 = vmatpush.bf16.msra.mxu0 %v488
        %583 = vmatpush.bf16.msra.mxu0 %v467
        %584 = vmatpush.bf16.msra.mxu0 %v466
        %585 = vmatmul.bf16.gmra.mxu0 %v562
        %v586 = vpop.f32.mrf.mxu0
        %v587 = vadd.f32 %v574, %v586
        %v588 = vpop.f32.mrf.mxu0
        %589 = vdwg.mxu0
        %s590 = scalar_lea.vmem %s383, 24
        %v591 = vld [vmem:[%s590] sm:$0xff]
        %v593 = vunpack.c.l.b16 %v591
        %v594 = vunpack.c.h.b16 %v591
        %v595 = vpack.c.b16 %v593, %v593
        %v596 = vpack.c.b16 %v594, %v594
        %v599 = vsel %vm479, %v596, 0
        %601 = vmatpush.bf16.msra.mxu0 %v465
        %602 = vmatpush.bf16.msra.mxu0 %v464
        %603 = vmatpush.bf16.msra.mxu0 %v463
        %604 = vmatpush.bf16.msra.mxu0 %v462
        %605 = vmatpush.bf16.msra.mxu0 %v461
        %606 = vmatpush.bf16.msra.mxu0 %v460
        %607 = vmatpush.bf16.msra.mxu0 %v459
        %608 = vmatpush.bf16.msra.mxu0 %v458
        %609 = vmatmul.bf16.gmra.mxu0 %v595
        %v610 = vpop.f32.mrf.mxu0
        %v611 = vadd.f32 0.0, %v610
        %v612 = vpop.f32.mrf.mxu0
        %613 = vdwg.mxu0
        %614 = vmatpush.bf16.msra.mxu0 0
        %615 = vmatpush.bf16.msra.mxu0 0
        %616 = vmatpush.bf16.msra.mxu0 0
        %617 = vmatpush.bf16.msra.mxu0 0
        %618 = vmatpush.bf16.msra.mxu0 0
        %619 = vmatpush.bf16.msra.mxu0 %v488
        %620 = vmatpush.bf16.msra.mxu0 %v467
        %621 = vmatpush.bf16.msra.mxu0 %v466
        %622 = vmatmul.bf16.gmra.mxu0 %v599
        %v623 = vpop.f32.mrf.mxu0
        %v624 = vadd.f32 %v611, %v623
        %v625 = vpop.f32.mrf.mxu0
        %626 = vdwg.mxu0
        %s627 = scalar_lea.vmem %s383, 32
        %v628 = vld [vmem:[%s627] sm:$0xff]
        %v630 = vunpack.c.l.b16 %v628
        %v631 = vunpack.c.h.b16 %v628
        %v632 = vpack.c.b16 %v630, %v630
        %v633 = vpack.c.b16 %v631, %v631
        %v636 = vsel %vm479, %v633, 0
        %638 = vmatpush.bf16.msra.mxu0 %v465
        %639 = vmatpush.bf16.msra.mxu0 %v464
        %640 = vmatpush.bf16.msra.mxu0 %v463
        %641 = vmatpush.bf16.msra.mxu0 %v462
        %642 = vmatpush.bf16.msra.mxu0 %v461
        %643 = vmatpush.bf16.msra.mxu0 %v460
        %644 = vmatpush.bf16.msra.mxu0 %v459
        %645 = vmatpush.bf16.msra.mxu0 %v458
        %646 = vmatmul.bf16.gmra.mxu0 %v632
        %v647 = vpop.f32.mrf.mxu0
        %v648 = vadd.f32 0.0, %v647
        %v649 = vpop.f32.mrf.mxu0
        %650 = vdwg.mxu0
        %651 = vmatpush.bf16.msra.mxu0 0
        %652 = vmatpush.bf16.msra.mxu0 0
        %653 = vmatpush.bf16.msra.mxu0 0
        %654 = vmatpush.bf16.msra.mxu0 0
        %655 = vmatpush.bf16.msra.mxu0 0
        %656 = vmatpush.bf16.msra.mxu0 %v488
        %657 = vmatpush.bf16.msra.mxu0 %v467
        %658 = vmatpush.bf16.msra.mxu0 %v466
        %659 = vmatmul.bf16.gmra.mxu0 %v636
        %v660 = vpop.f32.mrf.mxu0
        %v661 = vadd.f32 %v648, %v660
        %v662 = vpop.f32.mrf.mxu0
        %663 = vdwg.mxu0
        %s664 = scalar_lea.vmem %s383, 40
        %v665 = vld [vmem:[%s664] sm:$0xff]
        %v667 = vunpack.c.l.b16 %v665
        %v668 = vunpack.c.h.b16 %v665
        %v669 = vpack.c.b16 %v667, %v667
        %v670 = vpack.c.b16 %v668, %v668
        %v673 = vsel %vm479, %v670, 0
        %675 = vmatpush.bf16.msra.mxu0 %v465
        %676 = vmatpush.bf16.msra.mxu0 %v464
        %677 = vmatpush.bf16.msra.mxu0 %v463
        %678 = vmatpush.bf16.msra.mxu0 %v462
        %679 = vmatpush.bf16.msra.mxu0 %v461
        %680 = vmatpush.bf16.msra.mxu0 %v460
        %681 = vmatpush.bf16.msra.mxu0 %v459
        %682 = vmatpush.bf16.msra.mxu0 %v458
        %683 = vmatmul.bf16.gmra.mxu0 %v669
        %v684 = vpop.f32.mrf.mxu0
        %v685 = vadd.f32 0.0, %v684
        %v686 = vpop.f32.mrf.mxu0
        %687 = vdwg.mxu0
        %688 = vmatpush.bf16.msra.mxu0 0
        %689 = vmatpush.bf16.msra.mxu0 0
        %690 = vmatpush.bf16.msra.mxu0 0
        %691 = vmatpush.bf16.msra.mxu0 0
        %692 = vmatpush.bf16.msra.mxu0 0
        %693 = vmatpush.bf16.msra.mxu0 %v488
        %694 = vmatpush.bf16.msra.mxu0 %v467
        %695 = vmatpush.bf16.msra.mxu0 %v466
        %696 = vmatmul.bf16.gmra.mxu0 %v673
        %v697 = vpop.f32.mrf.mxu0
        %v698 = vadd.f32 %v685, %v697
        %v699 = vpop.f32.mrf.mxu0
        %700 = vdwg.mxu0
        %s701 = scalar_lea.vmem %s383, 48
        %v702 = vld [vmem:[%s701] sm:$0xff]
        %v704 = vunpack.c.l.b16 %v702
        %v705 = vunpack.c.h.b16 %v702
        %v706 = vpack.c.b16 %v704, %v704
        %v707 = vpack.c.b16 %v705, %v705
        %v710 = vsel %vm479, %v707, 0
        %712 = vmatpush.bf16.msra.mxu0 %v465
        %713 = vmatpush.bf16.msra.mxu0 %v464
        %714 = vmatpush.bf16.msra.mxu0 %v463
        %715 = vmatpush.bf16.msra.mxu0 %v462
        %716 = vmatpush.bf16.msra.mxu0 %v461
        %717 = vmatpush.bf16.msra.mxu0 %v460
        %718 = vmatpush.bf16.msra.mxu0 %v459
        %719 = vmatpush.bf16.msra.mxu0 %v458
        %720 = vmatmul.bf16.gmra.mxu0 %v706
        %v721 = vpop.f32.mrf.mxu0
        %v722 = vadd.f32 0.0, %v721
        %v723 = vpop.f32.mrf.mxu0
        %724 = vdwg.mxu0
        %725 = vmatpush.bf16.msra.mxu0 0
        %726 = vmatpush.bf16.msra.mxu0 0
        %727 = vmatpush.bf16.msra.mxu0 0
        %728 = vmatpush.bf16.msra.mxu0 0
        %729 = vmatpush.bf16.msra.mxu0 0
        %730 = vmatpush.bf16.msra.mxu0 %v488
        %731 = vmatpush.bf16.msra.mxu0 %v467
        %732 = vmatpush.bf16.msra.mxu0 %v466
        %733 = vmatmul.bf16.gmra.mxu0 %v710
        %v734 = vpop.f32.mrf.mxu0
        %v735 = vadd.f32 %v722, %v734
        %v736 = vpop.f32.mrf.mxu0
        %737 = vdwg.mxu0
        %s738 = scalar_lea.vmem %s383, 56
        %v739 = vld [vmem:[%s738] sm:$0xff]
        %v741 = vunpack.c.l.b16 %v739
        %v742 = vunpack.c.h.b16 %v739
        %v743 = vpack.c.b16 %v741, %v741
        %v744 = vpack.c.b16 %v742, %v742
        %v747 = vsel %vm479, %v744, 0
        %749 = vmatpush.bf16.msra.mxu0 %v465
        %750 = vmatpush.bf16.msra.mxu0 %v464
        %751 = vmatpush.bf16.msra.mxu0 %v463
        %752 = vmatpush.bf16.msra.mxu0 %v462
        %753 = vmatpush.bf16.msra.mxu0 %v461
        %754 = vmatpush.bf16.msra.mxu0 %v460
        %755 = vmatpush.bf16.msra.mxu0 %v459
        %756 = vmatpush.bf16.msra.mxu0 %v458
        %757 = vmatmul.bf16.gmra.mxu0 %v743
        %v758 = vpop.f32.mrf.mxu0
        %v759 = vadd.f32 0.0, %v758
        %v760 = vpop.f32.mrf.mxu0
        %761 = vdwg.mxu0
        %762 = vmatpush.bf16.msra.mxu0 0
        %763 = vmatpush.bf16.msra.mxu0 0
        %764 = vmatpush.bf16.msra.mxu0 0
        %765 = vmatpush.bf16.msra.mxu0 0
        %766 = vmatpush.bf16.msra.mxu0 0
        %767 = vmatpush.bf16.msra.mxu0 %v488
        %768 = vmatpush.bf16.msra.mxu0 %v467
        %769 = vmatpush.bf16.msra.mxu0 %v466
        %770 = vmatmul.bf16.gmra.mxu0 %v747
        %v771 = vpop.f32.mrf.mxu0
        %v772 = vadd.f32 %v759, %v771
        %v773 = vpop.f32.mrf.mxu0
        %774 = vdwg.mxu0
        %s775 = scalar_lea.vmem %s383, 64
        %v776 = vld [vmem:[%s775] sm:$0xff]
        %v778 = vunpack.c.l.b16 %v776
        %v779 = vunpack.c.h.b16 %v776
        %v780 = vpack.c.b16 %v778, %v778
        %v781 = vpack.c.b16 %v779, %v779
        %v784 = vsel %vm479, %v781, 0
        %786 = vmatpush.bf16.msra.mxu0 %v465
        %787 = vmatpush.bf16.msra.mxu0 %v464
        %788 = vmatpush.bf16.msra.mxu0 %v463
        %789 = vmatpush.bf16.msra.mxu0 %v462
        %790 = vmatpush.bf16.msra.mxu0 %v461
        %791 = vmatpush.bf16.msra.mxu0 %v460
        %792 = vmatpush.bf16.msra.mxu0 %v459
        %793 = vmatpush.bf16.msra.mxu0 %v458
        %794 = vmatmul.bf16.gmra.mxu0 %v780
        %v795 = vpop.f32.mrf.mxu0
        %v796 = vadd.f32 0.0, %v795
        %v797 = vpop.f32.mrf.mxu0
        %798 = vdwg.mxu0
        %799 = vmatpush.bf16.msra.mxu0 0
        %800 = vmatpush.bf16.msra.mxu0 0
        %801 = vmatpush.bf16.msra.mxu0 0
        %802 = vmatpush.bf16.msra.mxu0 0
        %803 = vmatpush.bf16.msra.mxu0 0
        %804 = vmatpush.bf16.msra.mxu0 %v488
        %805 = vmatpush.bf16.msra.mxu0 %v467
        %806 = vmatpush.bf16.msra.mxu0 %v466
        %807 = vmatmul.bf16.gmra.mxu0 %v784
        %v808 = vpop.f32.mrf.mxu0
        %v809 = vadd.f32 %v796, %v808
        %v810 = vpop.f32.mrf.mxu0
        %811 = vdwg.mxu0
        %s812 = scalar_lea.vmem %s383, 72
        %v813 = vld [vmem:[%s812] sm:$0xff]
        %v815 = vunpack.c.l.b16 %v813
        %v816 = vunpack.c.h.b16 %v813
        %v817 = vpack.c.b16 %v815, %v815
        %v818 = vpack.c.b16 %v816, %v816
        %v821 = vsel %vm479, %v818, 0
        %823 = vmatpush.bf16.msra.mxu0 %v465
        %824 = vmatpush.bf16.msra.mxu0 %v464
        %825 = vmatpush.bf16.msra.mxu0 %v463
        %826 = vmatpush.bf16.msra.mxu0 %v462
        %827 = vmatpush.bf16.msra.mxu0 %v461
        %828 = vmatpush.bf16.msra.mxu0 %v460
        %829 = vmatpush.bf16.msra.mxu0 %v459
        %830 = vmatpush.bf16.msra.mxu0 %v458
        %831 = vmatmul.bf16.gmra.mxu0 %v817
        %v832 = vpop.f32.mrf.mxu0
        %v833 = vadd.f32 0.0, %v832
        %v834 = vpop.f32.mrf.mxu0
        %835 = vdwg.mxu0
        %836 = vmatpush.bf16.msra.mxu0 0
        %837 = vmatpush.bf16.msra.mxu0 0
        %838 = vmatpush.bf16.msra.mxu0 0
        %839 = vmatpush.bf16.msra.mxu0 0
        %840 = vmatpush.bf16.msra.mxu0 0
        %841 = vmatpush.bf16.msra.mxu0 %v488
        %842 = vmatpush.bf16.msra.mxu0 %v467
        %843 = vmatpush.bf16.msra.mxu0 %v466
        %844 = vmatmul.bf16.gmra.mxu0 %v821
        %v845 = vpop.f32.mrf.mxu0
        %v846 = vadd.f32 %v833, %v845
        %v847 = vpop.f32.mrf.mxu0
        %848 = vdwg.mxu0
        %s849 = scalar_lea.vmem %s383, 80
        %v850 = vld [vmem:[%s849] sm:$0xff]
        %v852 = vunpack.c.l.b16 %v850
        %v853 = vunpack.c.h.b16 %v850
        %v854 = vpack.c.b16 %v852, %v852
        %v855 = vpack.c.b16 %v853, %v853
        %v858 = vsel %vm479, %v855, 0
        %860 = vmatpush.bf16.msra.mxu0 %v465
        %861 = vmatpush.bf16.msra.mxu0 %v464
        %862 = vmatpush.bf16.msra.mxu0 %v463
        %863 = vmatpush.bf16.msra.mxu0 %v462
        %864 = vmatpush.bf16.msra.mxu0 %v461
        %865 = vmatpush.bf16.msra.mxu0 %v460
        %866 = vmatpush.bf16.msra.mxu0 %v459
        %867 = vmatpush.bf16.msra.mxu0 %v458
        %868 = vmatmul.bf16.gmra.mxu0 %v854
        %v869 = vpop.f32.mrf.mxu0
        %v870 = vadd.f32 0.0, %v869
        %v871 = vpop.f32.mrf.mxu0
        %872 = vdwg.mxu0
        %873 = vmatpush.bf16.msra.mxu0 0
        %874 = vmatpush.bf16.msra.mxu0 0
        %875 = vmatpush.bf16.msra.mxu0 0
        %876 = vmatpush.bf16.msra.mxu0 0
        %877 = vmatpush.bf16.msra.mxu0 0
        %878 = vmatpush.bf16.msra.mxu0 %v488
        %879 = vmatpush.bf16.msra.mxu0 %v467
        %880 = vmatpush.bf16.msra.mxu0 %v466
        %881 = vmatmul.bf16.gmra.mxu0 %v858
        %v882 = vpop.f32.mrf.mxu0
        %v883 = vadd.f32 %v870, %v882
        %v884 = vpop.f32.mrf.mxu0
        %885 = vdwg.mxu0
        %s886 = scalar_lea.vmem %s383, 88
        %v887 = vld [vmem:[%s886] sm:$0xff]
        %v889 = vunpack.c.l.b16 %v887
        %v890 = vunpack.c.h.b16 %v887
        %v891 = vpack.c.b16 %v889, %v889
        %v892 = vpack.c.b16 %v890, %v890
        %v895 = vsel %vm479, %v892, 0
        %897 = vmatpush.bf16.msra.mxu0 %v465
        %898 = vmatpush.bf16.msra.mxu0 %v464
        %899 = vmatpush.bf16.msra.mxu0 %v463
        %900 = vmatpush.bf16.msra.mxu0 %v462
        %901 = vmatpush.bf16.msra.mxu0 %v461
        %902 = vmatpush.bf16.msra.mxu0 %v460
        %903 = vmatpush.bf16.msra.mxu0 %v459
        %904 = vmatpush.bf16.msra.mxu0 %v458
        %905 = vmatmul.bf16.gmra.mxu0 %v891
        %v906 = vpop.f32.mrf.mxu0
        %v907 = vadd.f32 0.0, %v906
        %v908 = vpop.f32.mrf.mxu0
        %909 = vdwg.mxu0
        %910 = vmatpush.bf16.msra.mxu0 0
        %911 = vmatpush.bf16.msra.mxu0 0
        %912 = vmatpush.bf16.msra.mxu0 0
        %913 = vmatpush.bf16.msra.mxu0 0
        %914 = vmatpush.bf16.msra.mxu0 0
        %915 = vmatpush.bf16.msra.mxu0 %v488
        %916 = vmatpush.bf16.msra.mxu0 %v467
        %917 = vmatpush.bf16.msra.mxu0 %v466
        %918 = vmatmul.bf16.gmra.mxu0 %v895
        %v919 = vpop.f32.mrf.mxu0
        %v920 = vadd.f32 %v907, %v919
        %v921 = vpop.f32.mrf.mxu0
        %922 = vdwg.mxu0
        %s923 = scalar_lea.vmem %s383, 96
        %v924 = vld [vmem:[%s923] sm:$0xff]
        %v926 = vunpack.c.l.b16 %v924
        %v927 = vunpack.c.h.b16 %v924
        %v928 = vpack.c.b16 %v926, %v926
        %v929 = vpack.c.b16 %v927, %v927
        %v932 = vsel %vm479, %v929, 0
        %934 = vmatpush.bf16.msra.mxu0 %v465
        %935 = vmatpush.bf16.msra.mxu0 %v464
        %936 = vmatpush.bf16.msra.mxu0 %v463
        %937 = vmatpush.bf16.msra.mxu0 %v462
        %938 = vmatpush.bf16.msra.mxu0 %v461
        %939 = vmatpush.bf16.msra.mxu0 %v460
        %940 = vmatpush.bf16.msra.mxu0 %v459
        %941 = vmatpush.bf16.msra.mxu0 %v458
        %942 = vmatmul.bf16.gmra.mxu0 %v928
        %v943 = vpop.f32.mrf.mxu0
        %v944 = vadd.f32 0.0, %v943
        %v945 = vpop.f32.mrf.mxu0
        %946 = vdwg.mxu0
        %947 = vmatpush.bf16.msra.mxu0 0
        %948 = vmatpush.bf16.msra.mxu0 0
        %949 = vmatpush.bf16.msra.mxu0 0
        %950 = vmatpush.bf16.msra.mxu0 0
        %951 = vmatpush.bf16.msra.mxu0 0
        %952 = vmatpush.bf16.msra.mxu0 %v488
        %953 = vmatpush.bf16.msra.mxu0 %v467
        %954 = vmatpush.bf16.msra.mxu0 %v466
        %955 = vmatmul.bf16.gmra.mxu0 %v932
        %v956 = vpop.f32.mrf.mxu0
        %v957 = vadd.f32 %v944, %v956
        %v958 = vpop.f32.mrf.mxu0
        %959 = vdwg.mxu0
        %s960 = scalar_lea.vmem %s383, 104
        %v961 = vld [vmem:[%s960] sm:$0xff]
        %v963 = vunpack.c.l.b16 %v961
        %v964 = vunpack.c.h.b16 %v961
        %v965 = vpack.c.b16 %v963, %v963
        %v966 = vpack.c.b16 %v964, %v964
        %v969 = vsel %vm479, %v966, 0
        %971 = vmatpush.bf16.msra.mxu0 %v465
        %972 = vmatpush.bf16.msra.mxu0 %v464
        %973 = vmatpush.bf16.msra.mxu0 %v463
        %974 = vmatpush.bf16.msra.mxu0 %v462
        %975 = vmatpush.bf16.msra.mxu0 %v461
        %976 = vmatpush.bf16.msra.mxu0 %v460
        %977 = vmatpush.bf16.msra.mxu0 %v459
        %978 = vmatpush.bf16.msra.mxu0 %v458
        %979 = vmatmul.bf16.gmra.mxu0 %v965
        %v980 = vpop.f32.mrf.mxu0
        %v981 = vadd.f32 0.0, %v980
        %v982 = vpop.f32.mrf.mxu0
        %983 = vdwg.mxu0
        %984 = vmatpush.bf16.msra.mxu0 0
        %985 = vmatpush.bf16.msra.mxu0 0
        %986 = vmatpush.bf16.msra.mxu0 0
        %987 = vmatpush.bf16.msra.mxu0 0
        %988 = vmatpush.bf16.msra.mxu0 0
        %989 = vmatpush.bf16.msra.mxu0 %v488
        %990 = vmatpush.bf16.msra.mxu0 %v467
        %991 = vmatpush.bf16.msra.mxu0 %v466
        %992 = vmatmul.bf16.gmra.mxu0 %v969
        %v993 = vpop.f32.mrf.mxu0
        %v994 = vadd.f32 %v981, %v993
        %v995 = vpop.f32.mrf.mxu0
        %996 = vdwg.mxu0
        %s997 = scalar_lea.vmem %s383, 112
        %v998 = vld [vmem:[%s997] sm:$0xff]
        %v1000 = vunpack.c.l.b16 %v998
        %v1001 = vunpack.c.h.b16 %v998
        %v1002 = vpack.c.b16 %v1000, %v1000
        %v1003 = vpack.c.b16 %v1001, %v1001
        %v1006 = vsel %vm479, %v1003, 0
        %1008 = vmatpush.bf16.msra.mxu0 %v465
        %1009 = vmatpush.bf16.msra.mxu0 %v464
        %1010 = vmatpush.bf16.msra.mxu0 %v463
        %1011 = vmatpush.bf16.msra.mxu0 %v462
        %1012 = vmatpush.bf16.msra.mxu0 %v461
        %1013 = vmatpush.bf16.msra.mxu0 %v460
        %1014 = vmatpush.bf16.msra.mxu0 %v459
        %1015 = vmatpush.bf16.msra.mxu0 %v458
        %1016 = vmatmul.bf16.gmra.mxu0 %v1002
        %v1017 = vpop.f32.mrf.mxu0
        %v1018 = vadd.f32 0.0, %v1017
        %v1019 = vpop.f32.mrf.mxu0
        %1020 = vdwg.mxu0
        %1021 = vmatpush.bf16.msra.mxu0 0
        %1022 = vmatpush.bf16.msra.mxu0 0
        %1023 = vmatpush.bf16.msra.mxu0 0
        %1024 = vmatpush.bf16.msra.mxu0 0
        %1025 = vmatpush.bf16.msra.mxu0 0
        %1026 = vmatpush.bf16.msra.mxu0 %v488
        %1027 = vmatpush.bf16.msra.mxu0 %v467
        %1028 = vmatpush.bf16.msra.mxu0 %v466
        %1029 = vmatmul.bf16.gmra.mxu0 %v1006
        %v1030 = vpop.f32.mrf.mxu0
        %v1031 = vadd.f32 %v1018, %v1030
        %v1032 = vpop.f32.mrf.mxu0
        %1033 = vdwg.mxu0
        %s1034 = scalar_lea.vmem %s383, 120
        %v1035 = vld [vmem:[%s1034] sm:$0xff]
        %v1037 = vunpack.c.l.b16 %v1035
        %v1038 = vunpack.c.h.b16 %v1035
        %v1039 = vpack.c.b16 %v1037, %v1037
        %v1040 = vpack.c.b16 %v1038, %v1038
        %v1043 = vsel %vm479, %v1040, 0
        %1045 = vmatpush.bf16.msra.mxu0 %v465
        %1046 = vmatpush.bf16.msra.mxu0 %v464
        %1047 = vmatpush.bf16.msra.mxu0 %v463
        %1048 = vmatpush.bf16.msra.mxu0 %v462
        %1049 = vmatpush.bf16.msra.mxu0 %v461
        %1050 = vmatpush.bf16.msra.mxu0 %v460
        %1051 = vmatpush.bf16.msra.mxu0 %v459
        %1052 = vmatpush.bf16.msra.mxu0 %v458
        %1053 = vmatmul.bf16.gmra.mxu0 %v1039
        %v1054 = vpop.f32.mrf.mxu0
        %v1055 = vadd.f32 0.0, %v1054
        %v1056 = vpop.f32.mrf.mxu0
        %1057 = vdwg.mxu0
        %1058 = vmatpush.bf16.msra.mxu0 0
        %1059 = vmatpush.bf16.msra.mxu0 0
        %1060 = vmatpush.bf16.msra.mxu0 0
        %1061 = vmatpush.bf16.msra.mxu0 0
        %1062 = vmatpush.bf16.msra.mxu0 0
        %1063 = vmatpush.bf16.msra.mxu0 %v488
        %1064 = vmatpush.bf16.msra.mxu0 %v467
        %1065 = vmatpush.bf16.msra.mxu0 %v466
        %1066 = vmatmul.bf16.gmra.mxu0 %v1043
        %v1067 = vpop.f32.mrf.mxu0
        %v1068 = vadd.f32 %v1055, %v1067
        %v1069 = vpop.f32.mrf.mxu0
        %1070 = vdwg.mxu0
        %v1071 = vld [vmem:[%s2] sm:$0x1]
        %v1072 = vmax.f32 %v513, %v550
        %v1073 = vmax.f32 %v661, %v698
        %v1074 = vmax.f32 %v1072, %v1073
        %v1076 = vperm.slane %v1071, 0
        %v1078 = vadd.f32 %v1074, %v1076
        %v1079 = vmax.f32 %v1078, 0.0
        %v1080 = vmax.f32 %v587, %v624
        %v1081 = vmax.f32 %v735, %v772
        %v1082 = vmax.f32 %v1080, %v1081
        %v1083 = vadd.f32 %v1082, %v1076
        %v1084 = vmax.f32 %v1083, 0.0
        %v1085 = vmax.f32 %v809, %v846
        %v1086 = vmax.f32 %v957, %v994
        %v1087 = vmax.f32 %v1085, %v1086
        %v1088 = vadd.f32 %v1087, %v1076
        %v1089 = vmax.f32 %v1088, 0.0
        %v1090 = vmax.f32 %v883, %v920
        %v1091 = vmax.f32 %v1031, %v1068
        %v1092 = vmax.f32 %v1090, %v1091
        %v1093 = vadd.f32 %v1092, %v1076
        %v1094 = vmax.f32 %v1093, 0.0
        %v1095 = vld [vmem:[%s4] sm:$0x1]
        %v1096 = vpack.c.bf16 %v1079, %v1079
        %v1097 = vld [vmem:[%s3] sm:$0xf]
        %v1098 = vld [vmem:[%s3 + $0x4] sm:$0xf]
        %v1099 = vld [vmem:[%s3 + $0x8] sm:$0xf]
        %v1100 = vld [vmem:[%s3 + $0xc] sm:$0x7]
        %v1101 = vpack.c.bf16 %v1084, %v1084
        %s1102 = scalar_lea.vmem %s3, 16
        %v1103 = vld [vmem:[%s1102] sm:$0xf]
        %v1104 = vld [vmem:[%s1102 + $0x4] sm:$0xf]
        %v1105 = vld [vmem:[%s1102 + $0x8] sm:$0xf]
        %v1106 = vld [vmem:[%s1102 + $0xc] sm:$0x7]
        %v1111 = vunpack.c.l.b16 %v1103
        %v1112 = vunpack.c.l.b16 %v1104
        %v1113 = vunpack.c.l.b16 %v1105
        %v1114 = vunpack.c.l.b16 %v1106
        %v1115 = vpack.c.b16 %v1112, %v1111
        %v1116 = vpack.c.b16 %v1114, %v1113
        %vm1118 = vcmask 244736
        %v1120 = vsel %vm1118, %v1101, 0
        %v1123 = vsel %vm483, %v1116, 0
        %1125 = vmatpush.bf16.msra.mxu0 0
        %1126 = vmatpush.bf16.msra.mxu0 0
        %1127 = vmatpush.bf16.msra.mxu0 0
        %1128 = vmatpush.bf16.msra.mxu0 0
        %1129 = vmatpush.bf16.msra.mxu0 0
        %1130 = vmatpush.bf16.msra.mxu0 0
        %1131 = vmatpush.bf16.msra.mxu0 %v1123
        %1132 = vmatpush.bf16.msra.mxu0 %v1115
        %1133 = vmatmul.bf16.gmra.mxu0 %v1120
        %v1134 = vpop.f32.mrf.mxu0
        %v1135 = vadd.f32 0.0, %v1134
        %v1136 = vpop.f32.mrf.mxu0
        %1137 = vdwg.mxu0
        %v1142 = vunpack.c.l.b16 %v1097
        %v1143 = vunpack.c.l.b16 %v1098
        %v1144 = vunpack.c.l.b16 %v1099
        %v1145 = vunpack.c.l.b16 %v1100
        %v1146 = vpack.c.b16 %v1143, %v1142
        %v1147 = vpack.c.b16 %v1145, %v1144
        %v1150 = vsel %vm1118, %v1096, 0
        %v1153 = vsel %vm483, %v1147, 0
        %1155 = vmatpush.bf16.msra.mxu0 0
        %1156 = vmatpush.bf16.msra.mxu0 0
        %1157 = vmatpush.bf16.msra.mxu0 0
        %1158 = vmatpush.bf16.msra.mxu0 0
        %1159 = vmatpush.bf16.msra.mxu0 0
        %1160 = vmatpush.bf16.msra.mxu0 0
        %1161 = vmatpush.bf16.msra.mxu0 %v1153
        %1162 = vmatpush.bf16.msra.mxu0 %v1146
        %1163 = vmatmul.bf16.gmra.mxu0 %v1150
        %v1164 = vpop.f32.mrf.mxu0
        %v1165 = vadd.f32 %v1135, %v1164
        %v1166 = vpop.f32.mrf.mxu0
        %1167 = vdwg.mxu0
        %s1168 = scalar_lea.vmem %s3, 32
        %v1169 = vld [vmem:[%s1168] sm:$0xf]
        %v1170 = vld [vmem:[%s1168 + $0x4] sm:$0xf]
        %v1171 = vld [vmem:[%s1168 + $0x8] sm:$0xf]
        %v1172 = vld [vmem:[%s1168 + $0xc] sm:$0x7]
        %1174 = vrot.lane.b32.xlu0 %v1096, 122
        %v1175 = vpop.permute.xlu0 %1174
        %v1180 = vunpack.c.l.b16 %v1169
        %v1181 = vunpack.c.l.b16 %v1170
        %v1182 = vunpack.c.l.b16 %v1171
        %v1183 = vunpack.c.l.b16 %v1172
        %v1184 = vpack.c.b16 %v1181, %v1180
        %v1185 = vpack.c.b16 %v1183, %v1182
        %v1188 = vsel %vm1118, %v1175, 0
        %v1191 = vsel %vm483, %v1185, 0
        %1193 = vmatpush.bf16.msra.mxu0 0
        %1194 = vmatpush.bf16.msra.mxu0 0
        %1195 = vmatpush.bf16.msra.mxu0 0
        %1196 = vmatpush.bf16.msra.mxu0 0
        %1197 = vmatpush.bf16.msra.mxu0 0
        %1198 = vmatpush.bf16.msra.mxu0 0
        %1199 = vmatpush.bf16.msra.mxu0 %v1191
        %1200 = vmatpush.bf16.msra.mxu0 %v1184
        %1201 = vmatmul.bf16.gmra.mxu0 %v1188
        %v1202 = vpop.f32.mrf.mxu0
        %v1203 = vadd.f32 0.0, %v1202
        %v1204 = vpop.f32.mrf.mxu0
        %1205 = vdwg.mxu0
        %v1206 = vadd.f32 %v1165, %v1203
        %s1207 = scalar_lea.vmem %s3, 48
        %v1208 = vld [vmem:[%s1207] sm:$0xf]
        %v1209 = vld [vmem:[%s1207 + $0x4] sm:$0xf]
        %v1210 = vld [vmem:[%s1207 + $0x8] sm:$0xf]
        %v1211 = vld [vmem:[%s1207 + $0xc] sm:$0x7]
        %1213 = vrot.lane.b32.xlu0 %v1101, 122
        %v1214 = vpop.permute.xlu0 %1213
        %v1219 = vunpack.c.l.b16 %v1208
        %v1220 = vunpack.c.l.b16 %v1209
        %v1221 = vunpack.c.l.b16 %v1210
        %v1222 = vunpack.c.l.b16 %v1211
        %v1223 = vpack.c.b16 %v1220, %v1219
        %v1224 = vpack.c.b16 %v1222, %v1221
        %v1227 = vsel %vm1118, %v1214, 0
        %v1230 = vsel %vm483, %v1224, 0
        %1232 = vmatpush.bf16.msra.mxu0 0
        %1233 = vmatpush.bf16.msra.mxu0 0
        %1234 = vmatpush.bf16.msra.mxu0 0
        %1235 = vmatpush.bf16.msra.mxu0 0
        %1236 = vmatpush.bf16.msra.mxu0 0
        %1237 = vmatpush.bf16.msra.mxu0 0
        %1238 = vmatpush.bf16.msra.mxu0 %v1230
        %1239 = vmatpush.bf16.msra.mxu0 %v1223
        %1240 = vmatmul.bf16.gmra.mxu0 %v1227
        %v1241 = vpop.f32.mrf.mxu0
        %v1242 = vadd.f32 0.0, %v1241
        %v1243 = vpop.f32.mrf.mxu0
        %1244 = vdwg.mxu0
        %v1245 = vadd.f32 %v1206, %v1242
        %s1246 = scalar_lea.vmem %s3, 64
        %v1247 = vld [vmem:[%s1246] sm:$0xf]
        %v1248 = vld [vmem:[%s1246 + $0x4] sm:$0xf]
        %v1249 = vld [vmem:[%s1246 + $0x8] sm:$0xf]
        %v1250 = vld [vmem:[%s1246 + $0xc] sm:$0x7]
        %1251 = vrot.lane.b32.xlu0 %v1096, 116
        %v1252 = vpop.permute.xlu0 %1251
        %v1257 = vunpack.c.l.b16 %v1247
        %v1258 = vunpack.c.l.b16 %v1248
        %v1259 = vunpack.c.l.b16 %v1249
        %v1260 = vunpack.c.l.b16 %v1250
        %v1261 = vpack.c.b16 %v1258, %v1257
        %v1262 = vpack.c.b16 %v1260, %v1259
        %v1265 = vsel %vm1118, %v1252, 0
        %v1268 = vsel %vm483, %v1262, 0
        %1270 = vmatpush.bf16.msra.mxu0 0
        %1271 = vmatpush.bf16.msra.mxu0 0
        %1272 = vmatpush.bf16.msra.mxu0 0
        %1273 = vmatpush.bf16.msra.mxu0 0
        %1274 = vmatpush.bf16.msra.mxu0 0
        %1275 = vmatpush.bf16.msra.mxu0 0
        %1276 = vmatpush.bf16.msra.mxu0 %v1268
        %1277 = vmatpush.bf16.msra.mxu0 %v1261
        %1278 = vmatmul.bf16.gmra.mxu0 %v1265
        %v1279 = vpop.f32.mrf.mxu0
        %v1280 = vadd.f32 0.0, %v1279
        %v1281 = vpop.f32.mrf.mxu0
        %1282 = vdwg.mxu0
        %v1283 = vadd.f32 %v1245, %v1280
        %v1284 = vpack.c.bf16 %v1089, %v1089
        %s1285 = scalar_lea.vmem %s3, 80
        %v1286 = vld [vmem:[%s1285] sm:$0xf]
        %v1287 = vld [vmem:[%s1285 + $0x4] sm:$0xf]
        %v1288 = vld [vmem:[%s1285 + $0x8] sm:$0xf]
        %v1289 = vld [vmem:[%s1285 + $0xc] sm:$0x7]
        %v1294 = vunpack.c.l.b16 %v1286
        %v1295 = vunpack.c.l.b16 %v1287
        %v1296 = vunpack.c.l.b16 %v1288
        %v1297 = vunpack.c.l.b16 %v1289
        %v1298 = vpack.c.b16 %v1295, %v1294
        %v1299 = vpack.c.b16 %v1297, %v1296
        %v1302 = vsel %vm1118, %v1284, 0
        %v1305 = vsel %vm483, %v1299, 0
        %1307 = vmatpush.bf16.msra.mxu0 0
        %1308 = vmatpush.bf16.msra.mxu0 0
        %1309 = vmatpush.bf16.msra.mxu0 0
        %1310 = vmatpush.bf16.msra.mxu0 0
        %1311 = vmatpush.bf16.msra.mxu0 0
        %1312 = vmatpush.bf16.msra.mxu0 0
        %1313 = vmatpush.bf16.msra.mxu0 %v1305
        %1314 = vmatpush.bf16.msra.mxu0 %v1298
        %1315 = vmatmul.bf16.gmra.mxu0 %v1302
        %v1316 = vpop.f32.mrf.mxu0
        %v1317 = vadd.f32 0.0, %v1316
        %v1318 = vpop.f32.mrf.mxu0
        %1319 = vdwg.mxu0
        %v1320 = vadd.f32 %v1283, %v1317
        %v1321 = vpack.c.bf16 %v1094, %v1094
        %s1322 = scalar_lea.vmem %s3, 96
        %v1323 = vld [vmem:[%s1322] sm:$0xf]
        %v1324 = vld [vmem:[%s1322 + $0x4] sm:$0xf]
        %v1325 = vld [vmem:[%s1322 + $0x8] sm:$0xf]
        %v1326 = vld [vmem:[%s1322 + $0xc] sm:$0x7]
        %v1331 = vunpack.c.l.b16 %v1323
        %v1332 = vunpack.c.l.b16 %v1324
        %v1333 = vunpack.c.l.b16 %v1325
        %v1334 = vunpack.c.l.b16 %v1326
        %v1335 = vpack.c.b16 %v1332, %v1331
        %v1336 = vpack.c.b16 %v1334, %v1333
        %v1339 = vsel %vm1118, %v1321, 0
        %v1342 = vsel %vm483, %v1336, 0
        %1344 = vmatpush.bf16.msra.mxu0 0
        %1345 = vmatpush.bf16.msra.mxu0 0
        %1346 = vmatpush.bf16.msra.mxu0 0
        %1347 = vmatpush.bf16.msra.mxu0 0
        %1348 = vmatpush.bf16.msra.mxu0 0
        %1349 = vmatpush.bf16.msra.mxu0 0
        %1350 = vmatpush.bf16.msra.mxu0 %v1342
        %1351 = vmatpush.bf16.msra.mxu0 %v1335
        %1352 = vmatmul.bf16.gmra.mxu0 %v1339
        %v1353 = vpop.f32.mrf.mxu0
        %v1354 = vadd.f32 0.0, %v1353
        %v1355 = vpop.f32.mrf.mxu0
        %1356 = vdwg.mxu0
        %v1357 = vadd.f32 %v1320, %v1354
        %s1358 = scalar_lea.vmem %s3, 112
        %v1359 = vld [vmem:[%s1358] sm:$0xf]
        %v1360 = vld [vmem:[%s1358 + $0x4] sm:$0xf]
        %v1361 = vld [vmem:[%s1358 + $0x8] sm:$0xf]
        %v1362 = vld [vmem:[%s1358 + $0xc] sm:$0x7]
        %1364 = vrot.lane.b32.xlu0 %v1284, 122
        %v1365 = vpop.permute.xlu0 %1364
        %v1370 = vunpack.c.l.b16 %v1359
        %v1371 = vunpack.c.l.b16 %v1360
        %v1372 = vunpack.c.l.b16 %v1361
        %v1373 = vunpack.c.l.b16 %v1362
        %v1374 = vpack.c.b16 %v1371, %v1370
        %v1375 = vpack.c.b16 %v1373, %v1372
        %v1378 = vsel %vm1118, %v1365, 0
        %v1381 = vsel %vm483, %v1375, 0
        %1383 = vmatpush.bf16.msra.mxu0 0
        %1384 = vmatpush.bf16.msra.mxu0 0
        %1385 = vmatpush.bf16.msra.mxu0 0
        %1386 = vmatpush.bf16.msra.mxu0 0
        %1387 = vmatpush.bf16.msra.mxu0 0
        %1388 = vmatpush.bf16.msra.mxu0 0
        %1389 = vmatpush.bf16.msra.mxu0 %v1381
        %1390 = vmatpush.bf16.msra.mxu0 %v1374
        %1391 = vmatmul.bf16.gmra.mxu0 %v1378
        %v1392 = vpop.f32.mrf.mxu0
        %v1393 = vadd.f32 0.0, %v1392
        %v1394 = vpop.f32.mrf.mxu0
        %1395 = vdwg.mxu0
        %v1396 = vadd.f32 %v1357, %v1393
        %s1397 = scalar_lea.vmem %s3, 128
        %v1398 = vld [vmem:[%s1397] sm:$0xf]
        %v1399 = vld [vmem:[%s1397 + $0x4] sm:$0xf]
        %v1400 = vld [vmem:[%s1397 + $0x8] sm:$0xf]
        %v1401 = vld [vmem:[%s1397 + $0xc] sm:$0x7]
        %1403 = vrot.lane.b32.xlu0 %v1321, 122
        %v1404 = vpop.permute.xlu0 %1403
        %v1409 = vunpack.c.l.b16 %v1398
        %v1410 = vunpack.c.l.b16 %v1399
        %v1411 = vunpack.c.l.b16 %v1400
        %v1412 = vunpack.c.l.b16 %v1401
        %v1413 = vpack.c.b16 %v1410, %v1409
        %v1414 = vpack.c.b16 %v1412, %v1411
        %v1417 = vsel %vm1118, %v1404, 0
        %v1420 = vsel %vm483, %v1414, 0
        %1422 = vmatpush.bf16.msra.mxu0 0
        %1423 = vmatpush.bf16.msra.mxu0 0
        %1424 = vmatpush.bf16.msra.mxu0 0
        %1425 = vmatpush.bf16.msra.mxu0 0
        %1426 = vmatpush.bf16.msra.mxu0 0
        %1427 = vmatpush.bf16.msra.mxu0 0
        %1428 = vmatpush.bf16.msra.mxu0 %v1420
        %1429 = vmatpush.bf16.msra.mxu0 %v1413
        %1430 = vmatmul.bf16.gmra.mxu0 %v1417
        %v1431 = vpop.f32.mrf.mxu0
        %v1432 = vadd.f32 0.0, %v1431
        %v1433 = vpop.f32.mrf.mxu0
        %1434 = vdwg.mxu0
        %v1435 = vadd.f32 %v1396, %v1432
        %s1436 = scalar_lea.vmem %s3, 144
        %v1437 = vld [vmem:[%s1436] sm:$0xf]
        %v1438 = vld [vmem:[%s1436 + $0x4] sm:$0xf]
        %v1439 = vld [vmem:[%s1436 + $0x8] sm:$0xf]
        %v1440 = vld [vmem:[%s1436 + $0xc] sm:$0x7]
        %1441 = vrot.lane.b32.xlu0 %v1284, 116
        %v1442 = vpop.permute.xlu0 %1441
        %v1447 = vunpack.c.l.b16 %v1437
        %v1448 = vunpack.c.l.b16 %v1438
        %v1449 = vunpack.c.l.b16 %v1439
        %v1450 = vunpack.c.l.b16 %v1440
        %v1451 = vpack.c.b16 %v1448, %v1447
        %v1452 = vpack.c.b16 %v1450, %v1449
        %v1455 = vsel %vm1118, %v1442, 0
        %v1458 = vsel %vm483, %v1452, 0
        %1460 = vmatpush.bf16.msra.mxu0 0
        %1461 = vmatpush.bf16.msra.mxu0 0
        %1462 = vmatpush.bf16.msra.mxu0 0
        %1463 = vmatpush.bf16.msra.mxu0 0
        %1464 = vmatpush.bf16.msra.mxu0 0
        %1465 = vmatpush.bf16.msra.mxu0 0
        %1466 = vmatpush.bf16.msra.mxu0 %v1458
        %1467 = vmatpush.bf16.msra.mxu0 %v1451
        %1468 = vmatmul.bf16.gmra.mxu0 %v1455
        %v1469 = vpop.f32.mrf.mxu0
        %v1470 = vadd.f32 0.0, %v1469
        %v1471 = vpop.f32.mrf.mxu0
        %1472 = vdwg.mxu0
        %v1473 = vadd.f32 %v1435, %v1470
        %s1474 = scalar_lea.vmem %s3, 160
        %v1475 = vld [vmem:[%s1474] sm:$0xf]
        %v1476 = vld [vmem:[%s1474 + $0x4] sm:$0xf]
        %v1477 = vld [vmem:[%s1474 + $0x8] sm:$0xf]
        %v1478 = vld [vmem:[%s1474 + $0xc] sm:$0x7]
        %v1479 = vshrl.u32 %v1096, 16
        %v1481 = vshll.u32 %v1096, 16
        %v1483 = vrot.slane %v1481, 1
        %v1484 = vor.u32 %v1479, %v1483
        %v1489 = vunpack.c.l.b16 %v1475
        %v1490 = vunpack.c.l.b16 %v1476
        %v1491 = vunpack.c.l.b16 %v1477
        %v1492 = vunpack.c.l.b16 %v1478
        %v1493 = vpack.c.b16 %v1490, %v1489
        %v1494 = vpack.c.b16 %v1492, %v1491
        %v1497 = vsel %vm1118, %v1484, 0
        %v1500 = vsel %vm483, %v1494, 0
        %1502 = vmatpush.bf16.msra.mxu0 0
        %1503 = vmatpush.bf16.msra.mxu0 0
        %1504 = vmatpush.bf16.msra.mxu0 0
        %1505 = vmatpush.bf16.msra.mxu0 0
        %1506 = vmatpush.bf16.msra.mxu0 0
        %1507 = vmatpush.bf16.msra.mxu0 0
        %1508 = vmatpush.bf16.msra.mxu0 %v1500
        %1509 = vmatpush.bf16.msra.mxu0 %v1493
        %1510 = vmatmul.bf16.gmra.mxu0 %v1497
        %v1511 = vpop.f32.mrf.mxu0
        %v1512 = vadd.f32 0.0, %v1511
        %v1513 = vpop.f32.mrf.mxu0
        %1514 = vdwg.mxu0
        %v1515 = vadd.f32 %v1473, %v1512
        %s1516 = scalar_lea.vmem %s3, 176
        %v1517 = vld [vmem:[%s1516] sm:$0xf]
        %v1518 = vld [vmem:[%s1516 + $0x4] sm:$0xf]
        %v1519 = vld [vmem:[%s1516 + $0x8] sm:$0xf]
        %v1520 = vld [vmem:[%s1516 + $0xc] sm:$0x7]
        %v1521 = vshrl.u32 %v1101, 16
        %v1523 = vshll.u32 %v1101, 16
        %v1525 = vrot.slane %v1523, 1
        %v1526 = vor.u32 %v1521, %v1525
        %v1531 = vunpack.c.l.b16 %v1517
        %v1532 = vunpack.c.l.b16 %v1518
        %v1533 = vunpack.c.l.b16 %v1519
        %v1534 = vunpack.c.l.b16 %v1520
        %v1535 = vpack.c.b16 %v1532, %v1531
        %v1536 = vpack.c.b16 %v1534, %v1533
        %v1539 = vsel %vm1118, %v1526, 0
        %v1542 = vsel %vm483, %v1536, 0
        %1544 = vmatpush.bf16.msra.mxu0 0
        %1545 = vmatpush.bf16.msra.mxu0 0
        %1546 = vmatpush.bf16.msra.mxu0 0
        %1547 = vmatpush.bf16.msra.mxu0 0
        %1548 = vmatpush.bf16.msra.mxu0 0
        %1549 = vmatpush.bf16.msra.mxu0 0
        %1550 = vmatpush.bf16.msra.mxu0 %v1542
        %1551 = vmatpush.bf16.msra.mxu0 %v1535
        %1552 = vmatmul.bf16.gmra.mxu0 %v1539
        %v1553 = vpop.f32.mrf.mxu0
        %v1554 = vadd.f32 0.0, %v1553
        %v1555 = vpop.f32.mrf.mxu0
        %1556 = vdwg.mxu0
        %v1557 = vadd.f32 %v1515, %v1554
        %s1558 = scalar_lea.vmem %s3, 192
        %v1559 = vld [vmem:[%s1558] sm:$0xf]
        %v1560 = vld [vmem:[%s1558 + $0x4] sm:$0xf]
        %v1561 = vld [vmem:[%s1558 + $0x8] sm:$0xf]
        %v1562 = vld [vmem:[%s1558 + $0xc] sm:$0x7]
        %1563 = vrot.lane.b32.xlu0 %v1484, 122
        %v1564 = vpop.permute.xlu0 %1563
        %v1569 = vunpack.c.l.b16 %v1559
        %v1570 = vunpack.c.l.b16 %v1560
        %v1571 = vunpack.c.l.b16 %v1561
        %v1572 = vunpack.c.l.b16 %v1562
        %v1573 = vpack.c.b16 %v1570, %v1569
        %v1574 = vpack.c.b16 %v1572, %v1571
        %v1577 = vsel %vm1118, %v1564, 0
        %v1580 = vsel %vm483, %v1574, 0
        %1582 = vmatpush.bf16.msra.mxu0 0
        %1583 = vmatpush.bf16.msra.mxu0 0
        %1584 = vmatpush.bf16.msra.mxu0 0
        %1585 = vmatpush.bf16.msra.mxu0 0
        %1586 = vmatpush.bf16.msra.mxu0 0
        %1587 = vmatpush.bf16.msra.mxu0 0
        %1588 = vmatpush.bf16.msra.mxu0 %v1580
        %1589 = vmatpush.bf16.msra.mxu0 %v1573
        %1590 = vmatmul.bf16.gmra.mxu0 %v1577
        %v1591 = vpop.f32.mrf.mxu0
        %v1592 = vadd.f32 0.0, %v1591
        %v1593 = vpop.f32.mrf.mxu0
        %1594 = vdwg.mxu0
        %v1595 = vadd.f32 %v1557, %v1592
        %s1596 = scalar_lea.vmem %s3, 208
        %v1597 = vld [vmem:[%s1596] sm:$0xf]
        %v1598 = vld [vmem:[%s1596 + $0x4] sm:$0xf]
        %v1599 = vld [vmem:[%s1596 + $0x8] sm:$0xf]
        %v1600 = vld [vmem:[%s1596 + $0xc] sm:$0x7]
        %1601 = vrot.lane.b32.xlu0 %v1526, 122
        %v1602 = vpop.permute.xlu0 %1601
        %v1607 = vunpack.c.l.b16 %v1597
        %v1608 = vunpack.c.l.b16 %v1598
        %v1609 = vunpack.c.l.b16 %v1599
        %v1610 = vunpack.c.l.b16 %v1600
        %v1611 = vpack.c.b16 %v1608, %v1607
        %v1612 = vpack.c.b16 %v1610, %v1609
        %v1615 = vsel %vm1118, %v1602, 0
        %v1618 = vsel %vm483, %v1612, 0
        %1620 = vmatpush.bf16.msra.mxu0 0
        %1621 = vmatpush.bf16.msra.mxu0 0
        %1622 = vmatpush.bf16.msra.mxu0 0
        %1623 = vmatpush.bf16.msra.mxu0 0
        %1624 = vmatpush.bf16.msra.mxu0 0
        %1625 = vmatpush.bf16.msra.mxu0 0
        %1626 = vmatpush.bf16.msra.mxu0 %v1618
        %1627 = vmatpush.bf16.msra.mxu0 %v1611
        %1628 = vmatmul.bf16.gmra.mxu0 %v1615
        %v1629 = vpop.f32.mrf.mxu0
        %v1630 = vadd.f32 0.0, %v1629
        %v1631 = vpop.f32.mrf.mxu0
        %1632 = vdwg.mxu0
        %v1633 = vadd.f32 %v1595, %v1630
        %s1634 = scalar_lea.vmem %s3, 224
        %v1635 = vld [vmem:[%s1634] sm:$0xf]
        %v1636 = vld [vmem:[%s1634 + $0x4] sm:$0xf]
        %v1637 = vld [vmem:[%s1634 + $0x8] sm:$0xf]
        %v1638 = vld [vmem:[%s1634 + $0xc] sm:$0x7]
        %1639 = vrot.lane.b32.xlu0 %v1484, 116
        %v1640 = vpop.permute.xlu0 %1639
        %v1645 = vunpack.c.l.b16 %v1635
        %v1646 = vunpack.c.l.b16 %v1636
        %v1647 = vunpack.c.l.b16 %v1637
        %v1648 = vunpack.c.l.b16 %v1638
        %v1649 = vpack.c.b16 %v1646, %v1645
        %v1650 = vpack.c.b16 %v1648, %v1647
        %v1653 = vsel %vm1118, %v1640, 0
        %v1656 = vsel %vm483, %v1650, 0
        %1658 = vmatpush.bf16.msra.mxu0 0
        %1659 = vmatpush.bf16.msra.mxu0 0
        %1660 = vmatpush.bf16.msra.mxu0 0
        %1661 = vmatpush.bf16.msra.mxu0 0
        %1662 = vmatpush.bf16.msra.mxu0 0
        %1663 = vmatpush.bf16.msra.mxu0 0
        %1664 = vmatpush.bf16.msra.mxu0 %v1656
        %1665 = vmatpush.bf16.msra.mxu0 %v1649
        %1666 = vmatmul.bf16.gmra.mxu0 %v1653
        %v1667 = vpop.f32.mrf.mxu0
        %v1668 = vadd.f32 0.0, %v1667
        %v1669 = vpop.f32.mrf.mxu0
        %1670 = vdwg.mxu0
        %v1671 = vadd.f32 %v1633, %v1668
        %s1672 = scalar_lea.vmem %s3, 240
        %v1673 = vld [vmem:[%s1672] sm:$0xf]
        %v1674 = vld [vmem:[%s1672 + $0x4] sm:$0xf]
        %v1675 = vld [vmem:[%s1672 + $0x8] sm:$0xf]
        %v1676 = vld [vmem:[%s1672 + $0xc] sm:$0x7]
        %v1677 = vshrl.u32 %v1284, 16
        %v1679 = vshll.u32 %v1284, 16
        %v1681 = vrot.slane %v1679, 1
        %v1682 = vor.u32 %v1677, %v1681
        %v1687 = vunpack.c.l.b16 %v1673
        %v1688 = vunpack.c.l.b16 %v1674
        %v1689 = vunpack.c.l.b16 %v1675
        %v1690 = vunpack.c.l.b16 %v1676
        %v1691 = vpack.c.b16 %v1688, %v1687
        %v1692 = vpack.c.b16 %v1690, %v1689
        %v1695 = vsel %vm1118, %v1682, 0
        %v1698 = vsel %vm483, %v1692, 0
        %1700 = vmatpush.bf16.msra.mxu0 0
        %1701 = vmatpush.bf16.msra.mxu0 0
        %1702 = vmatpush.bf16.msra.mxu0 0
        %1703 = vmatpush.bf16.msra.mxu0 0
        %1704 = vmatpush.bf16.msra.mxu0 0
        %1705 = vmatpush.bf16.msra.mxu0 0
        %1706 = vmatpush.bf16.msra.mxu0 %v1698
        %1707 = vmatpush.bf16.msra.mxu0 %v1691
        %1708 = vmatmul.bf16.gmra.mxu0 %v1695
        %v1709 = vpop.f32.mrf.mxu0
        %v1710 = vadd.f32 0.0, %v1709
        %v1711 = vpop.f32.mrf.mxu0
        %1712 = vdwg.mxu0
        %v1713 = vadd.f32 %v1671, %v1710
        %s1714 = scalar_lea.vmem %s3, 256
        %v1715 = vld [vmem:[%s1714] sm:$0xf]
        %v1716 = vld [vmem:[%s1714 + $0x4] sm:$0xf]
        %v1717 = vld [vmem:[%s1714 + $0x8] sm:$0xf]
        %v1718 = vld [vmem:[%s1714 + $0xc] sm:$0x7]
        %v1719 = vshrl.u32 %v1321, 16
        %v1721 = vshll.u32 %v1321, 16
        %v1723 = vrot.slane %v1721, 1
        %v1724 = vor.u32 %v1719, %v1723
        %v1729 = vunpack.c.l.b16 %v1715
        %v1730 = vunpack.c.l.b16 %v1716
        %v1731 = vunpack.c.l.b16 %v1717
        %v1732 = vunpack.c.l.b16 %v1718
        %v1733 = vpack.c.b16 %v1730, %v1729
        %v1734 = vpack.c.b16 %v1732, %v1731
        %v1737 = vsel %vm1118, %v1724, 0
        %v1740 = vsel %vm483, %v1734, 0
        %1742 = vmatpush.bf16.msra.mxu0 0
        %1743 = vmatpush.bf16.msra.mxu0 0
        %1744 = vmatpush.bf16.msra.mxu0 0
        %1745 = vmatpush.bf16.msra.mxu0 0
        %1746 = vmatpush.bf16.msra.mxu0 0
        %1747 = vmatpush.bf16.msra.mxu0 0
        %1748 = vmatpush.bf16.msra.mxu0 %v1740
        %1749 = vmatpush.bf16.msra.mxu0 %v1733
        %1750 = vmatmul.bf16.gmra.mxu0 %v1737
        %v1751 = vpop.f32.mrf.mxu0
        %v1752 = vadd.f32 0.0, %v1751
        %v1753 = vpop.f32.mrf.mxu0
        %1754 = vdwg.mxu0
        %v1755 = vadd.f32 %v1713, %v1752
        %s1756 = scalar_lea.vmem %s3, 272
        %v1757 = vld [vmem:[%s1756] sm:$0xf]
        %v1758 = vld [vmem:[%s1756 + $0x4] sm:$0xf]
        %v1759 = vld [vmem:[%s1756 + $0x8] sm:$0xf]
        %v1760 = vld [vmem:[%s1756 + $0xc] sm:$0x7]
        %1761 = vrot.lane.b32.xlu0 %v1682, 122
        %v1762 = vpop.permute.xlu0 %1761
        %v1767 = vunpack.c.l.b16 %v1757
        %v1768 = vunpack.c.l.b16 %v1758
        %v1769 = vunpack.c.l.b16 %v1759
        %v1770 = vunpack.c.l.b16 %v1760
        %v1771 = vpack.c.b16 %v1768, %v1767
        %v1772 = vpack.c.b16 %v1770, %v1769
        %v1775 = vsel %vm1118, %v1762, 0
        %v1778 = vsel %vm483, %v1772, 0
        %1780 = vmatpush.bf16.msra.mxu0 0
        %1781 = vmatpush.bf16.msra.mxu0 0
        %1782 = vmatpush.bf16.msra.mxu0 0
        %1783 = vmatpush.bf16.msra.mxu0 0
        %1784 = vmatpush.bf16.msra.mxu0 0
        %1785 = vmatpush.bf16.msra.mxu0 0
        %1786 = vmatpush.bf16.msra.mxu0 %v1778
        %1787 = vmatpush.bf16.msra.mxu0 %v1771
        %1788 = vmatmul.bf16.gmra.mxu0 %v1775
        %v1789 = vpop.f32.mrf.mxu0
        %v1790 = vadd.f32 0.0, %v1789
        %v1791 = vpop.f32.mrf.mxu0
        %1792 = vdwg.mxu0
        %v1793 = vadd.f32 %v1755, %v1790
        %s1794 = scalar_lea.vmem %s3, 288
        %v1795 = vld [vmem:[%s1794] sm:$0xf]
        %v1796 = vld [vmem:[%s1794 + $0x4] sm:$0xf]
        %v1797 = vld [vmem:[%s1794 + $0x8] sm:$0xf]
        %v1798 = vld [vmem:[%s1794 + $0xc] sm:$0x7]
        %1799 = vrot.lane.b32.xlu0 %v1724, 122
        %v1800 = vpop.permute.xlu0 %1799
        %v1805 = vunpack.c.l.b16 %v1795
        %v1806 = vunpack.c.l.b16 %v1796
        %v1807 = vunpack.c.l.b16 %v1797
        %v1808 = vunpack.c.l.b16 %v1798
        %v1809 = vpack.c.b16 %v1806, %v1805
        %v1810 = vpack.c.b16 %v1808, %v1807
        %v1813 = vsel %vm1118, %v1800, 0
        %v1816 = vsel %vm483, %v1810, 0
        %1818 = vmatpush.bf16.msra.mxu0 0
        %1819 = vmatpush.bf16.msra.mxu0 0
        %1820 = vmatpush.bf16.msra.mxu0 0
        %1821 = vmatpush.bf16.msra.mxu0 0
        %1822 = vmatpush.bf16.msra.mxu0 0
        %1823 = vmatpush.bf16.msra.mxu0 0
        %1824 = vmatpush.bf16.msra.mxu0 %v1816
        %1825 = vmatpush.bf16.msra.mxu0 %v1809
        %1826 = vmatmul.bf16.gmra.mxu0 %v1813
        %v1827 = vpop.f32.mrf.mxu0
        %v1828 = vadd.f32 0.0, %v1827
        %v1829 = vpop.f32.mrf.mxu0
        %1830 = vdwg.mxu0
        %v1831 = vadd.f32 %v1793, %v1828
        %s1832 = scalar_lea.vmem %s3, 304
        %v1833 = vld [vmem:[%s1832] sm:$0xf]
        %v1834 = vld [vmem:[%s1832 + $0x4] sm:$0xf]
        %v1835 = vld [vmem:[%s1832 + $0x8] sm:$0xf]
        %v1836 = vld [vmem:[%s1832 + $0xc] sm:$0x7]
        %1837 = vrot.lane.b32.xlu0 %v1682, 116
        %v1838 = vpop.permute.xlu0 %1837
        %v1843 = vunpack.c.l.b16 %v1833
        %v1844 = vunpack.c.l.b16 %v1834
        %v1845 = vunpack.c.l.b16 %v1835
        %v1846 = vunpack.c.l.b16 %v1836
        %v1847 = vpack.c.b16 %v1844, %v1843
        %v1848 = vpack.c.b16 %v1846, %v1845
        %v1851 = vsel %vm1118, %v1838, 0
        %v1854 = vsel %vm483, %v1848, 0
        %1856 = vmatpush.bf16.msra.mxu0 0
        %1857 = vmatpush.bf16.msra.mxu0 0
        %1858 = vmatpush.bf16.msra.mxu0 0
        %1859 = vmatpush.bf16.msra.mxu0 0
        %1860 = vmatpush.bf16.msra.mxu0 0
        %1861 = vmatpush.bf16.msra.mxu0 0
        %1862 = vmatpush.bf16.msra.mxu0 %v1854
        %1863 = vmatpush.bf16.msra.mxu0 %v1847
        %1864 = vmatmul.bf16.gmra.mxu0 %v1851
        %v1865 = vpop.f32.mrf.mxu0
        %v1866 = vadd.f32 0.0, %v1865
        %v1867 = vpop.f32.mrf.mxu0
        %1868 = vdwg.mxu0
        %v1869 = vadd.f32 %v1831, %v1866
        %s1870 = scalar_lea.vmem %s3, 320
        %v1871 = vld [vmem:[%s1870] sm:$0xf]
        %v1872 = vld [vmem:[%s1870 + $0x4] sm:$0xf]
        %v1873 = vld [vmem:[%s1870 + $0x8] sm:$0xf]
        %v1874 = vld [vmem:[%s1870 + $0xc] sm:$0x7]
        %v1875 = vrot.slane %v1096, 1
        %v1880 = vunpack.c.l.b16 %v1871
        %v1881 = vunpack.c.l.b16 %v1872
        %v1882 = vunpack.c.l.b16 %v1873
        %v1883 = vunpack.c.l.b16 %v1874
        %v1884 = vpack.c.b16 %v1881, %v1880
        %v1885 = vpack.c.b16 %v1883, %v1882
        %v1888 = vsel %vm1118, %v1875, 0
        %v1891 = vsel %vm483, %v1885, 0
        %1893 = vmatpush.bf16.msra.mxu0 0
        %1894 = vmatpush.bf16.msra.mxu0 0
        %1895 = vmatpush.bf16.msra.mxu0 0
        %1896 = vmatpush.bf16.msra.mxu0 0
        %1897 = vmatpush.bf16.msra.mxu0 0
        %1898 = vmatpush.bf16.msra.mxu0 0
        %1899 = vmatpush.bf16.msra.mxu0 %v1891
        %1900 = vmatpush.bf16.msra.mxu0 %v1884
        %1901 = vmatmul.bf16.gmra.mxu0 %v1888
        %v1902 = vpop.f32.mrf.mxu0
        %v1903 = vadd.f32 0.0, %v1902
        %v1904 = vpop.f32.mrf.mxu0
        %1905 = vdwg.mxu0
        %v1906 = vadd.f32 %v1869, %v1903
        %s1907 = scalar_lea.vmem %s3, 336
        %v1908 = vld [vmem:[%s1907] sm:$0xf]
        %v1909 = vld [vmem:[%s1907 + $0x4] sm:$0xf]
        %v1910 = vld [vmem:[%s1907 + $0x8] sm:$0xf]
        %v1911 = vld [vmem:[%s1907 + $0xc] sm:$0x7]
        %v1912 = vrot.slane %v1101, 1
        %v1917 = vunpack.c.l.b16 %v1908
        %v1918 = vunpack.c.l.b16 %v1909
        %v1919 = vunpack.c.l.b16 %v1910
        %v1920 = vunpack.c.l.b16 %v1911
        %v1921 = vpack.c.b16 %v1918, %v1917
        %v1922 = vpack.c.b16 %v1920, %v1919
        %v1925 = vsel %vm1118, %v1912, 0
        %v1928 = vsel %vm483, %v1922, 0
        %1930 = vmatpush.bf16.msra.mxu0 0
        %1931 = vmatpush.bf16.msra.mxu0 0
        %1932 = vmatpush.bf16.msra.mxu0 0
        %1933 = vmatpush.bf16.msra.mxu0 0
        %1934 = vmatpush.bf16.msra.mxu0 0
        %1935 = vmatpush.bf16.msra.mxu0 0
        %1936 = vmatpush.bf16.msra.mxu0 %v1928
        %1937 = vmatpush.bf16.msra.mxu0 %v1921
        %1938 = vmatmul.bf16.gmra.mxu0 %v1925
        %v1939 = vpop.f32.mrf.mxu0
        %v1940 = vadd.f32 0.0, %v1939
        %v1941 = vpop.f32.mrf.mxu0
        %1942 = vdwg.mxu0
        %v1943 = vadd.f32 %v1906, %v1940
        %s1944 = scalar_lea.vmem %s3, 352
        %v1945 = vld [vmem:[%s1944] sm:$0xf]
        %v1946 = vld [vmem:[%s1944 + $0x4] sm:$0xf]
        %v1947 = vld [vmem:[%s1944 + $0x8] sm:$0xf]
        %v1948 = vld [vmem:[%s1944 + $0xc] sm:$0x7]
        %1949 = vrot.lane.b32.xlu0 %v1875, 122
        %v1950 = vpop.permute.xlu0 %1949
        %v1955 = vunpack.c.l.b16 %v1945
        %v1956 = vunpack.c.l.b16 %v1946
        %v1957 = vunpack.c.l.b16 %v1947
        %v1958 = vunpack.c.l.b16 %v1948
        %v1959 = vpack.c.b16 %v1956, %v1955
        %v1960 = vpack.c.b16 %v1958, %v1957
        %v1963 = vsel %vm1118, %v1950, 0
        %v1966 = vsel %vm483, %v1960, 0
        %1968 = vmatpush.bf16.msra.mxu0 0
        %1969 = vmatpush.bf16.msra.mxu0 0
        %1970 = vmatpush.bf16.msra.mxu0 0
        %1971 = vmatpush.bf16.msra.mxu0 0
        %1972 = vmatpush.bf16.msra.mxu0 0
        %1973 = vmatpush.bf16.msra.mxu0 0
        %1974 = vmatpush.bf16.msra.mxu0 %v1966
        %1975 = vmatpush.bf16.msra.mxu0 %v1959
        %1976 = vmatmul.bf16.gmra.mxu0 %v1963
        %v1977 = vpop.f32.mrf.mxu0
        %v1978 = vadd.f32 0.0, %v1977
        %v1979 = vpop.f32.mrf.mxu0
        %1980 = vdwg.mxu0
        %v1981 = vadd.f32 %v1943, %v1978
        %s1982 = scalar_lea.vmem %s3, 368
        %v1983 = vld [vmem:[%s1982] sm:$0xf]
        %v1984 = vld [vmem:[%s1982 + $0x4] sm:$0xf]
        %v1985 = vld [vmem:[%s1982 + $0x8] sm:$0xf]
        %v1986 = vld [vmem:[%s1982 + $0xc] sm:$0x7]
        %1987 = vrot.lane.b32.xlu0 %v1912, 122
        %v1988 = vpop.permute.xlu0 %1987
        %v1993 = vunpack.c.l.b16 %v1983
        %v1994 = vunpack.c.l.b16 %v1984
        %v1995 = vunpack.c.l.b16 %v1985
        %v1996 = vunpack.c.l.b16 %v1986
        %v1997 = vpack.c.b16 %v1994, %v1993
        %v1998 = vpack.c.b16 %v1996, %v1995
        %v2001 = vsel %vm1118, %v1988, 0
        %v2004 = vsel %vm483, %v1998, 0
        %2006 = vmatpush.bf16.msra.mxu0 0
        %2007 = vmatpush.bf16.msra.mxu0 0
        %2008 = vmatpush.bf16.msra.mxu0 0
        %2009 = vmatpush.bf16.msra.mxu0 0
        %2010 = vmatpush.bf16.msra.mxu0 0
        %2011 = vmatpush.bf16.msra.mxu0 0
        %2012 = vmatpush.bf16.msra.mxu0 %v2004
        %2013 = vmatpush.bf16.msra.mxu0 %v1997
        %2014 = vmatmul.bf16.gmra.mxu0 %v2001
        %v2015 = vpop.f32.mrf.mxu0
        %v2016 = vadd.f32 0.0, %v2015
        %v2017 = vpop.f32.mrf.mxu0
        %2018 = vdwg.mxu0
        %v2019 = vadd.f32 %v1981, %v2016
        %s2020 = scalar_lea.vmem %s3, 384
        %v2021 = vld [vmem:[%s2020] sm:$0xf]
        %v2022 = vld [vmem:[%s2020 + $0x4] sm:$0xf]
        %v2023 = vld [vmem:[%s2020 + $0x8] sm:$0xf]
        %v2024 = vld [vmem:[%s2020 + $0xc] sm:$0x7]
        %2025 = vrot.lane.b32.xlu0 %v1875, 116
        %v2026 = vpop.permute.xlu0 %2025
        %v2031 = vunpack.c.l.b16 %v2021
        %v2032 = vunpack.c.l.b16 %v2022
        %v2033 = vunpack.c.l.b16 %v2023
        %v2034 = vunpack.c.l.b16 %v2024
        %v2035 = vpack.c.b16 %v2032, %v2031
        %v2036 = vpack.c.b16 %v2034, %v2033
        %v2039 = vsel %vm1118, %v2026, 0
        %v2042 = vsel %vm483, %v2036, 0
        %2044 = vmatpush.bf16.msra.mxu0 0
        %2045 = vmatpush.bf16.msra.mxu0 0
        %2046 = vmatpush.bf16.msra.mxu0 0
        %2047 = vmatpush.bf16.msra.mxu0 0
        %2048 = vmatpush.bf16.msra.mxu0 0
        %2049 = vmatpush.bf16.msra.mxu0 0
        %2050 = vmatpush.bf16.msra.mxu0 %v2042
        %2051 = vmatpush.bf16.msra.mxu0 %v2035
        %2052 = vmatmul.bf16.gmra.mxu0 %v2039
        %v2053 = vpop.f32.mrf.mxu0
        %v2054 = vadd.f32 0.0, %v2053
        %v2055 = vpop.f32.mrf.mxu0
        %2056 = vdwg.mxu0
        %v2057 = vadd.f32 %v2019, %v2054
        %2058 = vmatpush.bf16.msra.mxu0 0
        %2059 = vmatpush.bf16.msra.mxu0 0
        %2060 = vmatpush.bf16.msra.mxu0 0
        %2061 = vmatpush.bf16.msra.mxu0 0
        %2062 = vmatpush.bf16.msra.mxu0 0
        %2063 = vmatpush.bf16.msra.mxu0 0
        %2064 = vmatpush.bf16.msra.mxu0 %v1123
        %2065 = vmatpush.bf16.msra.mxu0 %v1115
        %2066 = vmatmul.bf16.gmra.mxu0 %v1188
        %v2067 = vpop.f32.mrf.mxu0
        %v2068 = vadd.f32 0.0, %v2067
        %v2069 = vpop.f32.mrf.mxu0
        %2070 = vdwg.mxu0
        %2071 = vmatpush.bf16.msra.mxu0 0
        %2072 = vmatpush.bf16.msra.mxu0 0
        %2073 = vmatpush.bf16.msra.mxu0 0
        %2074 = vmatpush.bf16.msra.mxu0 0
        %2075 = vmatpush.bf16.msra.mxu0 0
        %2076 = vmatpush.bf16.msra.mxu0 0
        %2077 = vmatpush.bf16.msra.mxu0 %v1153
        %2078 = vmatpush.bf16.msra.mxu0 %v1146
        %2079 = vmatmul.bf16.gmra.mxu0 %v1120
        %v2080 = vpop.f32.mrf.mxu0
        %v2081 = vadd.f32 %v2068, %v2080
        %v2082 = vpop.f32.mrf.mxu0
        %2083 = vdwg.mxu0
        %2084 = vmatpush.bf16.msra.mxu0 0
        %2085 = vmatpush.bf16.msra.mxu0 0
        %2086 = vmatpush.bf16.msra.mxu0 0
        %2087 = vmatpush.bf16.msra.mxu0 0
        %2088 = vmatpush.bf16.msra.mxu0 0
        %2089 = vmatpush.bf16.msra.mxu0 0
        %2090 = vmatpush.bf16.msra.mxu0 %v1191
        %2091 = vmatpush.bf16.msra.mxu0 %v1184
        %2092 = vmatmul.bf16.gmra.mxu0 %v1227
        %v2093 = vpop.f32.mrf.mxu0
        %v2094 = vadd.f32 0.0, %v2093
        %v2095 = vpop.f32.mrf.mxu0
        %2096 = vdwg.mxu0
        %v2097 = vadd.f32 %v2081, %v2094
        %2098 = vmatpush.bf16.msra.mxu0 0
        %2099 = vmatpush.bf16.msra.mxu0 0
        %2100 = vmatpush.bf16.msra.mxu0 0
        %2101 = vmatpush.bf16.msra.mxu0 0
        %2102 = vmatpush.bf16.msra.mxu0 0
        %2103 = vmatpush.bf16.msra.mxu0 0
        %2104 = vmatpush.bf16.msra.mxu0 %v1230
        %2105 = vmatpush.bf16.msra.mxu0 %v1223
        %2106 = vmatmul.bf16.gmra.mxu0 %v1265
        %v2107 = vpop.f32.mrf.mxu0
        %v2108 = vadd.f32 0.0, %v2107
        %v2109 = vpop.f32.mrf.mxu0
        %2110 = vdwg.mxu0
        %v2111 = vadd.f32 %v2097, %v2108
        %2112 = vrot.lane.b32.xlu0 %v1101, 116
        %v2113 = vpop.permute.xlu0 %2112
        %v2115 = vsel %vm1118, %v2113, 0
        %2117 = vmatpush.bf16.msra.mxu0 0
        %2118 = vmatpush.bf16.msra.mxu0 0
        %2119 = vmatpush.bf16.msra.mxu0 0
        %2120 = vmatpush.bf16.msra.mxu0 0
        %2121 = vmatpush.bf16.msra.mxu0 0
        %2122 = vmatpush.bf16.msra.mxu0 0
        %2123 = vmatpush.bf16.msra.mxu0 %v1268
        %2124 = vmatpush.bf16.msra.mxu0 %v1261
        %2125 = vmatmul.bf16.gmra.mxu0 %v2115
        %v2126 = vpop.f32.mrf.mxu0
        %v2127 = vadd.f32 0.0, %v2126
        %v2128 = vpop.f32.mrf.mxu0
        %2129 = vdwg.mxu0
        %v2130 = vadd.f32 %v2111, %v2127
        %2131 = vmatpush.bf16.msra.mxu0 0
        %2132 = vmatpush.bf16.msra.mxu0 0
        %2133 = vmatpush.bf16.msra.mxu0 0
        %2134 = vmatpush.bf16.msra.mxu0 0
        %2135 = vmatpush.bf16.msra.mxu0 0
        %2136 = vmatpush.bf16.msra.mxu0 0
        %2137 = vmatpush.bf16.msra.mxu0 %v1305
        %2138 = vmatpush.bf16.msra.mxu0 %v1298
        %2139 = vmatmul.bf16.gmra.mxu0 %v1339
        %v2140 = vpop.f32.mrf.mxu0
        %v2141 = vadd.f32 0.0, %v2140
        %v2142 = vpop.f32.mrf.mxu0
        %2143 = vdwg.mxu0
        %v2144 = vadd.f32 %v2130, %v2141
        %2145 = vmatpush.bf16.msra.mxu0 0
        %2146 = vmatpush.bf16.msra.mxu0 0
        %2147 = vmatpush.bf16.msra.mxu0 0
        %2148 = vmatpush.bf16.msra.mxu0 0
        %2149 = vmatpush.bf16.msra.mxu0 0
        %2150 = vmatpush.bf16.msra.mxu0 0
        %2151 = vmatpush.bf16.msra.mxu0 %v1342
        %2152 = vmatpush.bf16.msra.mxu0 %v1335
        %2153 = vmatmul.bf16.gmra.mxu0 %v1378
        %v2154 = vpop.f32.mrf.mxu0
        %v2155 = vadd.f32 0.0, %v2154
        %v2156 = vpop.f32.mrf.mxu0
        %2157 = vdwg.mxu0
        %v2158 = vadd.f32 %v2144, %v2155
        %2159 = vmatpush.bf16.msra.mxu0 0
        %2160 = vmatpush.bf16.msra.mxu0 0
        %2161 = vmatpush.bf16.msra.mxu0 0
        %2162 = vmatpush.bf16.msra.mxu0 0
        %2163 = vmatpush.bf16.msra.mxu0 0
        %2164 = vmatpush.bf16.msra.mxu0 0
        %2165 = vmatpush.bf16.msra.mxu0 %v1381
        %2166 = vmatpush.bf16.msra.mxu0 %v1374
        %2167 = vmatmul.bf16.gmra.mxu0 %v1417
        %v2168 = vpop.f32.mrf.mxu0
        %v2169 = vadd.f32 0.0, %v2168
        %v2170 = vpop.f32.mrf.mxu0
        %2171 = vdwg.mxu0
        %v2172 = vadd.f32 %v2158, %v2169
        %2173 = vmatpush.bf16.msra.mxu0 0
        %2174 = vmatpush.bf16.msra.mxu0 0
        %2175 = vmatpush.bf16.msra.mxu0 0
        %2176 = vmatpush.bf16.msra.mxu0 0
        %2177 = vmatpush.bf16.msra.mxu0 0
        %2178 = vmatpush.bf16.msra.mxu0 0
        %2179 = vmatpush.bf16.msra.mxu0 %v1420
        %2180 = vmatpush.bf16.msra.mxu0 %v1413
        %2181 = vmatmul.bf16.gmra.mxu0 %v1455
        %v2182 = vpop.f32.mrf.mxu0
        %v2183 = vadd.f32 0.0, %v2182
        %v2184 = vpop.f32.mrf.mxu0
        %2185 = vdwg.mxu0
        %v2186 = vadd.f32 %v2172, %v2183
        %2187 = vrot.lane.b32.xlu0 %v1321, 116
        %v2188 = vpop.permute.xlu0 %2187
        %v2190 = vsel %vm1118, %v2188, 0
        %2192 = vmatpush.bf16.msra.mxu0 0
        %2193 = vmatpush.bf16.msra.mxu0 0
        %2194 = vmatpush.bf16.msra.mxu0 0
        %2195 = vmatpush.bf16.msra.mxu0 0
        %2196 = vmatpush.bf16.msra.mxu0 0
        %2197 = vmatpush.bf16.msra.mxu0 0
        %2198 = vmatpush.bf16.msra.mxu0 %v1458
        %2199 = vmatpush.bf16.msra.mxu0 %v1451
        %2200 = vmatmul.bf16.gmra.mxu0 %v2190
        %v2201 = vpop.f32.mrf.mxu0
        %v2202 = vadd.f32 0.0, %v2201
        %v2203 = vpop.f32.mrf.mxu0
        %2204 = vdwg.mxu0
        %v2205 = vadd.f32 %v2186, %v2202
        %2206 = vmatpush.bf16.msra.mxu0 0
        %2207 = vmatpush.bf16.msra.mxu0 0
        %2208 = vmatpush.bf16.msra.mxu0 0
        %2209 = vmatpush.bf16.msra.mxu0 0
        %2210 = vmatpush.bf16.msra.mxu0 0
        %2211 = vmatpush.bf16.msra.mxu0 0
        %2212 = vmatpush.bf16.msra.mxu0 %v1500
        %2213 = vmatpush.bf16.msra.mxu0 %v1493
        %2214 = vmatmul.bf16.gmra.mxu0 %v1539
        %v2215 = vpop.f32.mrf.mxu0
        %v2216 = vadd.f32 0.0, %v2215
        %v2217 = vpop.f32.mrf.mxu0
        %2218 = vdwg.mxu0
        %v2219 = vadd.f32 %v2205, %v2216
        %2220 = vmatpush.bf16.msra.mxu0 0
        %2221 = vmatpush.bf16.msra.mxu0 0
        %2222 = vmatpush.bf16.msra.mxu0 0
        %2223 = vmatpush.bf16.msra.mxu0 0
        %2224 = vmatpush.bf16.msra.mxu0 0
        %2225 = vmatpush.bf16.msra.mxu0 0
        %2226 = vmatpush.bf16.msra.mxu0 %v1542
        %2227 = vmatpush.bf16.msra.mxu0 %v1535
        %2228 = vmatmul.bf16.gmra.mxu0 %v1577
        %v2229 = vpop.f32.mrf.mxu0
        %v2230 = vadd.f32 0.0, %v2229
        %v2231 = vpop.f32.mrf.mxu0
        %2232 = vdwg.mxu0
        %v2233 = vadd.f32 %v2219, %v2230
        %2234 = vmatpush.bf16.msra.mxu0 0
        %2235 = vmatpush.bf16.msra.mxu0 0
        %2236 = vmatpush.bf16.msra.mxu0 0
        %2237 = vmatpush.bf16.msra.mxu0 0
        %2238 = vmatpush.bf16.msra.mxu0 0
        %2239 = vmatpush.bf16.msra.mxu0 0
        %2240 = vmatpush.bf16.msra.mxu0 %v1580
        %2241 = vmatpush.bf16.msra.mxu0 %v1573
        %2242 = vmatmul.bf16.gmra.mxu0 %v1615
        %v2243 = vpop.f32.mrf.mxu0
        %v2244 = vadd.f32 0.0, %v2243
        %v2245 = vpop.f32.mrf.mxu0
        %2246 = vdwg.mxu0
        %v2247 = vadd.f32 %v2233, %v2244
        %2248 = vmatpush.bf16.msra.mxu0 0
        %2249 = vmatpush.bf16.msra.mxu0 0
        %2250 = vmatpush.bf16.msra.mxu0 0
        %2251 = vmatpush.bf16.msra.mxu0 0
        %2252 = vmatpush.bf16.msra.mxu0 0
        %2253 = vmatpush.bf16.msra.mxu0 0
        %2254 = vmatpush.bf16.msra.mxu0 %v1618
        %2255 = vmatpush.bf16.msra.mxu0 %v1611
        %2256 = vmatmul.bf16.gmra.mxu0 %v1653
        %v2257 = vpop.f32.mrf.mxu0
        %v2258 = vadd.f32 0.0, %v2257
        %v2259 = vpop.f32.mrf.mxu0
        %2260 = vdwg.mxu0
        %v2261 = vadd.f32 %v2247, %v2258
        %2262 = vrot.lane.b32.xlu0 %v1526, 116
        %v2263 = vpop.permute.xlu0 %2262
        %v2265 = vsel %vm1118, %v2263, 0
        %2267 = vmatpush.bf16.msra.mxu0 0
        %2268 = vmatpush.bf16.msra.mxu0 0
        %2269 = vmatpush.bf16.msra.mxu0 0
        %2270 = vmatpush.bf16.msra.mxu0 0
        %2271 = vmatpush.bf16.msra.mxu0 0
        %2272 = vmatpush.bf16.msra.mxu0 0
        %2273 = vmatpush.bf16.msra.mxu0 %v1656
        %2274 = vmatpush.bf16.msra.mxu0 %v1649
        %2275 = vmatmul.bf16.gmra.mxu0 %v2265
        %v2276 = vpop.f32.mrf.mxu0
        %v2277 = vadd.f32 0.0, %v2276
        %v2278 = vpop.f32.mrf.mxu0
        %2279 = vdwg.mxu0
        %v2280 = vadd.f32 %v2261, %v2277
        %2281 = vmatpush.bf16.msra.mxu0 0
        %2282 = vmatpush.bf16.msra.mxu0 0
        %2283 = vmatpush.bf16.msra.mxu0 0
        %2284 = vmatpush.bf16.msra.mxu0 0
        %2285 = vmatpush.bf16.msra.mxu0 0
        %2286 = vmatpush.bf16.msra.mxu0 0
        %2287 = vmatpush.bf16.msra.mxu0 %v1698
        %2288 = vmatpush.bf16.msra.mxu0 %v1691
        %2289 = vmatmul.bf16.gmra.mxu0 %v1737
        %v2290 = vpop.f32.mrf.mxu0
        %v2291 = vadd.f32 0.0, %v2290
        %v2292 = vpop.f32.mrf.mxu0
        %2293 = vdwg.mxu0
        %v2294 = vadd.f32 %v2280, %v2291
        %2295 = vmatpush.bf16.msra.mxu0 0
        %2296 = vmatpush.bf16.msra.mxu0 0
        %2297 = vmatpush.bf16.msra.mxu0 0
        %2298 = vmatpush.bf16.msra.mxu0 0
        %2299 = vmatpush.bf16.msra.mxu0 0
        %2300 = vmatpush.bf16.msra.mxu0 0
        %2301 = vmatpush.bf16.msra.mxu0 %v1740
        %2302 = vmatpush.bf16.msra.mxu0 %v1733
        %2303 = vmatmul.bf16.gmra.mxu0 %v1775
        %v2304 = vpop.f32.mrf.mxu0
        %v2305 = vadd.f32 0.0, %v2304
        %v2306 = vpop.f32.mrf.mxu0
        %2307 = vdwg.mxu0
        %v2308 = vadd.f32 %v2294, %v2305
        %2309 = vmatpush.bf16.msra.mxu0 0
        %2310 = vmatpush.bf16.msra.mxu0 0
        %2311 = vmatpush.bf16.msra.mxu0 0
        %2312 = vmatpush.bf16.msra.mxu0 0
        %2313 = vmatpush.bf16.msra.mxu0 0
        %2314 = vmatpush.bf16.msra.mxu0 0
        %2315 = vmatpush.bf16.msra.mxu0 %v1778
        %2316 = vmatpush.bf16.msra.mxu0 %v1771
        %2317 = vmatmul.bf16.gmra.mxu0 %v1813
        %v2318 = vpop.f32.mrf.mxu0
        %v2319 = vadd.f32 0.0, %v2318
        %v2320 = vpop.f32.mrf.mxu0
        %2321 = vdwg.mxu0
        %v2322 = vadd.f32 %v2308, %v2319
        %2323 = vmatpush.bf16.msra.mxu0 0
        %2324 = vmatpush.bf16.msra.mxu0 0
        %2325 = vmatpush.bf16.msra.mxu0 0
        %2326 = vmatpush.bf16.msra.mxu0 0
        %2327 = vmatpush.bf16.msra.mxu0 0
        %2328 = vmatpush.bf16.msra.mxu0 0
        %2329 = vmatpush.bf16.msra.mxu0 %v1816
        %2330 = vmatpush.bf16.msra.mxu0 %v1809
        %2331 = vmatmul.bf16.gmra.mxu0 %v1851
        %v2332 = vpop.f32.mrf.mxu0
        %v2333 = vadd.f32 0.0, %v2332
        %v2334 = vpop.f32.mrf.mxu0
        %2335 = vdwg.mxu0
        %v2336 = vadd.f32 %v2322, %v2333
        %2337 = vrot.lane.b32.xlu0 %v1724, 116
        %v2338 = vpop.permute.xlu0 %2337
        %v2340 = vsel %vm1118, %v2338, 0
        %2342 = vmatpush.bf16.msra.mxu0 0
        %2343 = vmatpush.bf16.msra.mxu0 0
        %2344 = vmatpush.bf16.msra.mxu0 0
        %2345 = vmatpush.bf16.msra.mxu0 0
        %2346 = vmatpush.bf16.msra.mxu0 0
        %2347 = vmatpush.bf16.msra.mxu0 0
        %2348 = vmatpush.bf16.msra.mxu0 %v1854
        %2349 = vmatpush.bf16.msra.mxu0 %v1847
        %2350 = vmatmul.bf16.gmra.mxu0 %v2340
        %v2351 = vpop.f32.mrf.mxu0
        %v2352 = vadd.f32 0.0, %v2351
        %v2353 = vpop.f32.mrf.mxu0
        %2354 = vdwg.mxu0
        %v2355 = vadd.f32 %v2336, %v2352
        %2356 = vmatpush.bf16.msra.mxu0 0
        %2357 = vmatpush.bf16.msra.mxu0 0
        %2358 = vmatpush.bf16.msra.mxu0 0
        %2359 = vmatpush.bf16.msra.mxu0 0
        %2360 = vmatpush.bf16.msra.mxu0 0
        %2361 = vmatpush.bf16.msra.mxu0 0
        %2362 = vmatpush.bf16.msra.mxu0 %v1891
        %2363 = vmatpush.bf16.msra.mxu0 %v1884
        %2364 = vmatmul.bf16.gmra.mxu0 %v1925
        %v2365 = vpop.f32.mrf.mxu0
        %v2366 = vadd.f32 0.0, %v2365
        %v2367 = vpop.f32.mrf.mxu0
        %2368 = vdwg.mxu0
        %v2369 = vadd.f32 %v2355, %v2366
        %2370 = vmatpush.bf16.msra.mxu0 0
        %2371 = vmatpush.bf16.msra.mxu0 0
        %2372 = vmatpush.bf16.msra.mxu0 0
        %2373 = vmatpush.bf16.msra.mxu0 0
        %2374 = vmatpush.bf16.msra.mxu0 0
        %2375 = vmatpush.bf16.msra.mxu0 0
        %2376 = vmatpush.bf16.msra.mxu0 %v1928
        %2377 = vmatpush.bf16.msra.mxu0 %v1921
        %2378 = vmatmul.bf16.gmra.mxu0 %v1963
        %v2379 = vpop.f32.mrf.mxu0
        %v2380 = vadd.f32 0.0, %v2379
        %v2381 = vpop.f32.mrf.mxu0
        %2382 = vdwg.mxu0
        %v2383 = vadd.f32 %v2369, %v2380
        %2384 = vmatpush.bf16.msra.mxu0 0
        %2385 = vmatpush.bf16.msra.mxu0 0
        %2386 = vmatpush.bf16.msra.mxu0 0
        %2387 = vmatpush.bf16.msra.mxu0 0
        %2388 = vmatpush.bf16.msra.mxu0 0
        %2389 = vmatpush.bf16.msra.mxu0 0
        %2390 = vmatpush.bf16.msra.mxu0 %v1966
        %2391 = vmatpush.bf16.msra.mxu0 %v1959
        %2392 = vmatmul.bf16.gmra.mxu0 %v2001
        %v2393 = vpop.f32.mrf.mxu0
        %v2394 = vadd.f32 0.0, %v2393
        %v2395 = vpop.f32.mrf.mxu0
        %2396 = vdwg.mxu0
        %v2397 = vadd.f32 %v2383, %v2394
        %2398 = vmatpush.bf16.msra.mxu0 0
        %2399 = vmatpush.bf16.msra.mxu0 0
        %2400 = vmatpush.bf16.msra.mxu0 0
        %2401 = vmatpush.bf16.msra.mxu0 0
        %2402 = vmatpush.bf16.msra.mxu0 0
        %2403 = vmatpush.bf16.msra.mxu0 0
        %2404 = vmatpush.bf16.msra.mxu0 %v2004
        %2405 = vmatpush.bf16.msra.mxu0 %v1997
        %2406 = vmatmul.bf16.gmra.mxu0 %v2039
        %v2407 = vpop.f32.mrf.mxu0
        %v2408 = vadd.f32 0.0, %v2407
        %v2409 = vpop.f32.mrf.mxu0
        %2410 = vdwg.mxu0
        %v2411 = vadd.f32 %v2397, %v2408
        %2412 = vrot.lane.b32.xlu0 %v1912, 116
        %v2413 = vpop.permute.xlu0 %2412
        %v2415 = vsel %vm1118, %v2413, 0
        %2417 = vmatpush.bf16.msra.mxu0 0
        %2418 = vmatpush.bf16.msra.mxu0 0
        %2419 = vmatpush.bf16.msra.mxu0 0
        %2420 = vmatpush.bf16.msra.mxu0 0
        %2421 = vmatpush.bf16.msra.mxu0 0
        %2422 = vmatpush.bf16.msra.mxu0 0
        %2423 = vmatpush.bf16.msra.mxu0 %v2042
        %2424 = vmatpush.bf16.msra.mxu0 %v2035
        %2425 = vmatmul.bf16.gmra.mxu0 %v2415
        %v2426 = vpop.f32.mrf.mxu0
        %v2427 = vadd.f32 0.0, %v2426
        %v2428 = vpop.f32.mrf.mxu0
        %2429 = vdwg.mxu0
        %v2430 = vadd.f32 %v2411, %v2427
        %v2431 = vmax.f32 %v2057, %v2430
        %2432 = vmatpush.bf16.msra.mxu0 0
        %2433 = vmatpush.bf16.msra.mxu0 0
        %2434 = vmatpush.bf16.msra.mxu0 0
        %2435 = vmatpush.bf16.msra.mxu0 0
        %2436 = vmatpush.bf16.msra.mxu0 0
        %2437 = vmatpush.bf16.msra.mxu0 0
        %2438 = vmatpush.bf16.msra.mxu0 %v1123
        %2439 = vmatpush.bf16.msra.mxu0 %v1115
        %2440 = vmatmul.bf16.gmra.mxu0 %v1339
        %v2441 = vpop.f32.mrf.mxu0
        %v2442 = vadd.f32 0.0, %v2441
        %v2443 = vpop.f32.mrf.mxu0
        %2444 = vdwg.mxu0
        %2445 = vmatpush.bf16.msra.mxu0 0
        %2446 = vmatpush.bf16.msra.mxu0 0
        %2447 = vmatpush.bf16.msra.mxu0 0
        %2448 = vmatpush.bf16.msra.mxu0 0
        %2449 = vmatpush.bf16.msra.mxu0 0
        %2450 = vmatpush.bf16.msra.mxu0 0
        %2451 = vmatpush.bf16.msra.mxu0 %v1153
        %2452 = vmatpush.bf16.msra.mxu0 %v1146
        %2453 = vmatmul.bf16.gmra.mxu0 %v1302
        %v2454 = vpop.f32.mrf.mxu0
        %v2455 = vadd.f32 %v2442, %v2454
        %v2456 = vpop.f32.mrf.mxu0
        %2457 = vdwg.mxu0
        %2458 = vmatpush.bf16.msra.mxu0 0
        %2459 = vmatpush.bf16.msra.mxu0 0
        %2460 = vmatpush.bf16.msra.mxu0 0
        %2461 = vmatpush.bf16.msra.mxu0 0
        %2462 = vmatpush.bf16.msra.mxu0 0
        %2463 = vmatpush.bf16.msra.mxu0 0
        %2464 = vmatpush.bf16.msra.mxu0 %v1191
        %2465 = vmatpush.bf16.msra.mxu0 %v1184
        %2466 = vmatmul.bf16.gmra.mxu0 %v1378
        %v2467 = vpop.f32.mrf.mxu0
        %v2468 = vadd.f32 0.0, %v2467
        %v2469 = vpop.f32.mrf.mxu0
        %2470 = vdwg.mxu0
        %v2471 = vadd.f32 %v2455, %v2468
        %2472 = vmatpush.bf16.msra.mxu0 0
        %2473 = vmatpush.bf16.msra.mxu0 0
        %2474 = vmatpush.bf16.msra.mxu0 0
        %2475 = vmatpush.bf16.msra.mxu0 0
        %2476 = vmatpush.bf16.msra.mxu0 0
        %2477 = vmatpush.bf16.msra.mxu0 0
        %2478 = vmatpush.bf16.msra.mxu0 %v1230
        %2479 = vmatpush.bf16.msra.mxu0 %v1223
        %2480 = vmatmul.bf16.gmra.mxu0 %v1417
        %v2481 = vpop.f32.mrf.mxu0
        %v2482 = vadd.f32 0.0, %v2481
        %v2483 = vpop.f32.mrf.mxu0
        %2484 = vdwg.mxu0
        %v2485 = vadd.f32 %v2471, %v2482
        %2486 = vmatpush.bf16.msra.mxu0 0
        %2487 = vmatpush.bf16.msra.mxu0 0
        %2488 = vmatpush.bf16.msra.mxu0 0
        %2489 = vmatpush.bf16.msra.mxu0 0
        %2490 = vmatpush.bf16.msra.mxu0 0
        %2491 = vmatpush.bf16.msra.mxu0 0
        %2492 = vmatpush.bf16.msra.mxu0 %v1268
        %2493 = vmatpush.bf16.msra.mxu0 %v1261
        %2494 = vmatmul.bf16.gmra.mxu0 %v1455
        %v2495 = vpop.f32.mrf.mxu0
        %v2496 = vadd.f32 0.0, %v2495
        %v2497 = vpop.f32.mrf.mxu0
        %2498 = vdwg.mxu0
        %v2499 = vadd.f32 %v2485, %v2496
        %2500 = vmatpush.bf16.msra.mxu0 0
        %2501 = vmatpush.bf16.msra.mxu0 0
        %2502 = vmatpush.bf16.msra.mxu0 0
        %2503 = vmatpush.bf16.msra.mxu0 0
        %2504 = vmatpush.bf16.msra.mxu0 0
        %2505 = vmatpush.bf16.msra.mxu0 0
        %2506 = vmatpush.bf16.msra.mxu0 %v1305
        %2507 = vmatpush.bf16.msra.mxu0 %v1298
        %2508 = vmatmul.bf16.gmra.mxu0 %v1497
        %v2509 = vpop.f32.mrf.mxu0
        %v2510 = vadd.f32 0.0, %v2509
        %v2511 = vpop.f32.mrf.mxu0
        %2512 = vdwg.mxu0
        %v2513 = vadd.f32 %v2499, %v2510
        %2514 = vmatpush.bf16.msra.mxu0 0
        %2515 = vmatpush.bf16.msra.mxu0 0
        %2516 = vmatpush.bf16.msra.mxu0 0
        %2517 = vmatpush.bf16.msra.mxu0 0
        %2518 = vmatpush.bf16.msra.mxu0 0
        %2519 = vmatpush.bf16.msra.mxu0 0
        %2520 = vmatpush.bf16.msra.mxu0 %v1342
        %2521 = vmatpush.bf16.msra.mxu0 %v1335
        %2522 = vmatmul.bf16.gmra.mxu0 %v1539
        %v2523 = vpop.f32.mrf.mxu0
        %v2524 = vadd.f32 0.0, %v2523
        %v2525 = vpop.f32.mrf.mxu0
        %2526 = vdwg.mxu0
        %v2527 = vadd.f32 %v2513, %v2524
        %2528 = vmatpush.bf16.msra.mxu0 0
        %2529 = vmatpush.bf16.msra.mxu0 0
        %2530 = vmatpush.bf16.msra.mxu0 0
        %2531 = vmatpush.bf16.msra.mxu0 0
        %2532 = vmatpush.bf16.msra.mxu0 0
        %2533 = vmatpush.bf16.msra.mxu0 0
        %2534 = vmatpush.bf16.msra.mxu0 %v1381
        %2535 = vmatpush.bf16.msra.mxu0 %v1374
        %2536 = vmatmul.bf16.gmra.mxu0 %v1577
        %v2537 = vpop.f32.mrf.mxu0
        %v2538 = vadd.f32 0.0, %v2537
        %v2539 = vpop.f32.mrf.mxu0
        %2540 = vdwg.mxu0
        %v2541 = vadd.f32 %v2527, %v2538
        %2542 = vmatpush.bf16.msra.mxu0 0
        %2543 = vmatpush.bf16.msra.mxu0 0
        %2544 = vmatpush.bf16.msra.mxu0 0
        %2545 = vmatpush.bf16.msra.mxu0 0
        %2546 = vmatpush.bf16.msra.mxu0 0
        %2547 = vmatpush.bf16.msra.mxu0 0
        %2548 = vmatpush.bf16.msra.mxu0 %v1420
        %2549 = vmatpush.bf16.msra.mxu0 %v1413
        %2550 = vmatmul.bf16.gmra.mxu0 %v1615
        %v2551 = vpop.f32.mrf.mxu0
        %v2552 = vadd.f32 0.0, %v2551
        %v2553 = vpop.f32.mrf.mxu0
        %2554 = vdwg.mxu0
        %v2555 = vadd.f32 %v2541, %v2552
        %2556 = vmatpush.bf16.msra.mxu0 0
        %2557 = vmatpush.bf16.msra.mxu0 0
        %2558 = vmatpush.bf16.msra.mxu0 0
        %2559 = vmatpush.bf16.msra.mxu0 0
        %2560 = vmatpush.bf16.msra.mxu0 0
        %2561 = vmatpush.bf16.msra.mxu0 0
        %2562 = vmatpush.bf16.msra.mxu0 %v1458
        %2563 = vmatpush.bf16.msra.mxu0 %v1451
        %2564 = vmatmul.bf16.gmra.mxu0 %v1653
        %v2565 = vpop.f32.mrf.mxu0
        %v2566 = vadd.f32 0.0, %v2565
        %v2567 = vpop.f32.mrf.mxu0
        %2568 = vdwg.mxu0
        %v2569 = vadd.f32 %v2555, %v2566
        %2570 = vmatpush.bf16.msra.mxu0 0
        %2571 = vmatpush.bf16.msra.mxu0 0
        %2572 = vmatpush.bf16.msra.mxu0 0
        %2573 = vmatpush.bf16.msra.mxu0 0
        %2574 = vmatpush.bf16.msra.mxu0 0
        %2575 = vmatpush.bf16.msra.mxu0 0
        %2576 = vmatpush.bf16.msra.mxu0 %v1500
        %2577 = vmatpush.bf16.msra.mxu0 %v1493
        %2578 = vmatmul.bf16.gmra.mxu0 %v1695
        %v2579 = vpop.f32.mrf.mxu0
        %v2580 = vadd.f32 0.0, %v2579
        %v2581 = vpop.f32.mrf.mxu0
        %2582 = vdwg.mxu0
        %v2583 = vadd.f32 %v2569, %v2580
        %2584 = vmatpush.bf16.msra.mxu0 0
        %2585 = vmatpush.bf16.msra.mxu0 0
        %2586 = vmatpush.bf16.msra.mxu0 0
        %2587 = vmatpush.bf16.msra.mxu0 0
        %2588 = vmatpush.bf16.msra.mxu0 0
        %2589 = vmatpush.bf16.msra.mxu0 0
        %2590 = vmatpush.bf16.msra.mxu0 %v1542
        %2591 = vmatpush.bf16.msra.mxu0 %v1535
        %2592 = vmatmul.bf16.gmra.mxu0 %v1737
        %v2593 = vpop.f32.mrf.mxu0
        %v2594 = vadd.f32 0.0, %v2593
        %v2595 = vpop.f32.mrf.mxu0
        %2596 = vdwg.mxu0
        %v2597 = vadd.f32 %v2583, %v2594
        %2598 = vmatpush.bf16.msra.mxu0 0
        %2599 = vmatpush.bf16.msra.mxu0 0
        %2600 = vmatpush.bf16.msra.mxu0 0
        %2601 = vmatpush.bf16.msra.mxu0 0
        %2602 = vmatpush.bf16.msra.mxu0 0
        %2603 = vmatpush.bf16.msra.mxu0 0
        %2604 = vmatpush.bf16.msra.mxu0 %v1580
        %2605 = vmatpush.bf16.msra.mxu0 %v1573
        %2606 = vmatmul.bf16.gmra.mxu0 %v1775
        %v2607 = vpop.f32.mrf.mxu0
        %v2608 = vadd.f32 0.0, %v2607
        %v2609 = vpop.f32.mrf.mxu0
        %2610 = vdwg.mxu0
        %v2611 = vadd.f32 %v2597, %v2608
        %2612 = vmatpush.bf16.msra.mxu0 0
        %2613 = vmatpush.bf16.msra.mxu0 0
        %2614 = vmatpush.bf16.msra.mxu0 0
        %2615 = vmatpush.bf16.msra.mxu0 0
        %2616 = vmatpush.bf16.msra.mxu0 0
        %2617 = vmatpush.bf16.msra.mxu0 0
        %2618 = vmatpush.bf16.msra.mxu0 %v1618
        %2619 = vmatpush.bf16.msra.mxu0 %v1611
        %2620 = vmatmul.bf16.gmra.mxu0 %v1813
        %v2621 = vpop.f32.mrf.mxu0
        %v2622 = vadd.f32 0.0, %v2621
        %v2623 = vpop.f32.mrf.mxu0
        %2624 = vdwg.mxu0
        %v2625 = vadd.f32 %v2611, %v2622
        %2626 = vmatpush.bf16.msra.mxu0 0
        %2627 = vmatpush.bf16.msra.mxu0 0
        %2628 = vmatpush.bf16.msra.mxu0 0
        %2629 = vmatpush.bf16.msra.mxu0 0
        %2630 = vmatpush.bf16.msra.mxu0 0
        %2631 = vmatpush.bf16.msra.mxu0 0
        %2632 = vmatpush.bf16.msra.mxu0 %v1656
        %2633 = vmatpush.bf16.msra.mxu0 %v1649
        %2634 = vmatmul.bf16.gmra.mxu0 %v1851
        %v2635 = vpop.f32.mrf.mxu0
        %v2636 = vadd.f32 0.0, %v2635
        %v2637 = vpop.f32.mrf.mxu0
        %2638 = vdwg.mxu0
        %v2639 = vadd.f32 %v2625, %v2636
        %2640 = vmatpush.bf16.msra.mxu0 0
        %2641 = vmatpush.bf16.msra.mxu0 0
        %2642 = vmatpush.bf16.msra.mxu0 0
        %2643 = vmatpush.bf16.msra.mxu0 0
        %2644 = vmatpush.bf16.msra.mxu0 0
        %2645 = vmatpush.bf16.msra.mxu0 0
        %2646 = vmatpush.bf16.msra.mxu0 %v1698
        %2647 = vmatpush.bf16.msra.mxu0 %v1691
        %2648 = vmatmul.bf16.gmra.mxu0 %v1888
        %v2649 = vpop.f32.mrf.mxu0
        %v2650 = vadd.f32 0.0, %v2649
        %v2651 = vpop.f32.mrf.mxu0
        %2652 = vdwg.mxu0
        %v2653 = vadd.f32 %v2639, %v2650
        %2654 = vmatpush.bf16.msra.mxu0 0
        %2655 = vmatpush.bf16.msra.mxu0 0
        %2656 = vmatpush.bf16.msra.mxu0 0
        %2657 = vmatpush.bf16.msra.mxu0 0
        %2658 = vmatpush.bf16.msra.mxu0 0
        %2659 = vmatpush.bf16.msra.mxu0 0
        %2660 = vmatpush.bf16.msra.mxu0 %v1740
        %2661 = vmatpush.bf16.msra.mxu0 %v1733
        %2662 = vmatmul.bf16.gmra.mxu0 %v1925
        %v2663 = vpop.f32.mrf.mxu0
        %v2664 = vadd.f32 0.0, %v2663
        %v2665 = vpop.f32.mrf.mxu0
        %2666 = vdwg.mxu0
        %v2667 = vadd.f32 %v2653, %v2664
        %2668 = vmatpush.bf16.msra.mxu0 0
        %2669 = vmatpush.bf16.msra.mxu0 0
        %2670 = vmatpush.bf16.msra.mxu0 0
        %2671 = vmatpush.bf16.msra.mxu0 0
        %2672 = vmatpush.bf16.msra.mxu0 0
        %2673 = vmatpush.bf16.msra.mxu0 0
        %2674 = vmatpush.bf16.msra.mxu0 %v1778
        %2675 = vmatpush.bf16.msra.mxu0 %v1771
        %2676 = vmatmul.bf16.gmra.mxu0 %v1963
        %v2677 = vpop.f32.mrf.mxu0
        %v2678 = vadd.f32 0.0, %v2677
        %v2679 = vpop.f32.mrf.mxu0
        %2680 = vdwg.mxu0
        %v2681 = vadd.f32 %v2667, %v2678
        %2682 = vmatpush.bf16.msra.mxu0 0
        %2683 = vmatpush.bf16.msra.mxu0 0
        %2684 = vmatpush.bf16.msra.mxu0 0
        %2685 = vmatpush.bf16.msra.mxu0 0
        %2686 = vmatpush.bf16.msra.mxu0 0
        %2687 = vmatpush.bf16.msra.mxu0 0
        %2688 = vmatpush.bf16.msra.mxu0 %v1816
        %2689 = vmatpush.bf16.msra.mxu0 %v1809
        %2690 = vmatmul.bf16.gmra.mxu0 %v2001
        %v2691 = vpop.f32.mrf.mxu0
        %v2692 = vadd.f32 0.0, %v2691
        %v2693 = vpop.f32.mrf.mxu0
        %2694 = vdwg.mxu0
        %v2695 = vadd.f32 %v2681, %v2692
        %2696 = vmatpush.bf16.msra.mxu0 0
        %2697 = vmatpush.bf16.msra.mxu0 0
        %2698 = vmatpush.bf16.msra.mxu0 0
        %2699 = vmatpush.bf16.msra.mxu0 0
        %2700 = vmatpush.bf16.msra.mxu0 0
        %2701 = vmatpush.bf16.msra.mxu0 0
        %2702 = vmatpush.bf16.msra.mxu0 %v1854
        %2703 = vmatpush.bf16.msra.mxu0 %v1847
        %2704 = vmatmul.bf16.gmra.mxu0 %v2039
        %v2705 = vpop.f32.mrf.mxu0
        %v2706 = vadd.f32 0.0, %v2705
        %v2707 = vpop.f32.mrf.mxu0
        %2708 = vdwg.mxu0
        %v2709 = vadd.f32 %v2695, %v2706
        %v2710 = vrot.slane %v1284, 1
        %v2712 = vsel %vm1118, %v2710, 0
        %2714 = vmatpush.bf16.msra.mxu0 0
        %2715 = vmatpush.bf16.msra.mxu0 0
        %2716 = vmatpush.bf16.msra.mxu0 0
        %2717 = vmatpush.bf16.msra.mxu0 0
        %2718 = vmatpush.bf16.msra.mxu0 0
        %2719 = vmatpush.bf16.msra.mxu0 0
        %2720 = vmatpush.bf16.msra.mxu0 %v1891
        %2721 = vmatpush.bf16.msra.mxu0 %v1884
        %2722 = vmatmul.bf16.gmra.mxu0 %v2712
        %v2723 = vpop.f32.mrf.mxu0
        %v2724 = vadd.f32 0.0, %v2723
        %v2725 = vpop.f32.mrf.mxu0
        %2726 = vdwg.mxu0
        %v2727 = vadd.f32 %v2709, %v2724
        %v2728 = vrot.slane %v1321, 1
        %v2730 = vsel %vm1118, %v2728, 0
        %2732 = vmatpush.bf16.msra.mxu0 0
        %2733 = vmatpush.bf16.msra.mxu0 0
        %2734 = vmatpush.bf16.msra.mxu0 0
        %2735 = vmatpush.bf16.msra.mxu0 0
        %2736 = vmatpush.bf16.msra.mxu0 0
        %2737 = vmatpush.bf16.msra.mxu0 0
        %2738 = vmatpush.bf16.msra.mxu0 %v1928
        %2739 = vmatpush.bf16.msra.mxu0 %v1921
        %2740 = vmatmul.bf16.gmra.mxu0 %v2730
        %v2741 = vpop.f32.mrf.mxu0
        %v2742 = vadd.f32 0.0, %v2741
        %v2743 = vpop.f32.mrf.mxu0
        %2744 = vdwg.mxu0
        %v2745 = vadd.f32 %v2727, %v2742
        %2746 = vrot.lane.b32.xlu0 %v2710, 122
        %v2747 = vpop.permute.xlu0 %2746
        %v2749 = vsel %vm1118, %v2747, 0
        %2751 = vmatpush.bf16.msra.mxu0 0
        %2752 = vmatpush.bf16.msra.mxu0 0
        %2753 = vmatpush.bf16.msra.mxu0 0
        %2754 = vmatpush.bf16.msra.mxu0 0
        %2755 = vmatpush.bf16.msra.mxu0 0
        %2756 = vmatpush.bf16.msra.mxu0 0
        %2757 = vmatpush.bf16.msra.mxu0 %v1966
        %2758 = vmatpush.bf16.msra.mxu0 %v1959
        %2759 = vmatmul.bf16.gmra.mxu0 %v2749
        %v2760 = vpop.f32.mrf.mxu0
        %v2761 = vadd.f32 0.0, %v2760
        %v2762 = vpop.f32.mrf.mxu0
        %2763 = vdwg.mxu0
        %v2764 = vadd.f32 %v2745, %v2761
        %2765 = vrot.lane.b32.xlu0 %v2728, 122
        %v2766 = vpop.permute.xlu0 %2765
        %v2768 = vsel %vm1118, %v2766, 0
        %2770 = vmatpush.bf16.msra.mxu0 0
        %2771 = vmatpush.bf16.msra.mxu0 0
        %2772 = vmatpush.bf16.msra.mxu0 0
        %2773 = vmatpush.bf16.msra.mxu0 0
        %2774 = vmatpush.bf16.msra.mxu0 0
        %2775 = vmatpush.bf16.msra.mxu0 0
        %2776 = vmatpush.bf16.msra.mxu0 %v2004
        %2777 = vmatpush.bf16.msra.mxu0 %v1997
        %2778 = vmatmul.bf16.gmra.mxu0 %v2768
        %v2779 = vpop.f32.mrf.mxu0
        %v2780 = vadd.f32 0.0, %v2779
        %v2781 = vpop.f32.mrf.mxu0
        %2782 = vdwg.mxu0
        %v2783 = vadd.f32 %v2764, %v2780
        %2784 = vrot.lane.b32.xlu0 %v2710, 116
        %v2785 = vpop.permute.xlu0 %2784
        %v2787 = vsel %vm1118, %v2785, 0
        %2789 = vmatpush.bf16.msra.mxu0 0
        %2790 = vmatpush.bf16.msra.mxu0 0
        %2791 = vmatpush.bf16.msra.mxu0 0
        %2792 = vmatpush.bf16.msra.mxu0 0
        %2793 = vmatpush.bf16.msra.mxu0 0
        %2794 = vmatpush.bf16.msra.mxu0 0
        %2795 = vmatpush.bf16.msra.mxu0 %v2042
        %2796 = vmatpush.bf16.msra.mxu0 %v2035
        %2797 = vmatmul.bf16.gmra.mxu0 %v2787
        %v2798 = vpop.f32.mrf.mxu0
        %v2799 = vadd.f32 0.0, %v2798
        %v2800 = vpop.f32.mrf.mxu0
        %2801 = vdwg.mxu0
        %v2802 = vadd.f32 %v2783, %v2799
        %v2803 = vmax.f32 %v2431, %v2802
        %2804 = vmatpush.bf16.msra.mxu0 0
        %2805 = vmatpush.bf16.msra.mxu0 0
        %2806 = vmatpush.bf16.msra.mxu0 0
        %2807 = vmatpush.bf16.msra.mxu0 0
        %2808 = vmatpush.bf16.msra.mxu0 0
        %2809 = vmatpush.bf16.msra.mxu0 0
        %2810 = vmatpush.bf16.msra.mxu0 %v1123
        %2811 = vmatpush.bf16.msra.mxu0 %v1115
        %2812 = vmatmul.bf16.gmra.mxu0 %v1378
        %v2813 = vpop.f32.mrf.mxu0
        %v2814 = vadd.f32 0.0, %v2813
        %v2815 = vpop.f32.mrf.mxu0
        %2816 = vdwg.mxu0
        %2817 = vmatpush.bf16.msra.mxu0 0
        %2818 = vmatpush.bf16.msra.mxu0 0
        %2819 = vmatpush.bf16.msra.mxu0 0
        %2820 = vmatpush.bf16.msra.mxu0 0
        %2821 = vmatpush.bf16.msra.mxu0 0
        %2822 = vmatpush.bf16.msra.mxu0 0
        %2823 = vmatpush.bf16.msra.mxu0 %v1153
        %2824 = vmatpush.bf16.msra.mxu0 %v1146
        %2825 = vmatmul.bf16.gmra.mxu0 %v1339
        %v2826 = vpop.f32.mrf.mxu0
        %v2827 = vadd.f32 %v2814, %v2826
        %v2828 = vpop.f32.mrf.mxu0
        %2829 = vdwg.mxu0
        %2830 = vmatpush.bf16.msra.mxu0 0
        %2831 = vmatpush.bf16.msra.mxu0 0
        %2832 = vmatpush.bf16.msra.mxu0 0
        %2833 = vmatpush.bf16.msra.mxu0 0
        %2834 = vmatpush.bf16.msra.mxu0 0
        %2835 = vmatpush.bf16.msra.mxu0 0
        %2836 = vmatpush.bf16.msra.mxu0 %v1191
        %2837 = vmatpush.bf16.msra.mxu0 %v1184
        %2838 = vmatmul.bf16.gmra.mxu0 %v1417
        %v2839 = vpop.f32.mrf.mxu0
        %v2840 = vadd.f32 0.0, %v2839
        %v2841 = vpop.f32.mrf.mxu0
        %2842 = vdwg.mxu0
        %v2843 = vadd.f32 %v2827, %v2840
        %2844 = vmatpush.bf16.msra.mxu0 0
        %2845 = vmatpush.bf16.msra.mxu0 0
        %2846 = vmatpush.bf16.msra.mxu0 0
        %2847 = vmatpush.bf16.msra.mxu0 0
        %2848 = vmatpush.bf16.msra.mxu0 0
        %2849 = vmatpush.bf16.msra.mxu0 0
        %2850 = vmatpush.bf16.msra.mxu0 %v1230
        %2851 = vmatpush.bf16.msra.mxu0 %v1223
        %2852 = vmatmul.bf16.gmra.mxu0 %v1455
        %v2853 = vpop.f32.mrf.mxu0
        %v2854 = vadd.f32 0.0, %v2853
        %v2855 = vpop.f32.mrf.mxu0
        %2856 = vdwg.mxu0
        %v2857 = vadd.f32 %v2843, %v2854
        %2858 = vmatpush.bf16.msra.mxu0 0
        %2859 = vmatpush.bf16.msra.mxu0 0
        %2860 = vmatpush.bf16.msra.mxu0 0
        %2861 = vmatpush.bf16.msra.mxu0 0
        %2862 = vmatpush.bf16.msra.mxu0 0
        %2863 = vmatpush.bf16.msra.mxu0 0
        %2864 = vmatpush.bf16.msra.mxu0 %v1268
        %2865 = vmatpush.bf16.msra.mxu0 %v1261
        %2866 = vmatmul.bf16.gmra.mxu0 %v2190
        %v2867 = vpop.f32.mrf.mxu0
        %v2868 = vadd.f32 0.0, %v2867
        %v2869 = vpop.f32.mrf.mxu0
        %2870 = vdwg.mxu0
        %v2871 = vadd.f32 %v2857, %v2868
        %2872 = vmatpush.bf16.msra.mxu0 0
        %2873 = vmatpush.bf16.msra.mxu0 0
        %2874 = vmatpush.bf16.msra.mxu0 0
        %2875 = vmatpush.bf16.msra.mxu0 0
        %2876 = vmatpush.bf16.msra.mxu0 0
        %2877 = vmatpush.bf16.msra.mxu0 0
        %2878 = vmatpush.bf16.msra.mxu0 %v1305
        %2879 = vmatpush.bf16.msra.mxu0 %v1298
        %2880 = vmatmul.bf16.gmra.mxu0 %v1539
        %v2881 = vpop.f32.mrf.mxu0
        %v2882 = vadd.f32 0.0, %v2881
        %v2883 = vpop.f32.mrf.mxu0
        %2884 = vdwg.mxu0
        %v2885 = vadd.f32 %v2871, %v2882
        %2886 = vmatpush.bf16.msra.mxu0 0
        %2887 = vmatpush.bf16.msra.mxu0 0
        %2888 = vmatpush.bf16.msra.mxu0 0
        %2889 = vmatpush.bf16.msra.mxu0 0
        %2890 = vmatpush.bf16.msra.mxu0 0
        %2891 = vmatpush.bf16.msra.mxu0 0
        %2892 = vmatpush.bf16.msra.mxu0 %v1342
        %2893 = vmatpush.bf16.msra.mxu0 %v1335
        %2894 = vmatmul.bf16.gmra.mxu0 %v1577
        %v2895 = vpop.f32.mrf.mxu0
        %v2896 = vadd.f32 0.0, %v2895
        %v2897 = vpop.f32.mrf.mxu0
        %2898 = vdwg.mxu0
        %v2899 = vadd.f32 %v2885, %v2896
        %2900 = vmatpush.bf16.msra.mxu0 0
        %2901 = vmatpush.bf16.msra.mxu0 0
        %2902 = vmatpush.bf16.msra.mxu0 0
        %2903 = vmatpush.bf16.msra.mxu0 0
        %2904 = vmatpush.bf16.msra.mxu0 0
        %2905 = vmatpush.bf16.msra.mxu0 0
        %2906 = vmatpush.bf16.msra.mxu0 %v1381
        %2907 = vmatpush.bf16.msra.mxu0 %v1374
        %2908 = vmatmul.bf16.gmra.mxu0 %v1615
        %v2909 = vpop.f32.mrf.mxu0
        %v2910 = vadd.f32 0.0, %v2909
        %v2911 = vpop.f32.mrf.mxu0
        %2912 = vdwg.mxu0
        %v2913 = vadd.f32 %v2899, %v2910
        %2914 = vmatpush.bf16.msra.mxu0 0
        %2915 = vmatpush.bf16.msra.mxu0 0
        %2916 = vmatpush.bf16.msra.mxu0 0
        %2917 = vmatpush.bf16.msra.mxu0 0
        %2918 = vmatpush.bf16.msra.mxu0 0
        %2919 = vmatpush.bf16.msra.mxu0 0
        %2920 = vmatpush.bf16.msra.mxu0 %v1420
        %2921 = vmatpush.bf16.msra.mxu0 %v1413
        %2922 = vmatmul.bf16.gmra.mxu0 %v1653
        %v2923 = vpop.f32.mrf.mxu0
        %v2924 = vadd.f32 0.0, %v2923
        %v2925 = vpop.f32.mrf.mxu0
        %2926 = vdwg.mxu0
        %v2927 = vadd.f32 %v2913, %v2924
        %2928 = vmatpush.bf16.msra.mxu0 0
        %2929 = vmatpush.bf16.msra.mxu0 0
        %2930 = vmatpush.bf16.msra.mxu0 0
        %2931 = vmatpush.bf16.msra.mxu0 0
        %2932 = vmatpush.bf16.msra.mxu0 0
        %2933 = vmatpush.bf16.msra.mxu0 0
        %2934 = vmatpush.bf16.msra.mxu0 %v1458
        %2935 = vmatpush.bf16.msra.mxu0 %v1451
        %2936 = vmatmul.bf16.gmra.mxu0 %v2265
        %v2937 = vpop.f32.mrf.mxu0
        %v2938 = vadd.f32 0.0, %v2937
        %v2939 = vpop.f32.mrf.mxu0
        %2940 = vdwg.mxu0
        %v2941 = vadd.f32 %v2927, %v2938
        %2942 = vmatpush.bf16.msra.mxu0 0
        %2943 = vmatpush.bf16.msra.mxu0 0
        %2944 = vmatpush.bf16.msra.mxu0 0
        %2945 = vmatpush.bf16.msra.mxu0 0
        %2946 = vmatpush.bf16.msra.mxu0 0
        %2947 = vmatpush.bf16.msra.mxu0 0
        %2948 = vmatpush.bf16.msra.mxu0 %v1500
        %2949 = vmatpush.bf16.msra.mxu0 %v1493
        %2950 = vmatmul.bf16.gmra.mxu0 %v1737
        %v2951 = vpop.f32.mrf.mxu0
        %v2952 = vadd.f32 0.0, %v2951
        %v2953 = vpop.f32.mrf.mxu0
        %2954 = vdwg.mxu0
        %v2955 = vadd.f32 %v2941, %v2952
        %2956 = vmatpush.bf16.msra.mxu0 0
        %2957 = vmatpush.bf16.msra.mxu0 0
        %2958 = vmatpush.bf16.msra.mxu0 0
        %2959 = vmatpush.bf16.msra.mxu0 0
        %2960 = vmatpush.bf16.msra.mxu0 0
        %2961 = vmatpush.bf16.msra.mxu0 0
        %2962 = vmatpush.bf16.msra.mxu0 %v1542
        %2963 = vmatpush.bf16.msra.mxu0 %v1535
        %2964 = vmatmul.bf16.gmra.mxu0 %v1775
        %v2965 = vpop.f32.mrf.mxu0
        %v2966 = vadd.f32 0.0, %v2965
        %v2967 = vpop.f32.mrf.mxu0
        %2968 = vdwg.mxu0
        %v2969 = vadd.f32 %v2955, %v2966
        %2970 = vmatpush.bf16.msra.mxu0 0
        %2971 = vmatpush.bf16.msra.mxu0 0
        %2972 = vmatpush.bf16.msra.mxu0 0
        %2973 = vmatpush.bf16.msra.mxu0 0
        %2974 = vmatpush.bf16.msra.mxu0 0
        %2975 = vmatpush.bf16.msra.mxu0 0
        %2976 = vmatpush.bf16.msra.mxu0 %v1580
        %2977 = vmatpush.bf16.msra.mxu0 %v1573
        %2978 = vmatmul.bf16.gmra.mxu0 %v1813
        %v2979 = vpop.f32.mrf.mxu0
        %v2980 = vadd.f32 0.0, %v2979
        %v2981 = vpop.f32.mrf.mxu0
        %2982 = vdwg.mxu0
        %v2983 = vadd.f32 %v2969, %v2980
        %2984 = vmatpush.bf16.msra.mxu0 0
        %2985 = vmatpush.bf16.msra.mxu0 0
        %2986 = vmatpush.bf16.msra.mxu0 0
        %2987 = vmatpush.bf16.msra.mxu0 0
        %2988 = vmatpush.bf16.msra.mxu0 0
        %2989 = vmatpush.bf16.msra.mxu0 0
        %2990 = vmatpush.bf16.msra.mxu0 %v1618
        %2991 = vmatpush.bf16.msra.mxu0 %v1611
        %2992 = vmatmul.bf16.gmra.mxu0 %v1851
        %v2993 = vpop.f32.mrf.mxu0
        %v2994 = vadd.f32 0.0, %v2993
        %v2995 = vpop.f32.mrf.mxu0
        %2996 = vdwg.mxu0
        %v2997 = vadd.f32 %v2983, %v2994
        %2998 = vmatpush.bf16.msra.mxu0 0
        %2999 = vmatpush.bf16.msra.mxu0 0
        %3000 = vmatpush.bf16.msra.mxu0 0
        %3001 = vmatpush.bf16.msra.mxu0 0
        %3002 = vmatpush.bf16.msra.mxu0 0
        %3003 = vmatpush.bf16.msra.mxu0 0
        %3004 = vmatpush.bf16.msra.mxu0 %v1656
        %3005 = vmatpush.bf16.msra.mxu0 %v1649
        %3006 = vmatmul.bf16.gmra.mxu0 %v2340
        %v3007 = vpop.f32.mrf.mxu0
        %v3008 = vadd.f32 0.0, %v3007
        %v3009 = vpop.f32.mrf.mxu0
        %3010 = vdwg.mxu0
        %v3011 = vadd.f32 %v2997, %v3008
        %3012 = vmatpush.bf16.msra.mxu0 0
        %3013 = vmatpush.bf16.msra.mxu0 0
        %3014 = vmatpush.bf16.msra.mxu0 0
        %3015 = vmatpush.bf16.msra.mxu0 0
        %3016 = vmatpush.bf16.msra.mxu0 0
        %3017 = vmatpush.bf16.msra.mxu0 0
        %3018 = vmatpush.bf16.msra.mxu0 %v1698
        %3019 = vmatpush.bf16.msra.mxu0 %v1691
        %3020 = vmatmul.bf16.gmra.mxu0 %v1925
        %v3021 = vpop.f32.mrf.mxu0
        %v3022 = vadd.f32 0.0, %v3021
        %v3023 = vpop.f32.mrf.mxu0
        %3024 = vdwg.mxu0
        %v3025 = vadd.f32 %v3011, %v3022
        %3026 = vmatpush.bf16.msra.mxu0 0
        %3027 = vmatpush.bf16.msra.mxu0 0
        %3028 = vmatpush.bf16.msra.mxu0 0
        %3029 = vmatpush.bf16.msra.mxu0 0
        %3030 = vmatpush.bf16.msra.mxu0 0
        %3031 = vmatpush.bf16.msra.mxu0 0
        %3032 = vmatpush.bf16.msra.mxu0 %v1740
        %3033 = vmatpush.bf16.msra.mxu0 %v1733
        %3034 = vmatmul.bf16.gmra.mxu0 %v1963
        %v3035 = vpop.f32.mrf.mxu0
        %v3036 = vadd.f32 0.0, %v3035
        %v3037 = vpop.f32.mrf.mxu0
        %3038 = vdwg.mxu0
        %v3039 = vadd.f32 %v3025, %v3036
        %3040 = vmatpush.bf16.msra.mxu0 0
        %3041 = vmatpush.bf16.msra.mxu0 0
        %3042 = vmatpush.bf16.msra.mxu0 0
        %3043 = vmatpush.bf16.msra.mxu0 0
        %3044 = vmatpush.bf16.msra.mxu0 0
        %3045 = vmatpush.bf16.msra.mxu0 0
        %3046 = vmatpush.bf16.msra.mxu0 %v1778
        %3047 = vmatpush.bf16.msra.mxu0 %v1771
        %3048 = vmatmul.bf16.gmra.mxu0 %v2001
        %v3049 = vpop.f32.mrf.mxu0
        %v3050 = vadd.f32 0.0, %v3049
        %v3051 = vpop.f32.mrf.mxu0
        %3052 = vdwg.mxu0
        %v3053 = vadd.f32 %v3039, %v3050
        %3054 = vmatpush.bf16.msra.mxu0 0
        %3055 = vmatpush.bf16.msra.mxu0 0
        %3056 = vmatpush.bf16.msra.mxu0 0
        %3057 = vmatpush.bf16.msra.mxu0 0
        %3058 = vmatpush.bf16.msra.mxu0 0
        %3059 = vmatpush.bf16.msra.mxu0 0
        %3060 = vmatpush.bf16.msra.mxu0 %v1816
        %3061 = vmatpush.bf16.msra.mxu0 %v1809
        %3062 = vmatmul.bf16.gmra.mxu0 %v2039
        %v3063 = vpop.f32.mrf.mxu0
        %v3064 = vadd.f32 0.0, %v3063
        %v3065 = vpop.f32.mrf.mxu0
        %3066 = vdwg.mxu0
        %v3067 = vadd.f32 %v3053, %v3064
        %3068 = vmatpush.bf16.msra.mxu0 0
        %3069 = vmatpush.bf16.msra.mxu0 0
        %3070 = vmatpush.bf16.msra.mxu0 0
        %3071 = vmatpush.bf16.msra.mxu0 0
        %3072 = vmatpush.bf16.msra.mxu0 0
        %3073 = vmatpush.bf16.msra.mxu0 0
        %3074 = vmatpush.bf16.msra.mxu0 %v1854
        %3075 = vmatpush.bf16.msra.mxu0 %v1847
        %3076 = vmatmul.bf16.gmra.mxu0 %v2415
        %v3077 = vpop.f32.mrf.mxu0
        %v3078 = vadd.f32 0.0, %v3077
        %v3079 = vpop.f32.mrf.mxu0
        %3080 = vdwg.mxu0
        %v3081 = vadd.f32 %v3067, %v3078
        %3082 = vmatpush.bf16.msra.mxu0 0
        %3083 = vmatpush.bf16.msra.mxu0 0
        %3084 = vmatpush.bf16.msra.mxu0 0
        %3085 = vmatpush.bf16.msra.mxu0 0
        %3086 = vmatpush.bf16.msra.mxu0 0
        %3087 = vmatpush.bf16.msra.mxu0 0
        %3088 = vmatpush.bf16.msra.mxu0 %v1891
        %3089 = vmatpush.bf16.msra.mxu0 %v1884
        %3090 = vmatmul.bf16.gmra.mxu0 %v2730
        %v3091 = vpop.f32.mrf.mxu0
        %v3092 = vadd.f32 0.0, %v3091
        %v3093 = vpop.f32.mrf.mxu0
        %3094 = vdwg.mxu0
        %v3095 = vadd.f32 %v3081, %v3092
        %3096 = vmatpush.bf16.msra.mxu0 0
        %3097 = vmatpush.bf16.msra.mxu0 0
        %3098 = vmatpush.bf16.msra.mxu0 0
        %3099 = vmatpush.bf16.msra.mxu0 0
        %3100 = vmatpush.bf16.msra.mxu0 0
        %3101 = vmatpush.bf16.msra.mxu0 0
        %3102 = vmatpush.bf16.msra.mxu0 %v1928
        %3103 = vmatpush.bf16.msra.mxu0 %v1921
        %3104 = vmatmul.bf16.gmra.mxu0 %v2749
        %v3105 = vpop.f32.mrf.mxu0
        %v3106 = vadd.f32 0.0, %v3105
        %v3107 = vpop.f32.mrf.mxu0
        %3108 = vdwg.mxu0
        %v3109 = vadd.f32 %v3095, %v3106
        %3110 = vmatpush.bf16.msra.mxu0 0
        %3111 = vmatpush.bf16.msra.mxu0 0
        %3112 = vmatpush.bf16.msra.mxu0 0
        %3113 = vmatpush.bf16.msra.mxu0 0
        %3114 = vmatpush.bf16.msra.mxu0 0
        %3115 = vmatpush.bf16.msra.mxu0 0
        %3116 = vmatpush.bf16.msra.mxu0 %v1966
        %3117 = vmatpush.bf16.msra.mxu0 %v1959
        %3118 = vmatmul.bf16.gmra.mxu0 %v2768
        %v3119 = vpop.f32.mrf.mxu0
        %v3120 = vadd.f32 0.0, %v3119
        %v3121 = vpop.f32.mrf.mxu0
        %3122 = vdwg.mxu0
        %v3123 = vadd.f32 %v3109, %v3120
        %3124 = vmatpush.bf16.msra.mxu0 0
        %3125 = vmatpush.bf16.msra.mxu0 0
        %3126 = vmatpush.bf16.msra.mxu0 0
        %3127 = vmatpush.bf16.msra.mxu0 0
        %3128 = vmatpush.bf16.msra.mxu0 0
        %3129 = vmatpush.bf16.msra.mxu0 0
        %3130 = vmatpush.bf16.msra.mxu0 %v2004
        %3131 = vmatpush.bf16.msra.mxu0 %v1997
        %3132 = vmatmul.bf16.gmra.mxu0 %v2787
        %v3133 = vpop.f32.mrf.mxu0
        %v3134 = vadd.f32 0.0, %v3133
        %v3135 = vpop.f32.mrf.mxu0
        %3136 = vdwg.mxu0
        %v3137 = vadd.f32 %v3123, %v3134
        %3138 = vrot.lane.b32.xlu0 %v2728, 116
        %v3139 = vpop.permute.xlu0 %3138
        %v3141 = vsel %vm1118, %v3139, 0
        %3143 = vmatpush.bf16.msra.mxu0 0
        %3144 = vmatpush.bf16.msra.mxu0 0
        %3145 = vmatpush.bf16.msra.mxu0 0
        %3146 = vmatpush.bf16.msra.mxu0 0
        %3147 = vmatpush.bf16.msra.mxu0 0
        %3148 = vmatpush.bf16.msra.mxu0 0
        %3149 = vmatpush.bf16.msra.mxu0 %v2042
        %3150 = vmatpush.bf16.msra.mxu0 %v2035
        %3151 = vmatmul.bf16.gmra.mxu0 %v3141
        %v3152 = vpop.f32.mrf.mxu0
        %v3153 = vadd.f32 0.0, %v3152
        %v3154 = vpop.f32.mrf.mxu0
        %3155 = vdwg.mxu0
        %v3156 = vadd.f32 %v3137, %v3153
        %v3157 = vmax.f32 %v2803, %v3156
        %v3159 = vperm.slane %v1095, 0
        %v3161 = vadd.f32 %v3157, %v3159
        %v3162 = vmax.f32 %v3161, 0.0
        %v3163 = vld [vmem:[%s6] sm:$0x1]
        %v3164 = vpack.c.bf16 %v3162, %v3162
        %v3165 = vld [vmem:[%s5] sm:$0xf]
        %v3166 = vld [vmem:[%s5 + $0x4] sm:$0xf]
        %v3167 = vld [vmem:[%s5 + $0x8] sm:$0xf]
        %v3168 = vld [vmem:[%s5 + $0xc] sm:$0xf]
        %v3169 = vld [vmem:[%s5 + $0x10] sm:$0xf]
        %v3170 = vld [vmem:[%s5 + $0x14] sm:$0xf]
        %v3171 = vld [vmem:[%s5 + $0x18] sm:$0xf]
        %v3172 = vld [vmem:[%s5 + $0x1c] sm:$0xf]
        %v3173 = vld [vmem:[%s5 + $0x20] sm:$0xf]
        %v3174 = vld [vmem:[%s5 + $0x24] sm:$0xf]
        %v3185 = vunpack.c.l.b16 %v3165
        %v3186 = vunpack.c.l.b16 %v3166
        %v3187 = vunpack.c.l.b16 %v3167
        %v3188 = vunpack.c.l.b16 %v3168
        %v3189 = vunpack.c.l.b16 %v3169
        %v3190 = vunpack.c.l.b16 %v3170
        %v3191 = vunpack.c.l.b16 %v3171
        %v3192 = vunpack.c.l.b16 %v3172
        %v3193 = vunpack.c.l.b16 %v3173
        %v3194 = vunpack.c.l.b16 %v3174
        %v3195 = vpack.c.b16 %v3186, %v3185
        %v3196 = vpack.c.b16 %v3188, %v3187
        %v3197 = vpack.c.b16 %v3190, %v3189
        %v3198 = vpack.c.b16 %v3192, %v3191
        %v3199 = vpack.c.b16 %v3194, %v3193
        %vm3205 = vcmask 654336
        %v3207 = vsel %vm3205, %v3164, 0
        %3209 = vmatpush.bf16.msra.mxu0 0
        %3210 = vmatpush.bf16.msra.mxu0 0
        %3211 = vmatpush.bf16.msra.mxu0 0
        %3212 = vmatpush.bf16.msra.mxu0 %v3199
        %3213 = vmatpush.bf16.msra.mxu0 %v3198
        %3214 = vmatpush.bf16.msra.mxu0 %v3197
        %3215 = vmatpush.bf16.msra.mxu0 %v3196
        %3216 = vmatpush.bf16.msra.mxu0 %v3195
        %3217 = vmatmul.bf16.gmra.mxu0 %v3207
        %v3218 = vpop.f32.mrf.mxu0
        %v3219 = vadd.f32 0.0, %v3218
        %v3220 = vpop.f32.mrf.mxu0
        %3221 = vdwg.mxu0
        %v3222 = vadd.f32 %v3163, %v3219
        %s3223 = scalar_lea.vmem %s5, 40
        %v3224 = vld [vmem:[%s3223] sm:$0xf]
        %v3225 = vld [vmem:[%s3223 + $0x4] sm:$0xf]
        %v3226 = vld [vmem:[%s3223 + $0x8] sm:$0xf]
        %v3227 = vld [vmem:[%s3223 + $0xc] sm:$0xf]
        %v3228 = vld [vmem:[%s3223 + $0x10] sm:$0xf]
        %v3229 = vld [vmem:[%s3223 + $0x14] sm:$0xf]
        %v3230 = vld [vmem:[%s3223 + $0x18] sm:$0xf]
        %v3231 = vld [vmem:[%s3223 + $0x1c] sm:$0xf]
        %v3232 = vld [vmem:[%s3223 + $0x20] sm:$0xf]
        %v3233 = vld [vmem:[%s3223 + $0x24] sm:$0xf]
        %v3234 = vshrl.u32 %v3164, 16
        %v3246 = vunpack.c.l.b16 %v3224
        %v3247 = vunpack.c.l.b16 %v3225
        %v3248 = vunpack.c.l.b16 %v3226
        %v3249 = vunpack.c.l.b16 %v3227
        %v3250 = vunpack.c.l.b16 %v3228
        %v3251 = vunpack.c.l.b16 %v3229
        %v3252 = vunpack.c.l.b16 %v3230
        %v3253 = vunpack.c.l.b16 %v3231
        %v3254 = vunpack.c.l.b16 %v3232
        %v3255 = vunpack.c.l.b16 %v3233
        %v3256 = vpack.c.b16 %v3247, %v3246
        %v3257 = vpack.c.b16 %v3249, %v3248
        %v3258 = vpack.c.b16 %v3251, %v3250
        %v3259 = vpack.c.b16 %v3253, %v3252
        %v3260 = vpack.c.b16 %v3255, %v3254
        %v3267 = vsel %vm3205, %v3234, 0
        %3269 = vmatpush.bf16.msra.mxu0 0
        %3270 = vmatpush.bf16.msra.mxu0 0
        %3271 = vmatpush.bf16.msra.mxu0 0
        %3272 = vmatpush.bf16.msra.mxu0 %v3260
        %3273 = vmatpush.bf16.msra.mxu0 %v3259
        %3274 = vmatpush.bf16.msra.mxu0 %v3258
        %3275 = vmatpush.bf16.msra.mxu0 %v3257
        %3276 = vmatpush.bf16.msra.mxu0 %v3256
        %3277 = vmatmul.bf16.gmra.mxu0 %v3267
        %v3278 = vpop.f32.mrf.mxu0
        %v3279 = vadd.f32 0.0, %v3278
        %v3280 = vpop.f32.mrf.mxu0
        %3281 = vdwg.mxu0
        %v3282 = vadd.f32 %v3222, %v3279
        %s3283 = scalar_lea.vmem %s5, 80
        %v3284 = vld [vmem:[%s3283] sm:$0xf]
        %v3285 = vld [vmem:[%s3283 + $0x4] sm:$0xf]
        %v3286 = vld [vmem:[%s3283 + $0x8] sm:$0xf]
        %v3287 = vld [vmem:[%s3283 + $0xc] sm:$0xf]
        %v3288 = vld [vmem:[%s3283 + $0x10] sm:$0xf]
        %v3289 = vld [vmem:[%s3283 + $0x14] sm:$0xf]
        %v3290 = vld [vmem:[%s3283 + $0x18] sm:$0xf]
        %v3291 = vld [vmem:[%s3283 + $0x1c] sm:$0xf]
        %v3292 = vld [vmem:[%s3283 + $0x20] sm:$0xf]
        %v3293 = vld [vmem:[%s3283 + $0x24] sm:$0xf]
        %v3295 = vrot.slane %v3164, 1
        %v3306 = vunpack.c.l.b16 %v3284
        %v3307 = vunpack.c.l.b16 %v3285
        %v3308 = vunpack.c.l.b16 %v3286
        %v3309 = vunpack.c.l.b16 %v3287
        %v3310 = vunpack.c.l.b16 %v3288
        %v3311 = vunpack.c.l.b16 %v3289
        %v3312 = vunpack.c.l.b16 %v3290
        %v3313 = vunpack.c.l.b16 %v3291
        %v3314 = vunpack.c.l.b16 %v3292
        %v3315 = vunpack.c.l.b16 %v3293
        %v3316 = vpack.c.b16 %v3307, %v3306
        %v3317 = vpack.c.b16 %v3309, %v3308
        %v3318 = vpack.c.b16 %v3311, %v3310
        %v3319 = vpack.c.b16 %v3313, %v3312
        %v3320 = vpack.c.b16 %v3315, %v3314
        %v3327 = vsel %vm3205, %v3295, 0
        %3329 = vmatpush.bf16.msra.mxu0 0
        %3330 = vmatpush.bf16.msra.mxu0 0
        %3331 = vmatpush.bf16.msra.mxu0 0
        %3332 = vmatpush.bf16.msra.mxu0 %v3320
        %3333 = vmatpush.bf16.msra.mxu0 %v3319
        %3334 = vmatpush.bf16.msra.mxu0 %v3318
        %3335 = vmatpush.bf16.msra.mxu0 %v3317
        %3336 = vmatpush.bf16.msra.mxu0 %v3316
        %3337 = vmatmul.bf16.gmra.mxu0 %v3327
        %v3338 = vpop.f32.mrf.mxu0
        %v3339 = vadd.f32 0.0, %v3338
        %v3340 = vpop.f32.mrf.mxu0
        %3341 = vdwg.mxu0
        %v3342 = vadd.f32 %v3282, %v3339
        %s3343 = scalar_lea.vmem %s5, 120
        %v3344 = vld [vmem:[%s3343] sm:$0xf]
        %v3345 = vld [vmem:[%s3343 + $0x4] sm:$0xf]
        %v3346 = vld [vmem:[%s3343 + $0x8] sm:$0xf]
        %v3347 = vld [vmem:[%s3343 + $0xc] sm:$0xf]
        %v3348 = vld [vmem:[%s3343 + $0x10] sm:$0xf]
        %v3349 = vld [vmem:[%s3343 + $0x14] sm:$0xf]
        %v3350 = vld [vmem:[%s3343 + $0x18] sm:$0xf]
        %v3351 = vld [vmem:[%s3343 + $0x1c] sm:$0xf]
        %v3352 = vld [vmem:[%s3343 + $0x20] sm:$0xf]
        %v3353 = vld [vmem:[%s3343 + $0x24] sm:$0xf]
        %v3354 = vrot.slane %v3234, 1
        %v3365 = vunpack.c.l.b16 %v3344
        %v3366 = vunpack.c.l.b16 %v3345
        %v3367 = vunpack.c.l.b16 %v3346
        %v3368 = vunpack.c.l.b16 %v3347
        %v3369 = vunpack.c.l.b16 %v3348
        %v3370 = vunpack.c.l.b16 %v3349
        %v3371 = vunpack.c.l.b16 %v3350
        %v3372 = vunpack.c.l.b16 %v3351
        %v3373 = vunpack.c.l.b16 %v3352
        %v3374 = vunpack.c.l.b16 %v3353
        %v3375 = vpack.c.b16 %v3366, %v3365
        %v3376 = vpack.c.b16 %v3368, %v3367
        %v3377 = vpack.c.b16 %v3370, %v3369
        %v3378 = vpack.c.b16 %v3372, %v3371
        %v3379 = vpack.c.b16 %v3374, %v3373
        %v3386 = vsel %vm3205, %v3354, 0
        %3388 = vmatpush.bf16.msra.mxu0 0
        %3389 = vmatpush.bf16.msra.mxu0 0
        %3390 = vmatpush.bf16.msra.mxu0 0
        %3391 = vmatpush.bf16.msra.mxu0 %v3379
        %3392 = vmatpush.bf16.msra.mxu0 %v3378
        %3393 = vmatpush.bf16.msra.mxu0 %v3377
        %3394 = vmatpush.bf16.msra.mxu0 %v3376
        %3395 = vmatpush.bf16.msra.mxu0 %v3375
        %3396 = vmatmul.bf16.gmra.mxu0 %v3386
        %v3397 = vpop.f32.mrf.mxu0
        %v3398 = vadd.f32 0.0, %v3397
        %v3399 = vpop.f32.mrf.mxu0
        %3400 = vdwg.mxu0
        %v3401 = vadd.f32 %v3342, %v3398
        %s3402 = scalar_lea.vmem %s5, 160
        %v3403 = vld [vmem:[%s3402] sm:$0xf]
        %v3404 = vld [vmem:[%s3402 + $0x4] sm:$0xf]
        %v3405 = vld [vmem:[%s3402 + $0x8] sm:$0xf]
        %v3406 = vld [vmem:[%s3402 + $0xc] sm:$0xf]
        %v3407 = vld [vmem:[%s3402 + $0x10] sm:$0xf]
        %v3408 = vld [vmem:[%s3402 + $0x14] sm:$0xf]
        %v3409 = vld [vmem:[%s3402 + $0x18] sm:$0xf]
        %v3410 = vld [vmem:[%s3402 + $0x1c] sm:$0xf]
        %v3411 = vld [vmem:[%s3402 + $0x20] sm:$0xf]
        %v3412 = vld [vmem:[%s3402 + $0x24] sm:$0xf]
        %v3413 = vrot.slane %v3164, 2
        %v3424 = vunpack.c.l.b16 %v3403
        %v3425 = vunpack.c.l.b16 %v3404
        %v3426 = vunpack.c.l.b16 %v3405
        %v3427 = vunpack.c.l.b16 %v3406
        %v3428 = vunpack.c.l.b16 %v3407
        %v3429 = vunpack.c.l.b16 %v3408
        %v3430 = vunpack.c.l.b16 %v3409
        %v3431 = vunpack.c.l.b16 %v3410
        %v3432 = vunpack.c.l.b16 %v3411
        %v3433 = vunpack.c.l.b16 %v3412
        %v3434 = vpack.c.b16 %v3425, %v3424
        %v3435 = vpack.c.b16 %v3427, %v3426
        %v3436 = vpack.c.b16 %v3429, %v3428
        %v3437 = vpack.c.b16 %v3431, %v3430
        %v3438 = vpack.c.b16 %v3433, %v3432
        %v3445 = vsel %vm3205, %v3413, 0
        %3447 = vmatpush.bf16.msra.mxu0 0
        %3448 = vmatpush.bf16.msra.mxu0 0
        %3449 = vmatpush.bf16.msra.mxu0 0
        %3450 = vmatpush.bf16.msra.mxu0 %v3438
        %3451 = vmatpush.bf16.msra.mxu0 %v3437
        %3452 = vmatpush.bf16.msra.mxu0 %v3436
        %3453 = vmatpush.bf16.msra.mxu0 %v3435
        %3454 = vmatpush.bf16.msra.mxu0 %v3434
        %3455 = vmatmul.bf16.gmra.mxu0 %v3445
        %v3456 = vpop.f32.mrf.mxu0
        %v3457 = vadd.f32 0.0, %v3456
        %v3458 = vpop.f32.mrf.mxu0
        %3459 = vdwg.mxu0
        %v3460 = vadd.f32 %v3401, %v3457
        %v3461 = vmax.f32 %v3460, 0.0
        %v3462 = vpack.c.bf16 %v3461, %v3461
        %v3463 = vld [vmem:[%s7] sm:$0xf]
        %v3464 = vld [vmem:[%s7 + $0x4] sm:$0xf]
        %v3465 = vld [vmem:[%s7 + $0x8] sm:$0xf]
        %v3466 = vld [vmem:[%s7 + $0xc] sm:$0xf]
        %v3467 = vld [vmem:[%s7 + $0x10] sm:$0xf]
        %v3468 = vld [vmem:[%s7 + $0x14] sm:$0xf]
        %v3469 = vld [vmem:[%s7 + $0x18] sm:$0xf]
        %v3470 = vld [vmem:[%s7 + $0x1c] sm:$0xf]
        %v3471 = vld [vmem:[%s7 + $0x20] sm:$0xf]
        %v3472 = vld [vmem:[%s7 + $0x24] sm:$0xf]
        %v3473 = vld [vmem:[%s7 + $0x28] sm:$0xf]
        %v3474 = vld [vmem:[%s7 + $0x2c] sm:$0xf]
        %v3475 = vld [vmem:[%s7 + $0x30] sm:$0xf]
        %v3476 = vld [vmem:[%s7 + $0x34] sm:$0xf]
        %v3477 = vld [vmem:[%s7 + $0x38] sm:$0xf]
        %v3478 = vld [vmem:[%s8] sm:$0x1]
        %v3494 = vunpack.c.l.b16 %v3463
        %v3495 = vunpack.c.l.b16 %v3464
        %v3496 = vunpack.c.l.b16 %v3465
        %v3497 = vunpack.c.l.b16 %v3466
        %v3498 = vunpack.c.l.b16 %v3467
        %v3499 = vunpack.c.l.b16 %v3468
        %v3500 = vunpack.c.l.b16 %v3469
        %v3501 = vunpack.c.l.b16 %v3470
        %v3502 = vunpack.c.l.b16 %v3471
        %v3503 = vunpack.c.l.b16 %v3472
        %v3504 = vunpack.c.l.b16 %v3473
        %v3505 = vunpack.c.l.b16 %v3474
        %v3506 = vunpack.c.l.b16 %v3475
        %v3507 = vunpack.c.l.b16 %v3476
        %v3508 = vunpack.c.l.b16 %v3477
        %v3509 = vpack.c.b16 %v3495, %v3494
        %v3510 = vpack.c.b16 %v3497, %v3496
        %v3511 = vpack.c.b16 %v3499, %v3498
        %v3512 = vpack.c.b16 %v3501, %v3500
        %v3513 = vpack.c.b16 %v3503, %v3502
        %v3514 = vpack.c.b16 %v3505, %v3504
        %v3515 = vpack.c.b16 %v3507, %v3506
        %v3516 = vpack.c.b16 %v3508, %v3508
        %vm3524 = vcmask 982016
        %v3526 = vsel %vm3524, %v3462, 0
        %vm3528 = vcmask 1043456
        %v3530 = vsel %vm3528, %v3516, 0
        %3532 = vmatpush.bf16.msra.mxu0 %v3530
        %3533 = vmatpush.bf16.msra.mxu0 %v3515
        %3534 = vmatpush.bf16.msra.mxu0 %v3514
        %3535 = vmatpush.bf16.msra.mxu0 %v3513
        %3536 = vmatpush.bf16.msra.mxu0 %v3512
        %3537 = vmatpush.bf16.msra.mxu0 %v3511
        %3538 = vmatpush.bf16.msra.mxu0 %v3510
        %3539 = vmatpush.bf16.msra.mxu0 %v3509
        %3540 = vmatmul.bf16.gmra.mxu0 %v3526
        %v3541 = vpop.f32.mrf.mxu0
        %v3542 = vadd.f32 %v3478, %v3541
        %v3543 = vpop.f32.mrf.mxu0
        %3544 = vdwg.mxu0
        %v3545 = vmax.f32 %v3542, 0.0
        %v3546 = vpack.c.bf16 %v3545, %v3545
        %v3547 = vld [vmem:[%s9] sm:$0xf]
        %v3548 = vld [vmem:[%s9 + $0x4] sm:$0xf]
        %v3549 = vld [vmem:[%s9 + $0x8] sm:$0xf]
        %v3550 = vld [vmem:[%s9 + $0xc] sm:$0xf]
        %v3551 = vld [vmem:[%s9 + $0x10] sm:$0xf]
        %v3552 = vld [vmem:[%s9 + $0x14] sm:$0xf]
        %v3553 = vld [vmem:[%s9 + $0x18] sm:$0xf]
        %v3554 = vld [vmem:[%s9 + $0x1c] sm:$0xf]
        %v3555 = vld [vmem:[%s9 + $0x20] sm:$0xf]
        %v3556 = vld [vmem:[%s9 + $0x24] sm:$0xf]
        %v3557 = vld [vmem:[%s9 + $0x28] sm:$0x3]
        %v3558 = vld [vmem:[%s10] sm:$0x1]
        %v3570 = vunpack.c.l.b16 %v3547
        %v3571 = vunpack.c.l.b16 %v3548
        %v3572 = vunpack.c.l.b16 %v3549
        %v3573 = vunpack.c.l.b16 %v3550
        %v3574 = vunpack.c.l.b16 %v3551
        %v3575 = vunpack.c.l.b16 %v3552
        %v3576 = vunpack.c.l.b16 %v3553
        %v3577 = vunpack.c.l.b16 %v3554
        %v3578 = vunpack.c.l.b16 %v3555
        %v3579 = vunpack.c.l.b16 %v3556
        %v3580 = vunpack.c.l.b16 %v3557
        %v3581 = vpack.c.b16 %v3571, %v3570
        %v3582 = vpack.c.b16 %v3573, %v3572
        %v3583 = vpack.c.b16 %v3575, %v3574
        %v3584 = vpack.c.b16 %v3577, %v3576
        %v3585 = vpack.c.b16 %v3579, %v3578
        %v3586 = vpack.c.b16 %v3580, %v3580
        %vm3592 = vcmask 687104
        %v3594 = vsel %vm3592, %v3546, 0
        %vm3596 = vcmask 1041408
        %v3598 = vsel %vm3596, %v3586, 0
        %3600 = vmatpush.bf16.msra.mxu0 0
        %3601 = vmatpush.bf16.msra.mxu0 0
        %3602 = vmatpush.bf16.msra.mxu0 %v3598
        %3603 = vmatpush.bf16.msra.mxu0 %v3585
        %3604 = vmatpush.bf16.msra.mxu0 %v3584
        %3605 = vmatpush.bf16.msra.mxu0 %v3583
        %3606 = vmatpush.bf16.msra.mxu0 %v3582
        %3607 = vmatpush.bf16.msra.mxu0 %v3581
        %3608 = vmatmul.bf16.gmra.mxu0 %v3594
        %v3609 = vpop.f32.mrf.mxu0
        %v3610 = vadd.f32 %v3558, %v3609
        %v3611 = vpop.f32.mrf.mxu0
        %3612 = vdwg.mxu0
        %vm3613 = vcmask 73728
        %3614 = vst.msk [vmem:[%s378] sm:$0x1] %vm3613, %v3610
        %s3615 = sand.u32 %s269, 1
        %s3616 = scalar_lea.sflag [#allocation3], %s3615
        %s3617 = sand.u32 %s269, 1
        %s3618 = scalar_lea.vmem [#allocation2], %s3617
        // Predicated region
        $region65: #{lenet5_forward.1} parent=63 // pred_check
          %p3619 = pneg %p279
        $region66: #{lenet5_forward.1} parent=63 // pred_check_branch
          %3621 = sbr.rel (%p3619) target = $region68
        $region67: #{lenet5_forward.1} parent=63 // pred_region
          %3623 = vsyncadd %s3616, 0
          %s3624 = scalar_lea.hbm %s11, %s25
          %s3626 = sshll.u32 %s3618, 4
          %s3627 = int_to_ptr.vmem [resolvable:$true] %s3626
          %s3628 = sshll.u32 %s3624, 4
          %s3629 = int_to_ptr.hbm [resolvable:$true] %s3628
          %3631 = dma.vmem_to_hbm [thread:$0]  %s3627, 16, %s3629, %s3616
        $region68: #{lenet5_forward.1} parent=63 // pred_fallthru
          _
      $region64: #{lenet5_forward.1} parent=5 // pred_fallthru
        _
      %p3632 = scmp.le.s32.totalorder 2, %s20
      // Predicated region
      $region69: #{lenet5_forward.1} parent=5 // pred_check
        %p3633 = pneg %p3632
      $region70: #{lenet5_forward.1} parent=5 // pred_check_branch
        %3635 = sbr.rel (%p3633) target = $region72
      $region71: #{lenet5_forward.1} parent=5 // pred_region
        %s3636 = ssub.s32 %s20, 2
        // Predicated region
        $region73: #{lenet5_forward.1} parent=71 // pred_check
          %p3637 = pneg %p285
        $region74: #{lenet5_forward.1} parent=71 // pred_check_branch
          %3639 = sbr.rel (%p3637) target = $region76
        $region75: #{lenet5_forward.1} parent=71 // pred_region
          %s3640 = sand.u32 %s270, 1
          %s3641 = scalar_lea.sflag [#allocation3], %s3640
          %s3642 = sand.u32 %s270, 1
          %s3643 = scalar_lea.vmem [#allocation2], %s3642
          %3645 = dma.done %s3641, 16
        $region76: #{lenet5_forward.1} parent=71 // pred_fallthru
          _
      $region72: #{lenet5_forward.1} parent=5 // pred_fallthru
        _
    $region6: #{lenet5_forward.1} parent=1 // loop_footer
      %s24 = sadd.s32 1, %s20
    $region7: #{lenet5_forward.1} parent=1 // loop_footer_branch
      %19 = sbr.rel target = $region3
    $region8: #{lenet5_forward.1} parent=1 // loop_exit
      _
    %3646 = vsyncpa [#allocation3], 1
    %s3647 = scalar_lea.sflag [#allocation3], 1
    %3648 = vsyncpa %s3647, 1

</llo_original>
